<compile_context>
chip_gen: v5e
topology: v5e:2x2
jax: 0.10.0
libtpu: 0.0.40
codegen_flags: <defaults>
</compile_context>

<pallas_src>
import functools

import jax
import jax.numpy as jnp
from jax import lax
from jax.experimental import pallas as pl
from jax.experimental.pallas import tpu as pltpu


def _rnd(x, m):
    return ((x + m - 1) // m) * m


# ---------------------------------------------------------------------------
# Pallas kernels
# ---------------------------------------------------------------------------
def _mm_bias_act_kernel(a_ref, w_ref, b_ref, o_ref, *, act):
    """y = act(A @ W + b); full-extent K/N, bf16 operands, f32 accumulate."""
    y = jnp.dot(a_ref[...], w_ref[...], preferred_element_type=jnp.float32)
    y = y + b_ref[...]
    if act == "leaky":
        y = jnp.where(y >= 0, y, 0.2 * y)
    o_ref[...] = y.astype(o_ref.dtype)


def _conv_in_lrelu_kernel(a_ref, w_ref, b_ref, o_ref):
    """Fused Conv(matmul) + bias + InstanceNorm2d(affine=False, eps=1e-5)
    + LeakyReLU(0.2) for ONE batch sample: a (HW, K), w (K, C) -> (HW, C)."""
    y = jnp.dot(a_ref[...], w_ref[...], preferred_element_type=jnp.float32)
    y = y + b_ref[...]
    mean = jnp.mean(y, axis=0, keepdims=True)
    var = jnp.mean(jnp.square(y - mean), axis=0, keepdims=True)  # biased var
    y = (y - mean) * lax.rsqrt(var + 1e-5)
    o_ref[...] = jnp.where(y >= 0, y, 0.2 * y).astype(o_ref.dtype)


def _rowdot_kernel(a_ref, w_ref, o_ref):
    """Single-output-channel conv head: (M, K) * (1, K) -> (M, 1)."""
    a = a_ref[...].astype(jnp.float32)
    w = w_ref[...].astype(jnp.float32)
    o_ref[...] = jnp.sum(a * w, axis=-1, keepdims=True)


# ---------------------------------------------------------------------------
# Kernel wrappers
# ---------------------------------------------------------------------------
def matmul_bias_act(a, w, bias, act="none", out_dtype=jnp.bfloat16,
                    tm_max=1024):
    """a: (M, K) bf16, w: (K, N) bf16, bias: (N,) f32 -> (M, N) out_dtype.

    K and N are full-extent blocks (never padded).  Only M is tiled; it is
    rounded up to a multiple of 8 sublanes (or of tm_max when M > tm_max).
    """
    M, K = a.shape
    K2, N = w.shape
    assert K == K2
    mp = _rnd(M, 8)
    if mp <= tm_max:
        tm = mp
    else:
        tm = tm_max
        mp = _rnd(M, tm)
    if mp != M:
        a = jnp.pad(a, ((0, mp - M), (0, 0)))

    out = pl.pallas_call(
        functools.partial(_mm_bias_act_kernel, act=act),
        out_shape=jax.ShapeDtypeStruct((mp, N), out_dtype),
        grid=(mp // tm,),
        in_specs=[
            pl.BlockSpec((tm, K), lambda i: (i, 0)),
            pl.BlockSpec((K, N), lambda i: (0, 0)),   # weights stay resident
            pl.BlockSpec((1, N), lambda i: (0, 0)),   # bias stays resident
        ],
        out_specs=pl.BlockSpec((tm, N), lambda i: (i, 0)),
        compiler_params=pltpu.CompilerParams(
            dimension_semantics=("parallel",)),
    )(a, w, bias.reshape(1, N).astype(jnp.float32))
    return out if mp == M else out[:M]


def conv_in_lrelu(patches, w, bias):
    """Fused conv + InstanceNorm + LeakyReLU.

    patches: (Nb, HW, K) bf16, w: (K, C) bf16, bias: (C,) f32 -> (Nb, HW, C).
    One grid step per batch sample (norm needs the full spatial extent).
    """
    Nb, HW, K = patches.shape
    C = w.shape[1]
    return pl.pallas_call(
        _conv_in_lrelu_kernel,
        out_shape=jax.ShapeDtypeStruct((Nb, HW, C), jnp.bfloat16),
        grid=(Nb,),
        in_specs=[
            pl.BlockSpec((None, HW, K), lambda n: (n, 0, 0)),
            pl.BlockSpec((K, C), lambda n: (0, 0)),
            pl.BlockSpec((1, C), lambda n: (0, 0)),
        ],
        out_specs=pl.BlockSpec((None, HW, C), lambda n: (n, 0, 0)),
        compiler_params=pltpu.CompilerParams(
            dimension_semantics=("parallel",)),
    )(patches, w, bias.reshape(1, C).astype(jnp.float32))


def rowdot(a, w):
    """a: (M, K) bf16, w: (1, K) bf16 -> (M, 1) f32.  Whole arrays in VMEM."""
    M = a.shape[0]
    return pl.pallas_call(
        _rowdot_kernel,
        out_shape=jax.ShapeDtypeStruct((M, 1), jnp.float32),
        in_specs=[pl.BlockSpec(memory_space=pltpu.MemorySpace.VMEM),
                  pl.BlockSpec(memory_space=pltpu.MemorySpace.VMEM)],
        out_specs=pl.BlockSpec(memory_space=pltpu.MemorySpace.VMEM),
    )(a, w)


# ---------------------------------------------------------------------------
# im2col glue (XLA slicing; kept in bf16 to halve its HBM footprint)
# ---------------------------------------------------------------------------
def _im2col(x, k, stride, pad):
    """x: (N, H, W, C) -> (N, Ho, Wo, k*k*C), K minor order (kh, kw, C)."""
    N, H, W, C = x.shape
    if pad:
        x = jnp.pad(x, ((0, 0), (pad, pad), (pad, pad), (0, 0)))
    Ho = (H + 2 * pad - k) // stride + 1
    Wo = (W + 2 * pad - k) // stride + 1
    cols = []
    for dh in range(k):
        for dw in range(k):
            cols.append(x[:, dh:dh + stride * Ho:stride,
                          dw:dw + stride * Wo:stride, :])
    patches = jnp.stack(cols, axis=3)               # (N, Ho, Wo, k*k, C)
    return patches.reshape(N, Ho, Wo, k * k * C), Ho, Wo


# ---------------------------------------------------------------------------
# Parameters (deterministic synthetic init, PyTorch shapes re-laid-out)
# ---------------------------------------------------------------------------
def init_params(key, ndf):
    ks = jax.random.split(key, 10)
    p = {}

    def conv_w(k, cin, cout):
        # PyTorch (Cout, Cin, kh, kw) -> im2col layout (kh*kw*Cin, Cout), bf16
        w = jax.random.normal(k, (cout, cin, 4, 4), jnp.float32) * 0.05
        return jnp.transpose(w, (2, 3, 1, 0)).reshape(16 * cin, cout) \
                  .astype(jnp.bfloat16)

    cfg = [(3, ndf), (ndf, ndf * 2), (ndf * 2, ndf * 4), (ndf * 4, ndf * 8)]
    for i, (cin, cout) in enumerate(cfg, start=1):
        p[f"conv{i}_w"] = conv_w(ks[i], cin, cout)
        if i == 1:  # conv1 has bias=False
            p[f"conv{i}_b"] = jnp.zeros((cout,), jnp.float32)
        else:
            p[f"conv{i}_b"] = jax.random.normal(ks[4 + i], (cout,),
                                                jnp.float32) * 0.05

    # dis head: Conv2d(ndf*8, 1, k=4, bias=False); weight (1, ndf*8, 4, 4)
    wd = jax.random.normal(ks[9], (1, ndf * 8, 4, 4), jnp.float32) * 0.05
    p["dis_w"] = jnp.transpose(wd, (2, 3, 1, 0)) \
                    .reshape(16 * ndf * 8, 1).T.astype(jnp.bfloat16)  # (1, K)
    return p


# ---------------------------------------------------------------------------
# Forward pass (matches Patch_Discriminator.forward)
# ---------------------------------------------------------------------------
_CONV_CFG = {2: (2, 1), 3: (2, 1), 4: (1, 0)}   # layer -> (stride, pad)


def patch_discriminator_forward(x_nchw, p):
    x = jnp.transpose(x_nchw, (0, 2, 3, 1)).astype(jnp.bfloat16)  # NHWC bf16
    Nb = x.shape[0]

    # conv1: Conv(3 -> ndf, k4 s2 p1, bias=False) + LeakyReLU(0.2)
    patches, Ho, Wo = _im2col(x, 4, 2, 1)
    a = patches.reshape(Nb * Ho * Wo, -1)
    y = matmul_bias_act(a, p["conv1_w"], p["conv1_b"], act="leaky")
    x = y.reshape(Nb, Ho, Wo, -1)

    # conv2..conv4: Conv + InstanceNorm2d + LeakyReLU, fused per batch sample
    for i in (2, 3, 4):
        stride, pad = _CONV_CFG[i]
        patches, Ho, Wo = _im2col(x, 4, stride, pad)
        pat = patches.reshape(Nb, Ho * Wo, -1)
        y = conv_in_lrelu(pat, p[f"conv{i}_w"], p[f"conv{i}_b"])
        x = y.reshape(Nb, Ho, Wo, -1)

    # dis: Conv(ndf*8 -> 1, k4 s1 p0, bias=False), then .squeeze()
    patches, Ho, Wo = _im2col(x, 4, 1, 0)
    a = patches.reshape(Nb * Ho * Wo, -1)
    dis = rowdot(a, p["dis_w"]).reshape(Nb, Ho, Wo, 1)
    dis = jnp.transpose(dis, (0, 3, 1, 2))          # NCHW (Nb, 1, Ho, Wo)
    return jnp.squeeze(dis)


if __name__ == "__main__":
    ndf = 4
    key = jax.random.PRNGKey(0)
    kx, kp = jax.random.split(key)

    # 64x64 input: conv1->32, conv2->16, conv3->8, conv4(k4,s1,p0)->5,
    # dis(k4,s1,p0)->2, so the patch map is non-empty: output (2, 2, 2).
    x = jax.random.normal(kx, (2, 3, 64, 64), jnp.float32)
    params = init_params(kp, ndf)

    fwd = jax.jit(patch_discriminator_forward)
    dis = fwd(x, params)
    jax.block_until_ready(dis)

    assert dis.shape == (2, 2, 2), dis.shape
    assert bool(jnp.all(jnp.isfinite(dis)))
    print("KERNEL_OK")
</pallas_src>

<mosaic_0001>
module attributes {stable_mosaic.version = 11 : i64} {
  func.func @_mm_bias_act_kernel(%arg0: i32, %arg1: memref<1024x48xbf16, #tpu.memory_space<vmem>>, %arg2: memref<48x4xbf16, #tpu.memory_space<vmem>>, %arg3: memref<1x4xf32, #tpu.memory_space<vmem>>, %arg4: memref<1024x4xbf16, #tpu.memory_space<vmem>>) attributes {dimension_semantics = [#tpu.dimension_semantics<parallel>], iteration_bounds = array<i64: 2>, scalar_prefetch = 0 : i64, scratch_operands = 0 : i64, tpu.core_type = #tpu.core_type<tc>, window_params = [{transform_indices = @transform_0, window_bounds = array<i64: 1024, 48>}, {pipeline_mode = #tpu.pipeline_mode<synchronous>, transform_indices = @transform_1, window_bounds = array<i64: 48, 4>}, {pipeline_mode = #tpu.pipeline_mode<synchronous>, transform_indices = @transform_2, window_bounds = array<i64: 1, 4>}, {transform_indices = @transform_3, window_bounds = array<i64: 1024, 4>}]} {
    %c0 = arith.constant 0 : index
    %c0_0 = arith.constant 0 : index
    %0 = vector.load %arg1[%c0, %c0_0] : memref<1024x48xbf16, #tpu.memory_space<vmem>>, vector<1024x48xbf16>
    %c0_1 = arith.constant 0 : index
    %c0_2 = arith.constant 0 : index
    %1 = vector.load %arg2[%c0_1, %c0_2] : memref<48x4xbf16, #tpu.memory_space<vmem>>, vector<48x4xbf16>
    %cst = arith.constant dense<0.000000e+00> : vector<1024x4xf32>
    %2 = tpu.matmul %0, %1, %cst {dimension_numbers = #tpu.dot_dimension_numbers<[1], [0], [0], [1], [0, 0, 1, 1], [], []>} : vector<1024x48xbf16>, vector<48x4xbf16>, vector<1024x4xf32> -> vector<1024x4xf32>
    %c0_3 = arith.constant 0 : index
    %c0_4 = arith.constant 0 : index
    %3 = vector.load %arg3[%c0_3, %c0_4] : memref<1x4xf32, #tpu.memory_space<vmem>>, vector<1x4xf32>
    %4 = vector.broadcast %3 : vector<1x4xf32> to vector<1024x4xf32>
    %5 = arith.addf %2, %4 : vector<1024x4xf32>
    %cst_5 = arith.constant 0.000000e+00 : f32
    %6 = vector.broadcast %cst_5 : f32 to vector<1024x4xf32>
    %7 = arith.cmpf oge, %5, %6 : vector<1024x4xf32>
    %cst_6 = arith.constant 2.000000e-01 : f32
    %8 = vector.broadcast %cst_6 : f32 to vector<1024x4xf32>
    %9 = arith.mulf %8, %5 : vector<1024x4xf32>
    %10 = arith.select %7, %5, %9 : vector<1024x4xi1>, vector<1024x4xf32>
    %11 = arith.truncf %10 : vector<1024x4xf32> to vector<1024x4xbf16>
    %c0_7 = arith.constant 0 : index
    %c0_8 = arith.constant 0 : index
    %12 = vector.load %arg4[%c0_7, %c0_8] : memref<1024x4xbf16, #tpu.memory_space<vmem>>, vector<1024x4xbf16>
    tpu.vector_store %arg4[%c0_7, %c0_8], %11 {strides = array<i32>} : memref<1024x4xbf16, #tpu.memory_space<vmem>>, vector<1024x4xbf16>,
    return
  }
  func.func @transform_0(%arg0: i32) -> (i32, i32) {
    %c0_i32 = arith.constant 0 : i32
    %c0_i32_0 = arith.constant 0 : i32
    return %arg0, %c0_i32 : i32, i32
  }
  func.func @transform_1(%arg0: i32) -> (i32, i32) {
    %c0_i32 = arith.constant 0 : i32
    %c0_i32_0 = arith.constant 0 : i32
    %c0_i32_1 = arith.constant 0 : i32
    return %c0_i32, %c0_i32_0 : i32, i32
  }
  func.func @transform_2(%arg0: i32) -> (i32, i32) {
    %c0_i32 = arith.constant 0 : i32
    %c0_i32_0 = arith.constant 0 : i32
    %c0_i32_1 = arith.constant 0 : i32
    return %c0_i32, %c0_i32_0 : i32, i32
  }
  func.func @transform_3(%arg0: i32) -> (i32, i32) {
    %c0_i32 = arith.constant 0 : i32
    %c0_i32_0 = arith.constant 0 : i32
    return %arg0, %c0_i32 : i32, i32
  }
}

module attributes {stable_mosaic.version = 11 : i64} {
  func.func @_conv_in_lrelu_kernel(%arg0: i32, %arg1: memref<1x256x64xbf16, #tpu.memory_space<vmem>>, %arg2: memref<64x8xbf16, #tpu.memory_space<vmem>>, %arg3: memref<1x8xf32, #tpu.memory_space<vmem>>, %arg4: memref<1x256x8xbf16, #tpu.memory_space<vmem>>) attributes {dimension_semantics = [#tpu.dimension_semantics<parallel>], iteration_bounds = array<i64: 2>, scalar_prefetch = 0 : i64, scratch_operands = 0 : i64, tpu.core_type = #tpu.core_type<tc>, window_params = [{transform_indices = @transform_0, window_bounds = array<i64: 1, 256, 64>}, {pipeline_mode = #tpu.pipeline_mode<synchronous>, transform_indices = @transform_1, window_bounds = array<i64: 64, 8>}, {pipeline_mode = #tpu.pipeline_mode<synchronous>, transform_indices = @transform_2, window_bounds = array<i64: 1, 8>}, {transform_indices = @transform_3, window_bounds = array<i64: 1, 256, 8>}]} {
    %c0 = arith.constant 0 : index
    %c0_0 = arith.constant 0 : index
    %c0_1 = arith.constant 0 : index
    %0 = vector.load %arg1[%c0, %c0_0, %c0_1] : memref<1x256x64xbf16, #tpu.memory_space<vmem>>, vector<1x256x64xbf16>
    %1 = vector.shape_cast %0 : vector<1x256x64xbf16> to vector<256x64xbf16>
    %c0_2 = arith.constant 0 : index
    %c0_3 = arith.constant 0 : index
    %2 = vector.load %arg2[%c0_2, %c0_3] : memref<64x8xbf16, #tpu.memory_space<vmem>>, vector<64x8xbf16>
    %cst = arith.constant dense<0.000000e+00> : vector<256x8xf32>
    %3 = tpu.matmul %1, %2, %cst {dimension_numbers = #tpu.dot_dimension_numbers<[1], [0], [0], [1], [0, 0, 1, 1], [], []>} : vector<256x64xbf16>, vector<64x8xbf16>, vector<256x8xf32> -> vector<256x8xf32>
    %c0_4 = arith.constant 0 : index
    %c0_5 = arith.constant 0 : index
    %4 = vector.load %arg3[%c0_4, %c0_5] : memref<1x8xf32, #tpu.memory_space<vmem>>, vector<1x8xf32>
    %5 = vector.broadcast %4 : vector<1x8xf32> to vector<256x8xf32>
    %6 = arith.addf %3, %5 : vector<256x8xf32>
    %cst_6 = arith.constant dense<0.000000e+00> : vector<8xf32>
    %7 = vector.multi_reduction <add>, %6, %cst_6 [0] : vector<256x8xf32> to vector<8xf32>
    %8 = vector.shape_cast %7 : vector<8xf32> to vector<1x8xf32>
    %cst_7 = arith.constant 2.560000e+02 : f32
    %9 = vector.broadcast %cst_7 : f32 to vector<1x8xf32>
    %10 = arith.divf %8, %9 : vector<1x8xf32>
    %11 = vector.broadcast %10 : vector<1x8xf32> to vector<256x8xf32>
    %12 = arith.subf %6, %11 : vector<256x8xf32>
    %13 = arith.mulf %12, %12 : vector<256x8xf32>
    %cst_8 = arith.constant dense<0.000000e+00> : vector<8xf32>
    %14 = vector.multi_reduction <add>, %13, %cst_8 [0] : vector<256x8xf32> to vector<8xf32>
    %15 = vector.shape_cast %14 : vector<8xf32> to vector<1x8xf32>
    %cst_9 = arith.constant 2.560000e+02 : f32
    %16 = vector.broadcast %cst_9 : f32 to vector<1x8xf32>
    %17 = arith.divf %15, %16 : vector<1x8xf32>
    %18 = vector.broadcast %10 : vector<1x8xf32> to vector<256x8xf32>
    %19 = arith.subf %6, %18 : vector<256x8xf32>
    %cst_10 = arith.constant 9.99999974E-6 : f32
    %20 = vector.broadcast %cst_10 : f32 to vector<1x8xf32>
    %21 = arith.addf %17, %20 : vector<1x8xf32>
    %22 = math.rsqrt %21 : vector<1x8xf32>
    %23 = vector.broadcast %22 : vector<1x8xf32> to vector<256x8xf32>
    %24 = arith.mulf %19, %23 : vector<256x8xf32>
    %cst_11 = arith.constant 0.000000e+00 : f32
    %25 = vector.broadcast %cst_11 : f32 to vector<256x8xf32>
    %26 = arith.cmpf oge, %24, %25 : vector<256x8xf32>
    %cst_12 = arith.constant 2.000000e-01 : f32
    %27 = vector.broadcast %cst_12 : f32 to vector<256x8xf32>
    %28 = arith.mulf %27, %24 : vector<256x8xf32>
    %29 = arith.select %26, %24, %28 : vector<256x8xi1>, vector<256x8xf32>
    %30 = arith.truncf %29 : vector<256x8xf32> to vector<256x8xbf16>
    %c0_13 = arith.constant 0 : index
    %c0_14 = arith.constant 0 : index
    %c0_15 = arith.constant 0 : index
    %31 = vector.load %arg4[%c0_13, %c0_14, %c0_15] : memref<1x256x8xbf16, #tpu.memory_space<vmem>>, vector<1x256x8xbf16>
    %32 = vector.shape_cast %31 : vector<1x256x8xbf16> to vector<256x8xbf16>
    %33 = vector.shape_cast %30 : vector<256x8xbf16> to vector<1x256x8xbf16>
    tpu.vector_store %arg4[%c0_13, %c0_14, %c0_15], %33 {strides = array<i32>} : memref<1x256x8xbf16, #tpu.memory_space<vmem>>, vector<1x256x8xbf16>,
    return
  }
  func.func @transform_0(%arg0: i32) -> (i32, i32, i32) {
    %c0_i32 = arith.constant 0 : i32
    %c0_i32_0 = arith.constant 0 : i32
    %c0_i32_1 = arith.constant 0 : i32
    return %arg0, %c0_i32, %c0_i32_0 : i32, i32, i32
  }
  func.func @transform_1(%arg0: i32) -> (i32, i32) {
    %c0_i32 = arith.constant 0 : i32
    %c0_i32_0 = arith.constant 0 : i32
    %c0_i32_1 = arith.constant 0 : i32
    return %c0_i32, %c0_i32_0 : i32, i32
  }
  func.func @transform_2(%arg0: i32) -> (i32, i32) {
    %c0_i32 = arith.constant 0 : i32
    %c0_i32_0 = arith.constant 0 : i32
    %c0_i32_1 = arith.constant 0 : i32
    return %c0_i32, %c0_i32_0 : i32, i32
  }
  func.func @transform_3(%arg0: i32) -> (i32, i32, i32) {
    %c0_i32 = arith.constant 0 : i32
    %c0_i32_0 = arith.constant 0 : i32
    %c0_i32_1 = arith.constant 0 : i32
    return %arg0, %c0_i32, %c0_i32_0 : i32, i32, i32
  }
}

module attributes {stable_mosaic.version = 11 : i64} {
  func.func @_conv_in_lrelu_kernel(%arg0: i32, %arg1: memref<1x64x128xbf16, #tpu.memory_space<vmem>>, %arg2: memref<128x16xbf16, #tpu.memory_space<vmem>>, %arg3: memref<1x16xf32, #tpu.memory_space<vmem>>, %arg4: memref<1x64x16xbf16, #tpu.memory_space<vmem>>) attributes {dimension_semantics = [#tpu.dimension_semantics<parallel>], iteration_bounds = array<i64: 2>, scalar_prefetch = 0 : i64, scratch_operands = 0 : i64, tpu.core_type = #tpu.core_type<tc>, window_params = [{transform_indices = @transform_0, window_bounds = array<i64: 1, 64, 128>}, {pipeline_mode = #tpu.pipeline_mode<synchronous>, transform_indices = @transform_1, window_bounds = array<i64: 128, 16>}, {pipeline_mode = #tpu.pipeline_mode<synchronous>, transform_indices = @transform_2, window_bounds = array<i64: 1, 16>}, {transform_indices = @transform_3, window_bounds = array<i64: 1, 64, 16>}]} {
    %c0 = arith.constant 0 : index
    %c0_0 = arith.constant 0 : index
    %c0_1 = arith.constant 0 : index
    %0 = vector.load %arg1[%c0, %c0_0, %c0_1] : memref<1x64x128xbf16, #tpu.memory_space<vmem>>, vector<1x64x128xbf16>
    %1 = vector.shape_cast %0 : vector<1x64x128xbf16> to vector<64x128xbf16>
    %c0_2 = arith.constant 0 : index
    %c0_3 = arith.constant 0 : index
    %2 = vector.load %arg2[%c0_2, %c0_3] : memref<128x16xbf16, #tpu.memory_space<vmem>>, vector<128x16xbf16>
    %cst = arith.constant dense<0.000000e+00> : vector<64x16xf32>
    %3 = tpu.matmul %1, %2, %cst {dimension_numbers = #tpu.dot_dimension_numbers<[1], [0], [0], [1], [0, 0, 1, 1], [], []>} : vector<64x128xbf16>, vector<128x16xbf16>, vector<64x16xf32> -> vector<64x16xf32>
    %c0_4 = arith.constant 0 : index
    %c0_5 = arith.constant 0 : index
    %4 = vector.load %arg3[%c0_4, %c0_5] : memref<1x16xf32, #tpu.memory_space<vmem>>, vector<1x16xf32>
    %5 = vector.broadcast %4 : vector<1x16xf32> to vector<64x16xf32>
    %6 = arith.addf %3, %5 : vector<64x16xf32>
    %cst_6 = arith.constant dense<0.000000e+00> : vector<16xf32>
    %7 = vector.multi_reduction <add>, %6, %cst_6 [0] : vector<64x16xf32> to vector<16xf32>
    %8 = vector.shape_cast %7 : vector<16xf32> to vector<1x16xf32>
    %cst_7 = arith.constant 6.400000e+01 : f32
    %9 = vector.broadcast %cst_7 : f32 to vector<1x16xf32>
    %10 = arith.divf %8, %9 : vector<1x16xf32>
    %11 = vector.broadcast %10 : vector<1x16xf32> to vector<64x16xf32>
    %12 = arith.subf %6, %11 : vector<64x16xf32>
    %13 = arith.mulf %12, %12 : vector<64x16xf32>
    %cst_8 = arith.constant dense<0.000000e+00> : vector<16xf32>
    %14 = vector.multi_reduction <add>, %13, %cst_8 [0] : vector<64x16xf32> to vector<16xf32>
    %15 = vector.shape_cast %14 : vector<16xf32> to vector<1x16xf32>
    %cst_9 = arith.constant 6.400000e+01 : f32
    %16 = vector.broadcast %cst_9 : f32 to vector<1x16xf32>
    %17 = arith.divf %15, %16 : vector<1x16xf32>
    %18 = vector.broadcast %10 : vector<1x16xf32> to vector<64x16xf32>
    %19 = arith.subf %6, %18 : vector<64x16xf32>
    %cst_10 = arith.constant 9.99999974E-6 : f32
    %20 = vector.broadcast %cst_10 : f32 to vector<1x16xf32>
    %21 = arith.addf %17, %20 : vector<1x16xf32>
    %22 = math.rsqrt %21 : vector<1x16xf32>
    %23 = vector.broadcast %22 : vector<1x16xf32> to vector<64x16xf32>
    %24 = arith.mulf %19, %23 : vector<64x16xf32>
    %cst_11 = arith.constant 0.000000e+00 : f32
    %25 = vector.broadcast %cst_11 : f32 to vector<64x16xf32>
    %26 = arith.cmpf oge, %24, %25 : vector<64x16xf32>
    %cst_12 = arith.constant 2.000000e-01 : f32
    %27 = vector.broadcast %cst_12 : f32 to vector<64x16xf32>
    %28 = arith.mulf %27, %24 : vector<64x16xf32>
    %29 = arith.select %26, %24, %28 : vector<64x16xi1>, vector<64x16xf32>
    %30 = arith.truncf %29 : vector<64x16xf32> to vector<64x16xbf16>
    %c0_13 = arith.constant 0 : index
    %c0_14 = arith.constant 0 : index
    %c0_15 = arith.constant 0 : index
    %31 = vector.load %arg4[%c0_13, %c0_14, %c0_15] : memref<1x64x16xbf16, #tpu.memory_space<vmem>>, vector<1x64x16xbf16>
    %32 = vector.shape_cast %31 : vector<1x64x16xbf16> to vector<64x16xbf16>
    %33 = vector.shape_cast %30 : vector<64x16xbf16> to vector<1x64x16xbf16>
    tpu.vector_store %arg4[%c0_13, %c0_14, %c0_15], %33 {strides = array<i32>} : memref<1x64x16xbf16, #tpu.memory_space<vmem>>, vector<1x64x16xbf16>,
    return
  }
  func.func @transform_0(%arg0: i32) -> (i32, i32, i32) {
    %c0_i32 = arith.constant 0 : i32
    %c0_i32_0 = arith.constant 0 : i32
    %c0_i32_1 = arith.constant 0 : i32
    return %arg0, %c0_i32, %c0_i32_0 : i32, i32, i32
  }
  func.func @transform_1(%arg0: i32) -> (i32, i32) {
    %c0_i32 = arith.constant 0 : i32
    %c0_i32_0 = arith.constant 0 : i32
    %c0_i32_1 = arith.constant 0 : i32
    return %c0_i32, %c0_i32_0 : i32, i32
  }
  func.func @transform_2(%arg0: i32) -> (i32, i32) {
    %c0_i32 = arith.constant 0 : i32
    %c0_i32_0 = arith.constant 0 : i32
    %c0_i32_1 = arith.constant 0 : i32
    return %c0_i32, %c0_i32_0 : i32, i32
  }
  func.func @transform_3(%arg0: i32) -> (i32, i32, i32) {
    %c0_i32 = arith.constant 0 : i32
    %c0_i32_0 = arith.constant 0 : i32
    %c0_i32_1 = arith.constant 0 : i32
    return %arg0, %c0_i32, %c0_i32_0 : i32, i32, i32
  }
}

module attributes {stable_mosaic.version = 11 : i64} {
  func.func @_conv_in_lrelu_kernel(%arg0: i32, %arg1: memref<1x25x256xbf16, #tpu.memory_space<vmem>>, %arg2: memref<256x32xbf16, #tpu.memory_space<vmem>>, %arg3: memref<1x32xf32, #tpu.memory_space<vmem>>, %arg4: memref<1x25x32xbf16, #tpu.memory_space<vmem>>) attributes {dimension_semantics = [#tpu.dimension_semantics<parallel>], iteration_bounds = array<i64: 2>, scalar_prefetch = 0 : i64, scratch_operands = 0 : i64, tpu.core_type = #tpu.core_type<tc>, window_params = [{transform_indices = @transform_0, window_bounds = array<i64: 1, 25, 256>}, {pipeline_mode = #tpu.pipeline_mode<synchronous>, transform_indices = @transform_1, window_bounds = array<i64: 256, 32>}, {pipeline_mode = #tpu.pipeline_mode<synchronous>, transform_indices = @transform_2, window_bounds = array<i64: 1, 32>}, {transform_indices = @transform_3, window_bounds = array<i64: 1, 25, 32>}]} {
    %c0 = arith.constant 0 : index
    %c0_0 = arith.constant 0 : index
    %c0_1 = arith.constant 0 : index
    %0 = vector.load %arg1[%c0, %c0_0, %c0_1] : memref<1x25x256xbf16, #tpu.memory_space<vmem>>, vector<1x25x256xbf16>
    %1 = vector.shape_cast %0 : vector<1x25x256xbf16> to vector<25x256xbf16>
    %c0_2 = arith.constant 0 : index
    %c0_3 = arith.constant 0 : index
    %2 = vector.load %arg2[%c0_2, %c0_3] : memref<256x32xbf16, #tpu.memory_space<vmem>>, vector<256x32xbf16>
    %cst = arith.constant dense<0.000000e+00> : vector<25x32xf32>
    %3 = tpu.matmul %1, %2, %cst {dimension_numbers = #tpu.dot_dimension_numbers<[1], [0], [0], [1], [0, 0, 1, 1], [], []>} : vector<25x256xbf16>, vector<256x32xbf16>, vector<25x32xf32> -> vector<25x32xf32>
    %c0_4 = arith.constant 0 : index
    %c0_5 = arith.constant 0 : index
    %4 = vector.load %arg3[%c0_4, %c0_5] : memref<1x32xf32, #tpu.memory_space<vmem>>, vector<1x32xf32>
    %5 = vector.broadcast %4 : vector<1x32xf32> to vector<25x32xf32>
    %6 = arith.addf %3, %5 : vector<25x32xf32>
    %cst_6 = arith.constant dense<0.000000e+00> : vector<32xf32>
    %7 = vector.multi_reduction <add>, %6, %cst_6 [0] : vector<25x32xf32> to vector<32xf32>
    %8 = vector.shape_cast %7 : vector<32xf32> to vector<1x32xf32>
    %cst_7 = arith.constant 2.500000e+01 : f32
    %9 = vector.broadcast %cst_7 : f32 to vector<1x32xf32>
    %10 = arith.divf %8, %9 : vector<1x32xf32>
    %11 = vector.broadcast %10 : vector<1x32xf32> to vector<25x32xf32>
    %12 = arith.subf %6, %11 : vector<25x32xf32>
    %13 = arith.mulf %12, %12 : vector<25x32xf32>
    %cst_8 = arith.constant dense<0.000000e+00> : vector<32xf32>
    %14 = vector.multi_reduction <add>, %13, %cst_8 [0] : vector<25x32xf32> to vector<32xf32>
    %15 = vector.shape_cast %14 : vector<32xf32> to vector<1x32xf32>
    %cst_9 = arith.constant 2.500000e+01 : f32
    %16 = vector.broadcast %cst_9 : f32 to vector<1x32xf32>
    %17 = arith.divf %15, %16 : vector<1x32xf32>
    %18 = vector.broadcast %10 : vector<1x32xf32> to vector<25x32xf32>
    %19 = arith.subf %6, %18 : vector<25x32xf32>
    %cst_10 = arith.constant 9.99999974E-6 : f32
    %20 = vector.broadcast %cst_10 : f32 to vector<1x32xf32>
    %21 = arith.addf %17, %20 : vector<1x32xf32>
    %22 = math.rsqrt %21 : vector<1x32xf32>
    %23 = vector.broadcast %22 : vector<1x32xf32> to vector<25x32xf32>
    %24 = arith.mulf %19, %23 : vector<25x32xf32>
    %cst_11 = arith.constant 0.000000e+00 : f32
    %25 = vector.broadcast %cst_11 : f32 to vector<25x32xf32>
    %26 = arith.cmpf oge, %24, %25 : vector<25x32xf32>
    %cst_12 = arith.constant 2.000000e-01 : f32
    %27 = vector.broadcast %cst_12 : f32 to vector<25x32xf32>
    %28 = arith.mulf %27, %24 : vector<25x32xf32>
    %29 = arith.select %26, %24, %28 : vector<25x32xi1>, vector<25x32xf32>
    %30 = arith.truncf %29 : vector<25x32xf32> to vector<25x32xbf16>
    %c0_13 = arith.constant 0 : index
    %c0_14 = arith.constant 0 : index
    %c0_15 = arith.constant 0 : index
    %31 = vector.load %arg4[%c0_13, %c0_14, %c0_15] : memref<1x25x32xbf16, #tpu.memory_space<vmem>>, vector<1x25x32xbf16>
    %32 = vector.shape_cast %31 : vector<1x25x32xbf16> to vector<25x32xbf16>
    %33 = vector.shape_cast %30 : vector<25x32xbf16> to vector<1x25x32xbf16>
    tpu.vector_store %arg4[%c0_13, %c0_14, %c0_15], %33 {strides = array<i32>} : memref<1x25x32xbf16, #tpu.memory_space<vmem>>, vector<1x25x32xbf16>,
    return
  }
  func.func @transform_0(%arg0: i32) -> (i32, i32, i32) {
    %c0_i32 = arith.constant 0 : i32
    %c0_i32_0 = arith.constant 0 : i32
    %c0_i32_1 = arith.constant 0 : i32
    return %arg0, %c0_i32, %c0_i32_0 : i32, i32, i32
  }
  func.func @transform_1(%arg0: i32) -> (i32, i32) {
    %c0_i32 = arith.constant 0 : i32
    %c0_i32_0 = arith.constant 0 : i32
    %c0_i32_1 = arith.constant 0 : i32
    return %c0_i32, %c0_i32_0 : i32, i32
  }
  func.func @transform_2(%arg0: i32) -> (i32, i32) {
    %c0_i32 = arith.constant 0 : i32
    %c0_i32_0 = arith.constant 0 : i32
    %c0_i32_1 = arith.constant 0 : i32
    return %c0_i32, %c0_i32_0 : i32, i32
  }
  func.func @transform_3(%arg0: i32) -> (i32, i32, i32) {
    %c0_i32 = arith.constant 0 : i32
    %c0_i32_0 = arith.constant 0 : i32
    %c0_i32_1 = arith.constant 0 : i32
    return %arg0, %c0_i32, %c0_i32_0 : i32, i32, i32
  }
}

module attributes {stable_mosaic.version = 11 : i64} {
  func.func @_rowdot_kernel(%arg0: memref<8x512xbf16, #tpu.memory_space<vmem>>, %arg1: memref<1x512xbf16, #tpu.memory_space<vmem>>, %arg2: memref<8x1xf32, #tpu.memory_space<vmem>>) attributes {dimension_semantics = [], scalar_prefetch = 0 : i64, scratch_operands = 0 : i64, tpu.core_type = #tpu.core_type<tc>} {
    %c0 = arith.constant 0 : index
    %c0_0 = arith.constant 0 : index
    %0 = vector.load %arg0[%c0, %c0_0] : memref<8x512xbf16, #tpu.memory_space<vmem>>, vector<8x512xbf16>
    %1 = arith.extf %0 : vector<8x512xbf16> to vector<8x512xf32>
    %c0_1 = arith.constant 0 : index
    %c0_2 = arith.constant 0 : index
    %2 = vector.load %arg1[%c0_1, %c0_2] : memref<1x512xbf16, #tpu.memory_space<vmem>>, vector<1x512xbf16>
    %3 = arith.extf %2 : vector<1x512xbf16> to vector<1x512xf32>
    %4 = vector.broadcast %3 : vector<1x512xf32> to vector<8x512xf32>
    %5 = arith.mulf %1, %4 : vector<8x512xf32>
    %cst = arith.constant dense<0.000000e+00> : vector<8xf32>
    %6 = vector.multi_reduction <add>, %5, %cst [1] : vector<8x512xf32> to vector<8xf32>
    %7 = vector.shape_cast %6 : vector<8xf32> to vector<8x1xf32>
    %c0_3 = arith.constant 0 : index
    %c0_4 = arith.constant 0 : index
    %8 = vector.load %arg2[%c0_3, %c0_4] : memref<8x1xf32, #tpu.memory_space<vmem>>, vector<8x1xf32>
    tpu.vector_store %arg2[%c0_3, %c0_4], %7 {strides = array<i32>} : memref<8x1xf32, #tpu.memory_space<vmem>>, vector<8x1xf32>,
    return
  }
}

</mosaic_0001>

<llo_original>
// kernel: patch_discriminator_forward.5
$region0: #{patch_discriminator_forward.5}
  #allocation0 [shape = 'u32[]', space=smem, size = 0x4, offset = 0x4, fixed_abs, tag = 'smem constant byte address 0x4 - core index']
  #allocation1 [shape = 'u32[72,128]{1,0:T(1,128)}', space=vmem, size = 0x9000, scoped, tag = 'internal scratch']
  %s0 = inlined_call_operand.vmem [shape: bf16[2048,48], index: 0, kind: input, shape index: {}]
  %s1 = inlined_call_operand.vmem [shape: bf16[48,4], index: 1, kind: input, shape index: {}]
  %s2 = inlined_call_operand.vmem [shape: f32[1,4], index: 2, kind: input, shape index: {}]
  %s3 = inlined_call_operand.vmem [shape: bf16[2048,4], index: 3, kind: output, shape index: {}]
  %s4 = sld [smem:[#allocation0]]
  $region45: #{patch_discriminator_forward.5} parent=0
    _
  %s6 = ssub.s32 1, %s4
  %s7 = scalar_select 0, %s6, %s4
  loop: start=0, step=1, limit=4
  $region2: #{patch_discriminator_forward.5} parent=0 // loop_pre_header
    _
  $region3: #{patch_discriminator_forward.5} parent=0 // loop_header
    %s9 = sphi 0, %s13
    %p10 = scmp.ge.s32.totalorder %s9, 4
    %s19 = sphi 0, %s21
    %s22 = sphi 0, %s19
    %s23 = sphi 0, %s22
    %s39 = sphi 0, %s23
    %s43 = sphi 0, %s43
    %s45 = sphi 0, %s43
    %s46 = sphi 0, %s45
    %s60 = sphi 0, %s46
    %s64 = sphi 0, %s64
    %s66 = sphi 0, %s64
    %s67 = sphi 0, %s66
    %s81 = sphi 0, %s67
    %s87 = sphi 0, %s89
    %s90 = sphi 0, %s87
    %s91 = sphi 0, %s90
    %s107 = sphi 0, %s91
  $region4: #{patch_discriminator_forward.5} parent=0 // loop_header_branch
    %12 = sbr.rel (%p10) target = $region8
  $region5: #{patch_discriminator_forward.5} parent=0 // loop_body
    %s14 = ssub.s32 %s9, 1
    %s15 = ssub.s32 %s9, 2
    %s16 = sadd.s32 %s9, 1
    %s17 = ssub.s32 %s9, %s16
    %p18 = scmp.eq.s32.totalorder %s17, 0
    %s20 = sadd.s32 %s19, 1
    %s21 = scalar_select %p18, %s19, %s20
    %p24 = pneg %p18
    %p25 = scmp.eq.s32.totalorder %s9, 1
    %p26 = por %p24, %p25
    %p27 = scmp.ne.s32.totalorder %s19, %s22
    %p28 = scmp.eq.s32.totalorder %s9, 0
    %p29 = por %p27, %p28
    %p30 = scmp.ne.s32.totalorder %s19, %s22
    %p31 = scmp.eq.s32.totalorder %s14, 1
    %p32 = por %p30, %p31
    %p33 = scmp.ne.s32.totalorder %s22, %s23
    %p34 = scmp.eq.s32.totalorder %s14, 0
    %p35 = por %p33, %p34
    %p36 = scmp.ne.s32.totalorder %s22, %s23
    %p37 = scmp.eq.s32.totalorder %s15, 1
    %p38 = por %p36, %p37
    %p40 = scmp.ne.s32.totalorder %s23, %s39
    %p41 = scmp.eq.s32.totalorder %s15, 0
    %p42 = por %p40, %p41
    %s44 = sadd.s32 %s43, 1
    %p47 = scmp.eq.s32.totalorder %s9, 1
    %p48 = scmp.ne.s32.totalorder %s43, %s45
    %p49 = scmp.eq.s32.totalorder %s9, 0
    %p50 = por %p48, %p49
    %p51 = scmp.ne.s32.totalorder %s43, %s45
    %p52 = scmp.eq.s32.totalorder %s14, 1
    %p53 = por %p51, %p52
    %p54 = scmp.ne.s32.totalorder %s45, %s46
    %p55 = scmp.eq.s32.totalorder %s14, 0
    %p56 = por %p54, %p55
    %p57 = scmp.ne.s32.totalorder %s45, %s46
    %p58 = scmp.eq.s32.totalorder %s15, 1
    %p59 = por %p57, %p58
    %p61 = scmp.ne.s32.totalorder %s46, %s60
    %p62 = scmp.eq.s32.totalorder %s15, 0
    %p63 = por %p61, %p62
    %s65 = sadd.s32 %s64, 1
    %p68 = scmp.eq.s32.totalorder %s9, 1
    %p69 = scmp.ne.s32.totalorder %s64, %s66
    %p70 = scmp.eq.s32.totalorder %s9, 0
    %p71 = por %p69, %p70
    %p72 = scmp.ne.s32.totalorder %s64, %s66
    %p73 = scmp.eq.s32.totalorder %s14, 1
    %p74 = por %p72, %p73
    %p75 = scmp.ne.s32.totalorder %s66, %s67
    %p76 = scmp.eq.s32.totalorder %s14, 0
    %p77 = por %p75, %p76
    %p78 = scmp.ne.s32.totalorder %s66, %s67
    %p79 = scmp.eq.s32.totalorder %s15, 1
    %p80 = por %p78, %p79
    %p82 = scmp.ne.s32.totalorder %s67, %s81
    %p83 = scmp.eq.s32.totalorder %s15, 0
    %p84 = por %p82, %p83
    %s85 = ssub.s32 %s9, %s16
    %p86 = scmp.eq.s32.totalorder %s85, 0
    %s88 = sadd.s32 %s87, 1
    %s89 = scalar_select %p86, %s87, %s88
    %p92 = pneg %p86
    %p93 = scmp.eq.s32.totalorder %s9, 1
    %p94 = por %p92, %p93
    %p95 = scmp.ne.s32.totalorder %s87, %s90
    %p96 = scmp.eq.s32.totalorder %s9, 0
    %p97 = por %p95, %p96
    %p98 = scmp.ne.s32.totalorder %s87, %s90
    %p99 = scmp.eq.s32.totalorder %s14, 1
    %p100 = por %p98, %p99
    %p101 = scmp.ne.s32.totalorder %s90, %s91
    %p102 = scmp.eq.s32.totalorder %s14, 0
    %p103 = por %p101, %p102
    %p104 = scmp.ne.s32.totalorder %s90, %s91
    %p105 = scmp.eq.s32.totalorder %s15, 1
    %p106 = por %p104, %p105
    %p108 = scmp.ne.s32.totalorder %s91, %s107
    %p109 = scmp.eq.s32.totalorder %s15, 0
    %p110 = por %p108, %p109
    %p111 = scmp.le.s32.totalorder 1, %s9
    %p112 = scmp.lt.s32.totalorder %s9, 3
    %p113 = pnand %p111, %p112
    %p114 = pneg %p113
    // Predicated region
    $region9: #{patch_discriminator_forward.5} parent=5 // pred_check
      _
    $region10: #{patch_discriminator_forward.5} parent=5 // pred_check_branch
      %116 = sbr.rel (%p113) target = $region12
    $region11: #{patch_discriminator_forward.5} parent=5 // pred_region
      %s117 = ssub.s32 %s9, 1
      // Predicated region
      $region13: #{patch_discriminator_forward.5} parent=11 // pred_check
        %p118 = pneg %p56
      $region14: #{patch_discriminator_forward.5} parent=11 // pred_check_branch
        %120 = sbr.rel (%p118) target = $region16
      $region15: #{patch_discriminator_forward.5} parent=11 // pred_region
        _
      $region16: #{patch_discriminator_forward.5} parent=11 // pred_fallthru
        _
      // Predicated region
      $region17: #{patch_discriminator_forward.5} parent=11 // pred_check
        %p121 = pneg %p77
      $region18: #{patch_discriminator_forward.5} parent=11 // pred_check_branch
        %123 = sbr.rel (%p121) target = $region20
      $region19: #{patch_discriminator_forward.5} parent=11 // pred_region
        _
      $region20: #{patch_discriminator_forward.5} parent=11 // pred_fallthru
        _
    $region12: #{patch_discriminator_forward.5} parent=5 // pred_fallthru
      _
    %p124 = scmp.lt.s32.totalorder %s9, 2
    // Predicated region
    $region21: #{patch_discriminator_forward.5} parent=5 // pred_check
      %p125 = pneg %p124
    $region22: #{patch_discriminator_forward.5} parent=5 // pred_check_branch
      %127 = sbr.rel (%p125) target = $region24
    $region23: #{patch_discriminator_forward.5} parent=5 // pred_region
      // Predicated region
      $region25: #{patch_discriminator_forward.5} parent=23 // pred_check
        %p128 = pneg %p29
      $region26: #{patch_discriminator_forward.5} parent=23 // pred_check_branch
        %130 = sbr.rel (%p128) target = $region28
      $region27: #{patch_discriminator_forward.5} parent=23 // pred_region
        %s131 = smul.u32 128, %s9
        %p132 = scmp.lt.s32.totalorder %s131, 255
        %s133 = scalar_select %p132, %s131, 255
        %s134 = smul.addr %s133, 4
        %s135 = scalar_lea.vmem %s0, %s134
        %s136 = smul.u32 128, %s9
      $region28: #{patch_discriminator_forward.5} parent=23 // pred_fallthru
        _
    $region24: #{patch_discriminator_forward.5} parent=5 // pred_fallthru
      _
    %p137 = scmp.le.s32.totalorder 1, %s9
    %p138 = scmp.lt.s32.totalorder %s9, 3
    %p139 = pnand %p137, %p138
    %p140 = pneg %p139
    // Predicated region
    $region29: #{patch_discriminator_forward.5} parent=5 // pred_check
      _
    $region30: #{patch_discriminator_forward.5} parent=5 // pred_check_branch
      %142 = sbr.rel (%p139) target = $region32
    $region31: #{patch_discriminator_forward.5} parent=5 // pred_region
      %s143 = ssub.s32 %s9, 1
      %s144 = smul.u32 128, %s14
      %p145 = scmp.lt.s32.totalorder %s144, 255
      %s146 = scalar_select %p145, %s144, 255
      %s147 = smul.addr %s146, 4
      %s148 = scalar_lea.vmem %s0, %s147
      %p149 = pneg %p35
      %p150 = pneg %p32
      %p151 = pneg %p56
      %p152 = pneg %p53
      %p153 = pneg %p77
      %p154 = pneg %p74
      %p155 = pneg %p103
      %p156 = pneg %p100
      %s157 = smul.u32 128, %s14
      %p158 = scmp.lt.s32.totalorder %s157, 255
      %s159 = scalar_select %p158, %s157, 255
      %s160 = smul.addr %s159, 4
      %s161 = scalar_lea.vmem %s3, %s160
      %s162 = smul.u32 128, %s14
      %p163 = scmp.lt.s32.totalorder %s162, 255
      %s164 = scalar_select %p163, %s162, 255
      %s165 = smul.addr %s164, 4
      %s166 = scalar_lea.vmem %s0, %s165
      %s167 = smul.u32 128, %s14
      %s168 = smul.u32 128, %s14
      %p169 = scmp.lt.s32.totalorder %s168, 255
      %s170 = scalar_select %p169, %s168, 255
      %s171 = smul.addr %s170, 4
      %s172 = scalar_lea.vmem %s3, %s171
      %s173 = smul.u32 128, %s14
      %v175 = vld [vmem:[%s166] sm:$0xf]
      %v176 = vld [vmem:[%s166 + $0x4] sm:$0xf]
      %v177 = vld [vmem:[%s166 + $0x8] sm:$0xf]
      %v178 = vld [vmem:[%s166 + $0xc] sm:$0xf]
      %v179 = vld [vmem:[%s166 + $0x10] sm:$0xf]
      %v180 = vld [vmem:[%s166 + $0x14] sm:$0xf]
      %v181 = vld [vmem:[%s166 + $0x18] sm:$0xf]
      %v182 = vld [vmem:[%s166 + $0x1c] sm:$0xf]
      %v183 = vld [vmem:[%s166 + $0x20] sm:$0xf]
      %v184 = vld [vmem:[%s166 + $0x24] sm:$0xf]
      %v185 = vld [vmem:[%s166 + $0x28] sm:$0xf]
      %v186 = vld [vmem:[%s166 + $0x2c] sm:$0xf]
      %v187 = vld [vmem:[%s166 + $0x30] sm:$0xf]
      %v188 = vld [vmem:[%s166 + $0x34] sm:$0xf]
      %v189 = vld [vmem:[%s166 + $0x38] sm:$0xf]
      %v190 = vld [vmem:[%s166 + $0x3c] sm:$0xf]
      %v191 = vld [vmem:[%s166 + $0x40] sm:$0xf]
      %v192 = vld [vmem:[%s166 + $0x44] sm:$0xf]
      %v193 = vld [vmem:[%s166 + $0x48] sm:$0xf]
      %v194 = vld [vmem:[%s166 + $0x4c] sm:$0xf]
      %v195 = vld [vmem:[%s166 + $0x50] sm:$0xf]
      %v196 = vld [vmem:[%s166 + $0x54] sm:$0xf]
      %v197 = vld [vmem:[%s166 + $0x58] sm:$0xf]
      %v198 = vld [vmem:[%s166 + $0x5c] sm:$0xf]
      %v199 = vld [vmem:[%s166 + $0x60] sm:$0xf]
      %v200 = vld [vmem:[%s166 + $0x64] sm:$0xf]
      %v201 = vld [vmem:[%s166 + $0x68] sm:$0xf]
      %v202 = vld [vmem:[%s166 + $0x6c] sm:$0xf]
      %v203 = vld [vmem:[%s166 + $0x70] sm:$0xf]
      %v204 = vld [vmem:[%s166 + $0x74] sm:$0xf]
      %v205 = vld [vmem:[%s166 + $0x78] sm:$0xf]
      %v206 = vld [vmem:[%s166 + $0x7c] sm:$0xf]
      %v207 = vld [vmem:[%s166 + $0x80] sm:$0xf]
      %v208 = vld [vmem:[%s166 + $0x84] sm:$0xf]
      %v209 = vld [vmem:[%s166 + $0x88] sm:$0xf]
      %v210 = vld [vmem:[%s166 + $0x8c] sm:$0xf]
      %v211 = vld [vmem:[%s166 + $0x90] sm:$0xf]
      %v212 = vld [vmem:[%s166 + $0x94] sm:$0xf]
      %v213 = vld [vmem:[%s166 + $0x98] sm:$0xf]
      %v214 = vld [vmem:[%s166 + $0x9c] sm:$0xf]
      %v215 = vld [vmem:[%s166 + $0xa0] sm:$0xf]
      %v216 = vld [vmem:[%s166 + $0xa4] sm:$0xf]
      %v217 = vld [vmem:[%s166 + $0xa8] sm:$0xf]
      %v218 = vld [vmem:[%s166 + $0xac] sm:$0xf]
      %v219 = vld [vmem:[%s166 + $0xb0] sm:$0xf]
      %v220 = vld [vmem:[%s166 + $0xb4] sm:$0xf]
      %v221 = vld [vmem:[%s166 + $0xb8] sm:$0xf]
      %v222 = vld [vmem:[%s166 + $0xbc] sm:$0xf]
      %v223 = vld [vmem:[%s166 + $0xc0] sm:$0xf]
      %v224 = vld [vmem:[%s166 + $0xc4] sm:$0xf]
      %v225 = vld [vmem:[%s166 + $0xc8] sm:$0xf]
      %v226 = vld [vmem:[%s166 + $0xcc] sm:$0xf]
      %v227 = vld [vmem:[%s166 + $0xd0] sm:$0xf]
      %v228 = vld [vmem:[%s166 + $0xd4] sm:$0xf]
      %v229 = vld [vmem:[%s166 + $0xd8] sm:$0xf]
      %v230 = vld [vmem:[%s166 + $0xdc] sm:$0xf]
      %v231 = vld [vmem:[%s166 + $0xe0] sm:$0xf]
      %v232 = vld [vmem:[%s166 + $0xe4] sm:$0xf]
      %v233 = vld [vmem:[%s166 + $0xe8] sm:$0xf]
      %v234 = vld [vmem:[%s166 + $0xec] sm:$0xf]
      %v235 = vld [vmem:[%s166 + $0xf0] sm:$0xf]
      %v236 = vld [vmem:[%s166 + $0xf4] sm:$0xf]
      %v237 = vld [vmem:[%s166 + $0xf8] sm:$0xf]
      %v238 = vld [vmem:[%s166 + $0xfc] sm:$0xf]
      %v239 = vld [vmem:[%s166 + $0x100] sm:$0xf]
      %v240 = vld [vmem:[%s166 + $0x104] sm:$0xf]
      %v241 = vld [vmem:[%s166 + $0x108] sm:$0xf]
      %v242 = vld [vmem:[%s166 + $0x10c] sm:$0xf]
      %v243 = vld [vmem:[%s166 + $0x110] sm:$0xf]
      %v244 = vld [vmem:[%s166 + $0x114] sm:$0xf]
      %v245 = vld [vmem:[%s166 + $0x118] sm:$0xf]
      %v246 = vld [vmem:[%s166 + $0x11c] sm:$0xf]
      %v247 = vld [vmem:[%s166 + $0x120] sm:$0xf]
      %v248 = vld [vmem:[%s166 + $0x124] sm:$0xf]
      %v249 = vld [vmem:[%s166 + $0x128] sm:$0xf]
      %v250 = vld [vmem:[%s166 + $0x12c] sm:$0xf]
      %v251 = vld [vmem:[%s166 + $0x130] sm:$0xf]
      %v252 = vld [vmem:[%s166 + $0x134] sm:$0xf]
      %v253 = vld [vmem:[%s166 + $0x138] sm:$0xf]
      %v254 = vld [vmem:[%s166 + $0x13c] sm:$0xf]
      %v255 = vld [vmem:[%s166 + $0x140] sm:$0xf]
      %v256 = vld [vmem:[%s166 + $0x144] sm:$0xf]
      %v257 = vld [vmem:[%s166 + $0x148] sm:$0xf]
      %v258 = vld [vmem:[%s166 + $0x14c] sm:$0xf]
      %v259 = vld [vmem:[%s166 + $0x150] sm:$0xf]
      %v260 = vld [vmem:[%s166 + $0x154] sm:$0xf]
      %v261 = vld [vmem:[%s166 + $0x158] sm:$0xf]
      %v262 = vld [vmem:[%s166 + $0x15c] sm:$0xf]
      %v263 = vld [vmem:[%s166 + $0x160] sm:$0xf]
      %v264 = vld [vmem:[%s166 + $0x164] sm:$0xf]
      %v265 = vld [vmem:[%s166 + $0x168] sm:$0xf]
      %v266 = vld [vmem:[%s166 + $0x16c] sm:$0xf]
      %v267 = vld [vmem:[%s166 + $0x170] sm:$0xf]
      %v268 = vld [vmem:[%s166 + $0x174] sm:$0xf]
      %v269 = vld [vmem:[%s166 + $0x178] sm:$0xf]
      %v270 = vld [vmem:[%s166 + $0x17c] sm:$0xf]
      %v271 = vld [vmem:[%s166 + $0x180] sm:$0xf]
      %v272 = vld [vmem:[%s166 + $0x184] sm:$0xf]
      %v273 = vld [vmem:[%s166 + $0x188] sm:$0xf]
      %v274 = vld [vmem:[%s166 + $0x18c] sm:$0xf]
      %v275 = vld [vmem:[%s166 + $0x190] sm:$0xf]
      %v276 = vld [vmem:[%s166 + $0x194] sm:$0xf]
      %v277 = vld [vmem:[%s166 + $0x198] sm:$0xf]
      %v278 = vld [vmem:[%s166 + $0x19c] sm:$0xf]
      %v279 = vld [vmem:[%s166 + $0x1a0] sm:$0xf]
      %v280 = vld [vmem:[%s166 + $0x1a4] sm:$0xf]
      %v281 = vld [vmem:[%s166 + $0x1a8] sm:$0xf]
      %v282 = vld [vmem:[%s166 + $0x1ac] sm:$0xf]
      %v283 = vld [vmem:[%s166 + $0x1b0] sm:$0xf]
      %v284 = vld [vmem:[%s166 + $0x1b4] sm:$0xf]
      %v285 = vld [vmem:[%s166 + $0x1b8] sm:$0xf]
      %v286 = vld [vmem:[%s166 + $0x1bc] sm:$0xf]
      %v287 = vld [vmem:[%s166 + $0x1c0] sm:$0xf]
      %v288 = vld [vmem:[%s166 + $0x1c4] sm:$0xf]
      %v289 = vld [vmem:[%s166 + $0x1c8] sm:$0xf]
      %v290 = vld [vmem:[%s166 + $0x1cc] sm:$0xf]
      %v291 = vld [vmem:[%s166 + $0x1d0] sm:$0xf]
      %v292 = vld [vmem:[%s166 + $0x1d4] sm:$0xf]
      %v293 = vld [vmem:[%s166 + $0x1d8] sm:$0xf]
      %v294 = vld [vmem:[%s166 + $0x1dc] sm:$0xf]
      %v295 = vld [vmem:[%s166 + $0x1e0] sm:$0xf]
      %v296 = vld [vmem:[%s166 + $0x1e4] sm:$0xf]
      %v297 = vld [vmem:[%s166 + $0x1e8] sm:$0xf]
      %v298 = vld [vmem:[%s166 + $0x1ec] sm:$0xf]
      %v299 = vld [vmem:[%s166 + $0x1f0] sm:$0xf]
      %v300 = vld [vmem:[%s166 + $0x1f4] sm:$0xf]
      %v301 = vld [vmem:[%s166 + $0x1f8] sm:$0xf]
      %v302 = vld [vmem:[%s166 + $0x1fc] sm:$0xf]
      %v303 = vld [vmem:[%s1] sm:$0xf]
      %v304 = vld [vmem:[%s1 + $0x4] sm:$0xf]
      %v305 = vld [vmem:[%s1 + $0x8] sm:$0xf]
      %v306 = vld [vmem:[%s1 + $0xc] sm:$0xf]
      %v307 = vld [vmem:[%s1 + $0x10] sm:$0xf]
      %v308 = vld [vmem:[%s1 + $0x14] sm:$0xf]
      %v309 = vld [vmem:[%s2] sm:$0x1]
      %v311 = vperm.slane %v309, 0
      %v441 = vunpack.c.l.b16 %v175
      %v442 = vunpack.c.l.b16 %v176
      %v443 = vunpack.c.l.b16 %v177
      %v444 = vunpack.c.l.b16 %v178
      %v445 = vunpack.c.l.b16 %v179
      %v446 = vunpack.c.l.b16 %v180
      %v447 = vunpack.c.l.b16 %v181
      %v448 = vunpack.c.l.b16 %v182
      %v449 = vunpack.c.l.b16 %v183
      %v450 = vunpack.c.l.b16 %v184
      %v451 = vunpack.c.l.b16 %v185
      %v452 = vunpack.c.l.b16 %v186
      %v453 = vunpack.c.l.b16 %v187
      %v454 = vunpack.c.l.b16 %v188
      %v455 = vunpack.c.l.b16 %v189
      %v456 = vunpack.c.l.b16 %v190
      %v457 = vunpack.c.l.b16 %v191
      %v458 = vunpack.c.l.b16 %v192
      %v459 = vunpack.c.l.b16 %v193
      %v460 = vunpack.c.l.b16 %v194
      %v461 = vunpack.c.l.b16 %v195
      %v462 = vunpack.c.l.b16 %v196
      %v463 = vunpack.c.l.b16 %v197
      %v464 = vunpack.c.l.b16 %v198
      %v465 = vunpack.c.l.b16 %v199
      %v466 = vunpack.c.l.b16 %v200
      %v467 = vunpack.c.l.b16 %v201
      %v468 = vunpack.c.l.b16 %v202
      %v469 = vunpack.c.l.b16 %v203
      %v470 = vunpack.c.l.b16 %v204
      %v471 = vunpack.c.l.b16 %v205
      %v472 = vunpack.c.l.b16 %v206
      %v473 = vunpack.c.l.b16 %v207
      %v474 = vunpack.c.l.b16 %v208
      %v475 = vunpack.c.l.b16 %v209
      %v476 = vunpack.c.l.b16 %v210
      %v477 = vunpack.c.l.b16 %v211
      %v478 = vunpack.c.l.b16 %v212
      %v479 = vunpack.c.l.b16 %v213
      %v480 = vunpack.c.l.b16 %v214
      %v481 = vunpack.c.l.b16 %v215
      %v482 = vunpack.c.l.b16 %v216
      %v483 = vunpack.c.l.b16 %v217
      %v484 = vunpack.c.l.b16 %v218
      %v485 = vunpack.c.l.b16 %v219
      %v486 = vunpack.c.l.b16 %v220
      %v487 = vunpack.c.l.b16 %v221
      %v488 = vunpack.c.l.b16 %v222
      %v489 = vunpack.c.l.b16 %v223
      %v490 = vunpack.c.l.b16 %v224
      %v491 = vunpack.c.l.b16 %v225
      %v492 = vunpack.c.l.b16 %v226
      %v493 = vunpack.c.l.b16 %v227
      %v494 = vunpack.c.l.b16 %v228
      %v495 = vunpack.c.l.b16 %v229
      %v496 = vunpack.c.l.b16 %v230
      %v497 = vunpack.c.l.b16 %v231
      %v498 = vunpack.c.l.b16 %v232
      %v499 = vunpack.c.l.b16 %v233
      %v500 = vunpack.c.l.b16 %v234
      %v501 = vunpack.c.l.b16 %v235
      %v502 = vunpack.c.l.b16 %v236
      %v503 = vunpack.c.l.b16 %v237
      %v504 = vunpack.c.l.b16 %v238
      %v505 = vunpack.c.l.b16 %v239
      %v506 = vunpack.c.l.b16 %v240
      %v507 = vunpack.c.l.b16 %v241
      %v508 = vunpack.c.l.b16 %v242
      %v509 = vunpack.c.l.b16 %v243
      %v510 = vunpack.c.l.b16 %v244
      %v511 = vunpack.c.l.b16 %v245
      %v512 = vunpack.c.l.b16 %v246
      %v513 = vunpack.c.l.b16 %v247
      %v514 = vunpack.c.l.b16 %v248
      %v515 = vunpack.c.l.b16 %v249
      %v516 = vunpack.c.l.b16 %v250
      %v517 = vunpack.c.l.b16 %v251
      %v518 = vunpack.c.l.b16 %v252
      %v519 = vunpack.c.l.b16 %v253
      %v520 = vunpack.c.l.b16 %v254
      %v521 = vunpack.c.l.b16 %v255
      %v522 = vunpack.c.l.b16 %v256
      %v523 = vunpack.c.l.b16 %v257
      %v524 = vunpack.c.l.b16 %v258
      %v525 = vunpack.c.l.b16 %v259
      %v526 = vunpack.c.l.b16 %v260
      %v527 = vunpack.c.l.b16 %v261
      %v528 = vunpack.c.l.b16 %v262
      %v529 = vunpack.c.l.b16 %v263
      %v530 = vunpack.c.l.b16 %v264
      %v531 = vunpack.c.l.b16 %v265
      %v532 = vunpack.c.l.b16 %v266
      %v533 = vunpack.c.l.b16 %v267
      %v534 = vunpack.c.l.b16 %v268
      %v535 = vunpack.c.l.b16 %v269
      %v536 = vunpack.c.l.b16 %v270
      %v537 = vunpack.c.l.b16 %v271
      %v538 = vunpack.c.l.b16 %v272
      %v539 = vunpack.c.l.b16 %v273
      %v540 = vunpack.c.l.b16 %v274
      %v541 = vunpack.c.l.b16 %v275
      %v542 = vunpack.c.l.b16 %v276
      %v543 = vunpack.c.l.b16 %v277
      %v544 = vunpack.c.l.b16 %v278
      %v545 = vunpack.c.l.b16 %v279
      %v546 = vunpack.c.l.b16 %v280
      %v547 = vunpack.c.l.b16 %v281
      %v548 = vunpack.c.l.b16 %v282
      %v549 = vunpack.c.l.b16 %v283
      %v550 = vunpack.c.l.b16 %v284
      %v551 = vunpack.c.l.b16 %v285
      %v552 = vunpack.c.l.b16 %v286
      %v553 = vunpack.c.l.b16 %v287
      %v554 = vunpack.c.l.b16 %v288
      %v555 = vunpack.c.l.b16 %v289
      %v556 = vunpack.c.l.b16 %v290
      %v557 = vunpack.c.l.b16 %v291
      %v558 = vunpack.c.l.b16 %v292
      %v559 = vunpack.c.l.b16 %v293
      %v560 = vunpack.c.l.b16 %v294
      %v561 = vunpack.c.l.b16 %v295
      %v562 = vunpack.c.l.b16 %v296
      %v563 = vunpack.c.l.b16 %v297
      %v564 = vunpack.c.l.b16 %v298
      %v565 = vunpack.c.l.b16 %v299
      %v566 = vunpack.c.l.b16 %v300
      %v567 = vunpack.c.l.b16 %v301
      %v568 = vunpack.c.l.b16 %v302
      %v569 = vpack.c.b16 %v442, %v441
      %v570 = vpack.c.b16 %v444, %v443
      %v571 = vpack.c.b16 %v446, %v445
      %v572 = vpack.c.b16 %v448, %v447
      %v573 = vpack.c.b16 %v450, %v449
      %v574 = vpack.c.b16 %v452, %v451
      %v575 = vpack.c.b16 %v454, %v453
      %v576 = vpack.c.b16 %v456, %v455
      %v577 = vpack.c.b16 %v458, %v457
      %v578 = vpack.c.b16 %v460, %v459
      %v579 = vpack.c.b16 %v462, %v461
      %v580 = vpack.c.b16 %v464, %v463
      %v581 = vpack.c.b16 %v466, %v465
      %v582 = vpack.c.b16 %v468, %v467
      %v583 = vpack.c.b16 %v470, %v469
      %v584 = vpack.c.b16 %v472, %v471
      %v585 = vpack.c.b16 %v474, %v473
      %v586 = vpack.c.b16 %v476, %v475
      %v587 = vpack.c.b16 %v478, %v477
      %v588 = vpack.c.b16 %v480, %v479
      %v589 = vpack.c.b16 %v482, %v481
      %v590 = vpack.c.b16 %v484, %v483
      %v591 = vpack.c.b16 %v486, %v485
      %v592 = vpack.c.b16 %v488, %v487
      %v593 = vpack.c.b16 %v490, %v489
      %v594 = vpack.c.b16 %v492, %v491
      %v595 = vpack.c.b16 %v494, %v493
      %v596 = vpack.c.b16 %v496, %v495
      %v597 = vpack.c.b16 %v498, %v497
      %v598 = vpack.c.b16 %v500, %v499
      %v599 = vpack.c.b16 %v502, %v501
      %v600 = vpack.c.b16 %v504, %v503
      %v601 = vpack.c.b16 %v506, %v505
      %v602 = vpack.c.b16 %v508, %v507
      %v603 = vpack.c.b16 %v510, %v509
      %v604 = vpack.c.b16 %v512, %v511
      %v605 = vpack.c.b16 %v514, %v513
      %v606 = vpack.c.b16 %v516, %v515
      %v607 = vpack.c.b16 %v518, %v517
      %v608 = vpack.c.b16 %v520, %v519
      %v609 = vpack.c.b16 %v522, %v521
      %v610 = vpack.c.b16 %v524, %v523
      %v611 = vpack.c.b16 %v526, %v525
      %v612 = vpack.c.b16 %v528, %v527
      %v613 = vpack.c.b16 %v530, %v529
      %v614 = vpack.c.b16 %v532, %v531
      %v615 = vpack.c.b16 %v534, %v533
      %v616 = vpack.c.b16 %v536, %v535
      %v617 = vpack.c.b16 %v538, %v537
      %v618 = vpack.c.b16 %v540, %v539
      %v619 = vpack.c.b16 %v542, %v541
      %v620 = vpack.c.b16 %v544, %v543
      %v621 = vpack.c.b16 %v546, %v545
      %v622 = vpack.c.b16 %v548, %v547
      %v623 = vpack.c.b16 %v550, %v549
      %v624 = vpack.c.b16 %v552, %v551
      %v625 = vpack.c.b16 %v554, %v553
      %v626 = vpack.c.b16 %v556, %v555
      %v627 = vpack.c.b16 %v558, %v557
      %v628 = vpack.c.b16 %v560, %v559
      %v629 = vpack.c.b16 %v562, %v561
      %v630 = vpack.c.b16 %v564, %v563
      %v631 = vpack.c.b16 %v566, %v565
      %v632 = vpack.c.b16 %v568, %v567
      %v639 = vunpack.c.l.b16 %v303
      %v640 = vunpack.c.l.b16 %v304
      %v641 = vunpack.c.l.b16 %v305
      %v642 = vunpack.c.l.b16 %v306
      %v643 = vunpack.c.l.b16 %v307
      %v644 = vunpack.c.l.b16 %v308
      %v645 = vpack.c.b16 %v640, %v639
      %v646 = vpack.c.b16 %v642, %v641
      %v647 = vpack.c.b16 %v644, %v643
      %vm651 = vcmask 392192
      %v653 = vsel %vm651, %v569, 0
      %v656 = vsel %vm651, %v570, 0
      %v659 = vsel %vm651, %v571, 0
      %v662 = vsel %vm651, %v572, 0
      %v665 = vsel %vm651, %v573, 0
      %v668 = vsel %vm651, %v574, 0
      %v671 = vsel %vm651, %v575, 0
      %v674 = vsel %vm651, %v576, 0
      %v677 = vsel %vm651, %v577, 0
      %v680 = vsel %vm651, %v578, 0
      %v683 = vsel %vm651, %v579, 0
      %v686 = vsel %vm651, %v580, 0
      %v689 = vsel %vm651, %v581, 0
      %v692 = vsel %vm651, %v582, 0
      %v695 = vsel %vm651, %v583, 0
      %v698 = vsel %vm651, %v584, 0
      %v701 = vsel %vm651, %v585, 0
      %v704 = vsel %vm651, %v586, 0
      %v707 = vsel %vm651, %v587, 0
      %v710 = vsel %vm651, %v588, 0
      %v713 = vsel %vm651, %v589, 0
      %v716 = vsel %vm651, %v590, 0
      %v719 = vsel %vm651, %v591, 0
      %v722 = vsel %vm651, %v592, 0
      %v725 = vsel %vm651, %v593, 0
      %v728 = vsel %vm651, %v594, 0
      %v731 = vsel %vm651, %v595, 0
      %v734 = vsel %vm651, %v596, 0
      %v737 = vsel %vm651, %v597, 0
      %v740 = vsel %vm651, %v598, 0
      %v743 = vsel %vm651, %v599, 0
      %v746 = vsel %vm651, %v600, 0
      %v749 = vsel %vm651, %v601, 0
      %v752 = vsel %vm651, %v602, 0
      %v755 = vsel %vm651, %v603, 0
      %v758 = vsel %vm651, %v604, 0
      %v761 = vsel %vm651, %v605, 0
      %v764 = vsel %vm651, %v606, 0
      %v767 = vsel %vm651, %v607, 0
      %v770 = vsel %vm651, %v608, 0
      %v773 = vsel %vm651, %v609, 0
      %v776 = vsel %vm651, %v610, 0
      %v779 = vsel %vm651, %v611, 0
      %v782 = vsel %vm651, %v612, 0
      %v785 = vsel %vm651, %v613, 0
      %v788 = vsel %vm651, %v614, 0
      %v791 = vsel %vm651, %v615, 0
      %v794 = vsel %vm651, %v616, 0
      %v797 = vsel %vm651, %v617, 0
      %v800 = vsel %vm651, %v618, 0
      %v803 = vsel %vm651, %v619, 0
      %v806 = vsel %vm651, %v620, 0
      %v809 = vsel %vm651, %v621, 0
      %v812 = vsel %vm651, %v622, 0
      %v815 = vsel %vm651, %v623, 0
      %v818 = vsel %vm651, %v624, 0
      %v821 = vsel %vm651, %v625, 0
      %v824 = vsel %vm651, %v626, 0
      %v827 = vsel %vm651, %v627, 0
      %v830 = vsel %vm651, %v628, 0
      %v833 = vsel %vm651, %v629, 0
      %v836 = vsel %vm651, %v630, 0
      %v839 = vsel %vm651, %v631, 0
      %v842 = vsel %vm651, %v632, 0
      %844 = vmatpush.bf16.msra.mxu0 0
      %845 = vmatpush.bf16.msra.mxu0 0
      %846 = vmatpush.bf16.msra.mxu0 0
      %847 = vmatpush.bf16.msra.mxu0 0
      %848 = vmatpush.bf16.msra.mxu0 0
      %849 = vmatpush.bf16.msra.mxu0 %v647
      %850 = vmatpush.bf16.msra.mxu0 %v646
      %851 = vmatpush.bf16.msra.mxu0 %v645
      %852 = vmatmul.bf16.gmra.mxu0 %v653
      %v853 = vpop.f32.mrf.mxu0
      %v854 = vadd.f32 %v311, %v853
      %v855 = vpop.f32.mrf.mxu0
      %v856 = vadd.f32 %v311, %v855
      %857 = vmatmul.bf16.gmra.mxu0 %v656
      %v858 = vpop.f32.mrf.mxu0
      %v859 = vadd.f32 %v311, %v858
      %v860 = vpop.f32.mrf.mxu0
      %v861 = vadd.f32 %v311, %v860
      %862 = vmatmul.bf16.gmra.mxu0 %v659
      %v863 = vpop.f32.mrf.mxu0
      %v864 = vadd.f32 %v311, %v863
      %v865 = vpop.f32.mrf.mxu0
      %v866 = vadd.f32 %v311, %v865
      %867 = vmatmul.bf16.gmra.mxu0 %v662
      %v868 = vpop.f32.mrf.mxu0
      %v869 = vadd.f32 %v311, %v868
      %v870 = vpop.f32.mrf.mxu0
      %v871 = vadd.f32 %v311, %v870
      %872 = vmatmul.bf16.gmra.mxu0 %v665
      %v873 = vpop.f32.mrf.mxu0
      %v874 = vadd.f32 %v311, %v873
      %v875 = vpop.f32.mrf.mxu0
      %v876 = vadd.f32 %v311, %v875
      %877 = vmatmul.bf16.gmra.mxu0 %v668
      %v878 = vpop.f32.mrf.mxu0
      %v879 = vadd.f32 %v311, %v878
      %v880 = vpop.f32.mrf.mxu0
      %v881 = vadd.f32 %v311, %v880
      %882 = vmatmul.bf16.gmra.mxu0 %v671
      %v883 = vpop.f32.mrf.mxu0
      %v884 = vadd.f32 %v311, %v883
      %v885 = vpop.f32.mrf.mxu0
      %v886 = vadd.f32 %v311, %v885
      %887 = vmatmul.bf16.gmra.mxu0 %v674
      %v888 = vpop.f32.mrf.mxu0
      %v889 = vadd.f32 %v311, %v888
      %v890 = vpop.f32.mrf.mxu0
      %v891 = vadd.f32 %v311, %v890
      %892 = vmatmul.bf16.gmra.mxu0 %v677
      %v893 = vpop.f32.mrf.mxu0
      %v894 = vadd.f32 %v311, %v893
      %v895 = vpop.f32.mrf.mxu0
      %v896 = vadd.f32 %v311, %v895
      %897 = vmatmul.bf16.gmra.mxu0 %v680
      %v898 = vpop.f32.mrf.mxu0
      %v899 = vadd.f32 %v311, %v898
      %v900 = vpop.f32.mrf.mxu0
      %v901 = vadd.f32 %v311, %v900
      %902 = vmatmul.bf16.gmra.mxu0 %v683
      %v903 = vpop.f32.mrf.mxu0
      %v904 = vadd.f32 %v311, %v903
      %v905 = vpop.f32.mrf.mxu0
      %v906 = vadd.f32 %v311, %v905
      %907 = vmatmul.bf16.gmra.mxu0 %v686
      %v908 = vpop.f32.mrf.mxu0
      %v909 = vadd.f32 %v311, %v908
      %v910 = vpop.f32.mrf.mxu0
      %v911 = vadd.f32 %v311, %v910
      %912 = vmatmul.bf16.gmra.mxu0 %v689
      %v913 = vpop.f32.mrf.mxu0
      %v914 = vadd.f32 %v311, %v913
      %v915 = vpop.f32.mrf.mxu0
      %v916 = vadd.f32 %v311, %v915
      %917 = vmatmul.bf16.gmra.mxu0 %v692
      %v918 = vpop.f32.mrf.mxu0
      %v919 = vadd.f32 %v311, %v918
      %v920 = vpop.f32.mrf.mxu0
      %v921 = vadd.f32 %v311, %v920
      %922 = vmatmul.bf16.gmra.mxu0 %v695
      %v923 = vpop.f32.mrf.mxu0
      %v924 = vadd.f32 %v311, %v923
      %v925 = vpop.f32.mrf.mxu0
      %v926 = vadd.f32 %v311, %v925
      %927 = vmatmul.bf16.gmra.mxu0 %v698
      %v928 = vpop.f32.mrf.mxu0
      %v929 = vadd.f32 %v311, %v928
      %v930 = vpop.f32.mrf.mxu0
      %v931 = vadd.f32 %v311, %v930
      %932 = vmatmul.bf16.gmra.mxu0 %v701
      %v933 = vpop.f32.mrf.mxu0
      %v934 = vadd.f32 %v311, %v933
      %v935 = vpop.f32.mrf.mxu0
      %v936 = vadd.f32 %v311, %v935
      %937 = vmatmul.bf16.gmra.mxu0 %v704
      %v938 = vpop.f32.mrf.mxu0
      %v939 = vadd.f32 %v311, %v938
      %v940 = vpop.f32.mrf.mxu0
      %v941 = vadd.f32 %v311, %v940
      %942 = vmatmul.bf16.gmra.mxu0 %v707
      %v943 = vpop.f32.mrf.mxu0
      %v944 = vadd.f32 %v311, %v943
      %v945 = vpop.f32.mrf.mxu0
      %v946 = vadd.f32 %v311, %v945
      %947 = vmatmul.bf16.gmra.mxu0 %v710
      %v948 = vpop.f32.mrf.mxu0
      %v949 = vadd.f32 %v311, %v948
      %v950 = vpop.f32.mrf.mxu0
      %v951 = vadd.f32 %v311, %v950
      %952 = vmatmul.bf16.gmra.mxu0 %v713
      %v953 = vpop.f32.mrf.mxu0
      %v954 = vadd.f32 %v311, %v953
      %v955 = vpop.f32.mrf.mxu0
      %v956 = vadd.f32 %v311, %v955
      %957 = vmatmul.bf16.gmra.mxu0 %v716
      %v958 = vpop.f32.mrf.mxu0
      %v959 = vadd.f32 %v311, %v958
      %v960 = vpop.f32.mrf.mxu0
      %v961 = vadd.f32 %v311, %v960
      %962 = vmatmul.bf16.gmra.mxu0 %v719
      %v963 = vpop.f32.mrf.mxu0
      %v964 = vadd.f32 %v311, %v963
      %v965 = vpop.f32.mrf.mxu0
      %v966 = vadd.f32 %v311, %v965
      %967 = vmatmul.bf16.gmra.mxu0 %v722
      %v968 = vpop.f32.mrf.mxu0
      %v969 = vadd.f32 %v311, %v968
      %v970 = vpop.f32.mrf.mxu0
      %v971 = vadd.f32 %v311, %v970
      %972 = vmatmul.bf16.gmra.mxu0 %v725
      %v973 = vpop.f32.mrf.mxu0
      %v974 = vadd.f32 %v311, %v973
      %v975 = vpop.f32.mrf.mxu0
      %v976 = vadd.f32 %v311, %v975
      %977 = vmatmul.bf16.gmra.mxu0 %v728
      %v978 = vpop.f32.mrf.mxu0
      %v979 = vadd.f32 %v311, %v978
      %v980 = vpop.f32.mrf.mxu0
      %v981 = vadd.f32 %v311, %v980
      %982 = vmatmul.bf16.gmra.mxu0 %v731
      %v983 = vpop.f32.mrf.mxu0
      %v984 = vadd.f32 %v311, %v983
      %v985 = vpop.f32.mrf.mxu0
      %v986 = vadd.f32 %v311, %v985
      %987 = vmatmul.bf16.gmra.mxu0 %v734
      %v988 = vpop.f32.mrf.mxu0
      %v989 = vadd.f32 %v311, %v988
      %v990 = vpop.f32.mrf.mxu0
      %v991 = vadd.f32 %v311, %v990
      %992 = vmatmul.bf16.gmra.mxu0 %v737
      %v993 = vpop.f32.mrf.mxu0
      %v994 = vadd.f32 %v311, %v993
      %v995 = vpop.f32.mrf.mxu0
      %v996 = vadd.f32 %v311, %v995
      %997 = vmatmul.bf16.gmra.mxu0 %v740
      %v998 = vpop.f32.mrf.mxu0
      %v999 = vadd.f32 %v311, %v998
      %v1000 = vpop.f32.mrf.mxu0
      %v1001 = vadd.f32 %v311, %v1000
      %1002 = vmatmul.bf16.gmra.mxu0 %v743
      %v1003 = vpop.f32.mrf.mxu0
      %v1004 = vadd.f32 %v311, %v1003
      %v1005 = vpop.f32.mrf.mxu0
      %v1006 = vadd.f32 %v311, %v1005
      %1007 = vmatmul.bf16.gmra.mxu0 %v746
      %v1008 = vpop.f32.mrf.mxu0
      %v1009 = vadd.f32 %v311, %v1008
      %v1010 = vpop.f32.mrf.mxu0
      %v1011 = vadd.f32 %v311, %v1010
      %1012 = vmatmul.bf16.gmra.mxu0 %v749
      %v1013 = vpop.f32.mrf.mxu0
      %v1014 = vadd.f32 %v311, %v1013
      %v1015 = vpop.f32.mrf.mxu0
      %v1016 = vadd.f32 %v311, %v1015
      %1017 = vmatmul.bf16.gmra.mxu0 %v752
      %v1018 = vpop.f32.mrf.mxu0
      %v1019 = vadd.f32 %v311, %v1018
      %v1020 = vpop.f32.mrf.mxu0
      %v1021 = vadd.f32 %v311, %v1020
      %1022 = vmatmul.bf16.gmra.mxu0 %v755
      %v1023 = vpop.f32.mrf.mxu0
      %v1024 = vadd.f32 %v311, %v1023
      %v1025 = vpop.f32.mrf.mxu0
      %v1026 = vadd.f32 %v311, %v1025
      %1027 = vmatmul.bf16.gmra.mxu0 %v758
      %v1028 = vpop.f32.mrf.mxu0
      %v1029 = vadd.f32 %v311, %v1028
      %v1030 = vpop.f32.mrf.mxu0
      %v1031 = vadd.f32 %v311, %v1030
      %1032 = vmatmul.bf16.gmra.mxu0 %v761
      %v1033 = vpop.f32.mrf.mxu0
      %v1034 = vadd.f32 %v311, %v1033
      %v1035 = vpop.f32.mrf.mxu0
      %v1036 = vadd.f32 %v311, %v1035
      %1037 = vmatmul.bf16.gmra.mxu0 %v764
      %v1038 = vpop.f32.mrf.mxu0
      %v1039 = vadd.f32 %v311, %v1038
      %v1040 = vpop.f32.mrf.mxu0
      %v1041 = vadd.f32 %v311, %v1040
      %1042 = vmatmul.bf16.gmra.mxu0 %v767
      %v1043 = vpop.f32.mrf.mxu0
      %v1044 = vadd.f32 %v311, %v1043
      %v1045 = vpop.f32.mrf.mxu0
      %v1046 = vadd.f32 %v311, %v1045
      %1047 = vmatmul.bf16.gmra.mxu0 %v770
      %v1048 = vpop.f32.mrf.mxu0
      %v1049 = vadd.f32 %v311, %v1048
      %v1050 = vpop.f32.mrf.mxu0
      %v1051 = vadd.f32 %v311, %v1050
      %1052 = vmatmul.bf16.gmra.mxu0 %v773
      %v1053 = vpop.f32.mrf.mxu0
      %v1054 = vadd.f32 %v311, %v1053
      %v1055 = vpop.f32.mrf.mxu0
      %v1056 = vadd.f32 %v311, %v1055
      %1057 = vmatmul.bf16.gmra.mxu0 %v776
      %v1058 = vpop.f32.mrf.mxu0
      %v1059 = vadd.f32 %v311, %v1058
      %v1060 = vpop.f32.mrf.mxu0
      %v1061 = vadd.f32 %v311, %v1060
      %1062 = vmatmul.bf16.gmra.mxu0 %v779
      %v1063 = vpop.f32.mrf.mxu0
      %v1064 = vadd.f32 %v311, %v1063
      %v1065 = vpop.f32.mrf.mxu0
      %v1066 = vadd.f32 %v311, %v1065
      %1067 = vmatmul.bf16.gmra.mxu0 %v782
      %v1068 = vpop.f32.mrf.mxu0
      %v1069 = vadd.f32 %v311, %v1068
      %v1070 = vpop.f32.mrf.mxu0
      %v1071 = vadd.f32 %v311, %v1070
      %1072 = vmatmul.bf16.gmra.mxu0 %v785
      %v1073 = vpop.f32.mrf.mxu0
      %v1074 = vadd.f32 %v311, %v1073
      %v1075 = vpop.f32.mrf.mxu0
      %v1076 = vadd.f32 %v311, %v1075
      %1077 = vmatmul.bf16.gmra.mxu0 %v788
      %v1078 = vpop.f32.mrf.mxu0
      %v1079 = vadd.f32 %v311, %v1078
      %v1080 = vpop.f32.mrf.mxu0
      %v1081 = vadd.f32 %v311, %v1080
      %1082 = vmatmul.bf16.gmra.mxu0 %v791
      %v1083 = vpop.f32.mrf.mxu0
      %v1084 = vadd.f32 %v311, %v1083
      %v1085 = vpop.f32.mrf.mxu0
      %v1086 = vadd.f32 %v311, %v1085
      %1087 = vmatmul.bf16.gmra.mxu0 %v794
      %v1088 = vpop.f32.mrf.mxu0
      %v1089 = vadd.f32 %v311, %v1088
      %v1090 = vpop.f32.mrf.mxu0
      %v1091 = vadd.f32 %v311, %v1090
      %1092 = vmatmul.bf16.gmra.mxu0 %v797
      %v1093 = vpop.f32.mrf.mxu0
      %v1094 = vadd.f32 %v311, %v1093
      %v1095 = vpop.f32.mrf.mxu0
      %v1096 = vadd.f32 %v311, %v1095
      %1097 = vmatmul.bf16.gmra.mxu0 %v800
      %v1098 = vpop.f32.mrf.mxu0
      %v1099 = vadd.f32 %v311, %v1098
      %v1100 = vpop.f32.mrf.mxu0
      %v1101 = vadd.f32 %v311, %v1100
      %1102 = vmatmul.bf16.gmra.mxu0 %v803
      %v1103 = vpop.f32.mrf.mxu0
      %v1104 = vadd.f32 %v311, %v1103
      %v1105 = vpop.f32.mrf.mxu0
      %v1106 = vadd.f32 %v311, %v1105
      %1107 = vmatmul.bf16.gmra.mxu0 %v806
      %v1108 = vpop.f32.mrf.mxu0
      %v1109 = vadd.f32 %v311, %v1108
      %v1110 = vpop.f32.mrf.mxu0
      %v1111 = vadd.f32 %v311, %v1110
      %1112 = vmatmul.bf16.gmra.mxu0 %v809
      %v1113 = vpop.f32.mrf.mxu0
      %v1114 = vadd.f32 %v311, %v1113
      %v1115 = vpop.f32.mrf.mxu0
      %v1116 = vadd.f32 %v311, %v1115
      %1117 = vmatmul.bf16.gmra.mxu0 %v812
      %v1118 = vpop.f32.mrf.mxu0
      %v1119 = vadd.f32 %v311, %v1118
      %v1120 = vpop.f32.mrf.mxu0
      %v1121 = vadd.f32 %v311, %v1120
      %1122 = vmatmul.bf16.gmra.mxu0 %v815
      %v1123 = vpop.f32.mrf.mxu0
      %v1124 = vadd.f32 %v311, %v1123
      %v1125 = vpop.f32.mrf.mxu0
      %v1126 = vadd.f32 %v311, %v1125
      %1127 = vmatmul.bf16.gmra.mxu0 %v818
      %v1128 = vpop.f32.mrf.mxu0
      %v1129 = vadd.f32 %v311, %v1128
      %v1130 = vpop.f32.mrf.mxu0
      %v1131 = vadd.f32 %v311, %v1130
      %1132 = vmatmul.bf16.gmra.mxu0 %v821
      %v1133 = vpop.f32.mrf.mxu0
      %v1134 = vadd.f32 %v311, %v1133
      %v1135 = vpop.f32.mrf.mxu0
      %v1136 = vadd.f32 %v311, %v1135
      %1137 = vmatmul.bf16.gmra.mxu0 %v824
      %v1138 = vpop.f32.mrf.mxu0
      %v1139 = vadd.f32 %v311, %v1138
      %v1140 = vpop.f32.mrf.mxu0
      %v1141 = vadd.f32 %v311, %v1140
      %1142 = vmatmul.bf16.gmra.mxu0 %v827
      %v1143 = vpop.f32.mrf.mxu0
      %v1144 = vadd.f32 %v311, %v1143
      %v1145 = vpop.f32.mrf.mxu0
      %v1146 = vadd.f32 %v311, %v1145
      %1147 = vmatmul.bf16.gmra.mxu0 %v830
      %v1148 = vpop.f32.mrf.mxu0
      %v1149 = vadd.f32 %v311, %v1148
      %v1150 = vpop.f32.mrf.mxu0
      %v1151 = vadd.f32 %v311, %v1150
      %1152 = vmatmul.bf16.gmra.mxu0 %v833
      %v1153 = vpop.f32.mrf.mxu0
      %v1154 = vadd.f32 %v311, %v1153
      %v1155 = vpop.f32.mrf.mxu0
      %v1156 = vadd.f32 %v311, %v1155
      %1157 = vmatmul.bf16.gmra.mxu0 %v836
      %v1158 = vpop.f32.mrf.mxu0
      %v1159 = vadd.f32 %v311, %v1158
      %v1160 = vpop.f32.mrf.mxu0
      %v1161 = vadd.f32 %v311, %v1160
      %1162 = vmatmul.bf16.gmra.mxu0 %v839
      %v1163 = vpop.f32.mrf.mxu0
      %v1164 = vadd.f32 %v311, %v1163
      %v1165 = vpop.f32.mrf.mxu0
      %v1166 = vadd.f32 %v311, %v1165
      %1167 = vmatmul.bf16.gmra.mxu0 %v842
      %v1168 = vpop.f32.mrf.mxu0
      %v1169 = vadd.f32 %v311, %v1168
      %v1170 = vpop.f32.mrf.mxu0
      %v1171 = vadd.f32 %v311, %v1170
      %1172 = vdwg.mxu0
      %vm1173 = vcmp.ge.f32.partialorder %v854, 0.0
      %vm1174 = vcmp.ge.f32.partialorder %v856, 0.0
      %vm1175 = vcmp.ge.f32.partialorder %v859, 0.0
      %vm1176 = vcmp.ge.f32.partialorder %v861, 0.0
      %vm1177 = vcmp.ge.f32.partialorder %v864, 0.0
      %vm1178 = vcmp.ge.f32.partialorder %v866, 0.0
      %vm1179 = vcmp.ge.f32.partialorder %v869, 0.0
      %vm1180 = vcmp.ge.f32.partialorder %v871, 0.0
      %vm1181 = vcmp.ge.f32.partialorder %v874, 0.0
      %vm1182 = vcmp.ge.f32.partialorder %v876, 0.0
      %vm1183 = vcmp.ge.f32.partialorder %v879, 0.0
      %vm1184 = vcmp.ge.f32.partialorder %v881, 0.0
      %vm1185 = vcmp.ge.f32.partialorder %v884, 0.0
      %vm1186 = vcmp.ge.f32.partialorder %v886, 0.0
      %vm1187 = vcmp.ge.f32.partialorder %v889, 0.0
      %vm1188 = vcmp.ge.f32.partialorder %v891, 0.0
      %vm1189 = vcmp.ge.f32.partialorder %v894, 0.0
      %vm1190 = vcmp.ge.f32.partialorder %v896, 0.0
      %vm1191 = vcmp.ge.f32.partialorder %v899, 0.0
      %vm1192 = vcmp.ge.f32.partialorder %v901, 0.0
      %vm1193 = vcmp.ge.f32.partialorder %v904, 0.0
      %vm1194 = vcmp.ge.f32.partialorder %v906, 0.0
      %vm1195 = vcmp.ge.f32.partialorder %v909, 0.0
      %vm1196 = vcmp.ge.f32.partialorder %v911, 0.0
      %vm1197 = vcmp.ge.f32.partialorder %v914, 0.0
      %vm1198 = vcmp.ge.f32.partialorder %v916, 0.0
      %vm1199 = vcmp.ge.f32.partialorder %v919, 0.0
      %vm1200 = vcmp.ge.f32.partialorder %v921, 0.0
      %vm1201 = vcmp.ge.f32.partialorder %v924, 0.0
      %vm1202 = vcmp.ge.f32.partialorder %v926, 0.0
      %vm1203 = vcmp.ge.f32.partialorder %v929, 0.0
      %vm1204 = vcmp.ge.f32.partialorder %v931, 0.0
      %vm1205 = vcmp.ge.f32.partialorder %v934, 0.0
      %vm1206 = vcmp.ge.f32.partialorder %v936, 0.0
      %vm1207 = vcmp.ge.f32.partialorder %v939, 0.0
      %vm1208 = vcmp.ge.f32.partialorder %v941, 0.0
      %vm1209 = vcmp.ge.f32.partialorder %v944, 0.0
      %vm1210 = vcmp.ge.f32.partialorder %v946, 0.0
      %vm1211 = vcmp.ge.f32.partialorder %v949, 0.0
      %vm1212 = vcmp.ge.f32.partialorder %v951, 0.0
      %vm1213 = vcmp.ge.f32.partialorder %v954, 0.0
      %vm1214 = vcmp.ge.f32.partialorder %v956, 0.0
      %vm1215 = vcmp.ge.f32.partialorder %v959, 0.0
      %vm1216 = vcmp.ge.f32.partialorder %v961, 0.0
      %vm1217 = vcmp.ge.f32.partialorder %v964, 0.0
      %vm1218 = vcmp.ge.f32.partialorder %v966, 0.0
      %vm1219 = vcmp.ge.f32.partialorder %v969, 0.0
      %vm1220 = vcmp.ge.f32.partialorder %v971, 0.0
      %vm1221 = vcmp.ge.f32.partialorder %v974, 0.0
      %vm1222 = vcmp.ge.f32.partialorder %v976, 0.0
      %vm1223 = vcmp.ge.f32.partialorder %v979, 0.0
      %vm1224 = vcmp.ge.f32.partialorder %v981, 0.0
      %vm1225 = vcmp.ge.f32.partialorder %v984, 0.0
      %vm1226 = vcmp.ge.f32.partialorder %v986, 0.0
      %vm1227 = vcmp.ge.f32.partialorder %v989, 0.0
      %vm1228 = vcmp.ge.f32.partialorder %v991, 0.0
      %vm1229 = vcmp.ge.f32.partialorder %v994, 0.0
      %vm1230 = vcmp.ge.f32.partialorder %v996, 0.0
      %vm1231 = vcmp.ge.f32.partialorder %v999, 0.0
      %vm1232 = vcmp.ge.f32.partialorder %v1001, 0.0
      %vm1233 = vcmp.ge.f32.partialorder %v1004, 0.0
      %vm1234 = vcmp.ge.f32.partialorder %v1006, 0.0
      %vm1235 = vcmp.ge.f32.partialorder %v1009, 0.0
      %vm1236 = vcmp.ge.f32.partialorder %v1011, 0.0
      %vm1237 = vcmp.ge.f32.partialorder %v1014, 0.0
      %vm1238 = vcmp.ge.f32.partialorder %v1016, 0.0
      %vm1239 = vcmp.ge.f32.partialorder %v1019, 0.0
      %vm1240 = vcmp.ge.f32.partialorder %v1021, 0.0
      %vm1241 = vcmp.ge.f32.partialorder %v1024, 0.0
      %vm1242 = vcmp.ge.f32.partialorder %v1026, 0.0
      %vm1243 = vcmp.ge.f32.partialorder %v1029, 0.0
      %vm1244 = vcmp.ge.f32.partialorder %v1031, 0.0
      %vm1245 = vcmp.ge.f32.partialorder %v1034, 0.0
      %vm1246 = vcmp.ge.f32.partialorder %v1036, 0.0
      %vm1247 = vcmp.ge.f32.partialorder %v1039, 0.0
      %vm1248 = vcmp.ge.f32.partialorder %v1041, 0.0
      %vm1249 = vcmp.ge.f32.partialorder %v1044, 0.0
      %vm1250 = vcmp.ge.f32.partialorder %v1046, 0.0
      %vm1251 = vcmp.ge.f32.partialorder %v1049, 0.0
      %vm1252 = vcmp.ge.f32.partialorder %v1051, 0.0
      %vm1253 = vcmp.ge.f32.partialorder %v1054, 0.0
      %vm1254 = vcmp.ge.f32.partialorder %v1056, 0.0
      %vm1255 = vcmp.ge.f32.partialorder %v1059, 0.0
      %vm1256 = vcmp.ge.f32.partialorder %v1061, 0.0
      %vm1257 = vcmp.ge.f32.partialorder %v1064, 0.0
      %vm1258 = vcmp.ge.f32.partialorder %v1066, 0.0
      %vm1259 = vcmp.ge.f32.partialorder %v1069, 0.0
      %vm1260 = vcmp.ge.f32.partialorder %v1071, 0.0
      %vm1261 = vcmp.ge.f32.partialorder %v1074, 0.0
      %vm1262 = vcmp.ge.f32.partialorder %v1076, 0.0
      %vm1263 = vcmp.ge.f32.partialorder %v1079, 0.0
      %vm1264 = vcmp.ge.f32.partialorder %v1081, 0.0
      %vm1265 = vcmp.ge.f32.partialorder %v1084, 0.0
      %vm1266 = vcmp.ge.f32.partialorder %v1086, 0.0
      %vm1267 = vcmp.ge.f32.partialorder %v1089, 0.0
      %vm1268 = vcmp.ge.f32.partialorder %v1091, 0.0
      %vm1269 = vcmp.ge.f32.partialorder %v1094, 0.0
      %vm1270 = vcmp.ge.f32.partialorder %v1096, 0.0
      %vm1271 = vcmp.ge.f32.partialorder %v1099, 0.0
      %vm1272 = vcmp.ge.f32.partialorder %v1101, 0.0
      %vm1273 = vcmp.ge.f32.partialorder %v1104, 0.0
      %vm1274 = vcmp.ge.f32.partialorder %v1106, 0.0
      %vm1275 = vcmp.ge.f32.partialorder %v1109, 0.0
      %vm1276 = vcmp.ge.f32.partialorder %v1111, 0.0
      %vm1277 = vcmp.ge.f32.partialorder %v1114, 0.0
      %vm1278 = vcmp.ge.f32.partialorder %v1116, 0.0
      %vm1279 = vcmp.ge.f32.partialorder %v1119, 0.0
      %vm1280 = vcmp.ge.f32.partialorder %v1121, 0.0
      %vm1281 = vcmp.ge.f32.partialorder %v1124, 0.0
      %vm1282 = vcmp.ge.f32.partialorder %v1126, 0.0
      %vm1283 = vcmp.ge.f32.partialorder %v1129, 0.0
      %vm1284 = vcmp.ge.f32.partialorder %v1131, 0.0
      %vm1285 = vcmp.ge.f32.partialorder %v1134, 0.0
      %vm1286 = vcmp.ge.f32.partialorder %v1136, 0.0
      %vm1287 = vcmp.ge.f32.partialorder %v1139, 0.0
      %vm1288 = vcmp.ge.f32.partialorder %v1141, 0.0
      %vm1289 = vcmp.ge.f32.partialorder %v1144, 0.0
      %vm1290 = vcmp.ge.f32.partialorder %v1146, 0.0
      %vm1291 = vcmp.ge.f32.partialorder %v1149, 0.0
      %vm1292 = vcmp.ge.f32.partialorder %v1151, 0.0
      %vm1293 = vcmp.ge.f32.partialorder %v1154, 0.0
      %vm1294 = vcmp.ge.f32.partialorder %v1156, 0.0
      %vm1295 = vcmp.ge.f32.partialorder %v1159, 0.0
      %vm1296 = vcmp.ge.f32.partialorder %v1161, 0.0
      %vm1297 = vcmp.ge.f32.partialorder %v1164, 0.0
      %vm1298 = vcmp.ge.f32.partialorder %v1166, 0.0
      %vm1299 = vcmp.ge.f32.partialorder %v1169, 0.0
      %vm1300 = vcmp.ge.f32.partialorder %v1171, 0.0
      %v1301 = vmul.f32 %v854, 0.2
      %v1302 = vmul.f32 %v856, 0.2
      %v1303 = vmul.f32 %v859, 0.2
      %v1304 = vmul.f32 %v861, 0.2
      %v1305 = vmul.f32 %v864, 0.2
      %v1306 = vmul.f32 %v866, 0.2
      %v1307 = vmul.f32 %v869, 0.2
      %v1308 = vmul.f32 %v871, 0.2
      %v1309 = vmul.f32 %v874, 0.2
      %v1310 = vmul.f32 %v876, 0.2
      %v1311 = vmul.f32 %v879, 0.2
      %v1312 = vmul.f32 %v881, 0.2
      %v1313 = vmul.f32 %v884, 0.2
      %v1314 = vmul.f32 %v886, 0.2
      %v1315 = vmul.f32 %v889, 0.2
      %v1316 = vmul.f32 %v891, 0.2
      %v1317 = vmul.f32 %v894, 0.2
      %v1318 = vmul.f32 %v896, 0.2
      %v1319 = vmul.f32 %v899, 0.2
      %v1320 = vmul.f32 %v901, 0.2
      %v1321 = vmul.f32 %v904, 0.2
      %v1322 = vmul.f32 %v906, 0.2
      %v1323 = vmul.f32 %v909, 0.2
      %v1324 = vmul.f32 %v911, 0.2
      %v1325 = vmul.f32 %v914, 0.2
      %v1326 = vmul.f32 %v916, 0.2
      %v1327 = vmul.f32 %v919, 0.2
      %v1328 = vmul.f32 %v921, 0.2
      %v1329 = vmul.f32 %v924, 0.2
      %v1330 = vmul.f32 %v926, 0.2
      %v1331 = vmul.f32 %v929, 0.2
      %v1332 = vmul.f32 %v931, 0.2
      %v1333 = vmul.f32 %v934, 0.2
      %v1334 = vmul.f32 %v936, 0.2
      %v1335 = vmul.f32 %v939, 0.2
      %v1336 = vmul.f32 %v941, 0.2
      %v1337 = vmul.f32 %v944, 0.2
      %v1338 = vmul.f32 %v946, 0.2
      %v1339 = vmul.f32 %v949, 0.2
      %v1340 = vmul.f32 %v951, 0.2
      %v1341 = vmul.f32 %v954, 0.2
      %v1342 = vmul.f32 %v956, 0.2
      %v1343 = vmul.f32 %v959, 0.2
      %v1344 = vmul.f32 %v961, 0.2
      %v1345 = vmul.f32 %v964, 0.2
      %v1346 = vmul.f32 %v966, 0.2
      %v1347 = vmul.f32 %v969, 0.2
      %v1348 = vmul.f32 %v971, 0.2
      %v1349 = vmul.f32 %v974, 0.2
      %v1350 = vmul.f32 %v976, 0.2
      %v1351 = vmul.f32 %v979, 0.2
      %v1352 = vmul.f32 %v981, 0.2
      %v1353 = vmul.f32 %v984, 0.2
      %v1354 = vmul.f32 %v986, 0.2
      %v1355 = vmul.f32 %v989, 0.2
      %v1356 = vmul.f32 %v991, 0.2
      %v1357 = vmul.f32 %v994, 0.2
      %v1358 = vmul.f32 %v996, 0.2
      %v1359 = vmul.f32 %v999, 0.2
      %v1360 = vmul.f32 %v1001, 0.2
      %v1361 = vmul.f32 %v1004, 0.2
      %v1362 = vmul.f32 %v1006, 0.2
      %v1363 = vmul.f32 %v1009, 0.2
      %v1364 = vmul.f32 %v1011, 0.2
      %v1365 = vmul.f32 %v1014, 0.2
      %v1366 = vmul.f32 %v1016, 0.2
      %v1367 = vmul.f32 %v1019, 0.2
      %v1368 = vmul.f32 %v1021, 0.2
      %v1369 = vmul.f32 %v1024, 0.2
      %v1370 = vmul.f32 %v1026, 0.2
      %v1371 = vmul.f32 %v1029, 0.2
      %v1372 = vmul.f32 %v1031, 0.2
      %v1373 = vmul.f32 %v1034, 0.2
      %v1374 = vmul.f32 %v1036, 0.2
      %v1375 = vmul.f32 %v1039, 0.2
      %v1376 = vmul.f32 %v1041, 0.2
      %v1377 = vmul.f32 %v1044, 0.2
      %v1378 = vmul.f32 %v1046, 0.2
      %v1379 = vmul.f32 %v1049, 0.2
      %v1380 = vmul.f32 %v1051, 0.2
      %v1381 = vmul.f32 %v1054, 0.2
      %v1382 = vmul.f32 %v1056, 0.2
      %v1383 = vmul.f32 %v1059, 0.2
      %v1384 = vmul.f32 %v1061, 0.2
      %v1385 = vmul.f32 %v1064, 0.2
      %v1386 = vmul.f32 %v1066, 0.2
      %v1387 = vmul.f32 %v1069, 0.2
      %v1388 = vmul.f32 %v1071, 0.2
      %v1389 = vmul.f32 %v1074, 0.2
      %v1390 = vmul.f32 %v1076, 0.2
      %v1391 = vmul.f32 %v1079, 0.2
      %v1392 = vmul.f32 %v1081, 0.2
      %v1393 = vmul.f32 %v1084, 0.2
      %v1394 = vmul.f32 %v1086, 0.2
      %v1395 = vmul.f32 %v1089, 0.2
      %v1396 = vmul.f32 %v1091, 0.2
      %v1397 = vmul.f32 %v1094, 0.2
      %v1398 = vmul.f32 %v1096, 0.2
      %v1399 = vmul.f32 %v1099, 0.2
      %v1400 = vmul.f32 %v1101, 0.2
      %v1401 = vmul.f32 %v1104, 0.2
      %v1402 = vmul.f32 %v1106, 0.2
      %v1403 = vmul.f32 %v1109, 0.2
      %v1404 = vmul.f32 %v1111, 0.2
      %v1405 = vmul.f32 %v1114, 0.2
      %v1406 = vmul.f32 %v1116, 0.2
      %v1407 = vmul.f32 %v1119, 0.2
      %v1408 = vmul.f32 %v1121, 0.2
      %v1409 = vmul.f32 %v1124, 0.2
      %v1410 = vmul.f32 %v1126, 0.2
      %v1411 = vmul.f32 %v1129, 0.2
      %v1412 = vmul.f32 %v1131, 0.2
      %v1413 = vmul.f32 %v1134, 0.2
      %v1414 = vmul.f32 %v1136, 0.2
      %v1415 = vmul.f32 %v1139, 0.2
      %v1416 = vmul.f32 %v1141, 0.2
      %v1417 = vmul.f32 %v1144, 0.2
      %v1418 = vmul.f32 %v1146, 0.2
      %v1419 = vmul.f32 %v1149, 0.2
      %v1420 = vmul.f32 %v1151, 0.2
      %v1421 = vmul.f32 %v1154, 0.2
      %v1422 = vmul.f32 %v1156, 0.2
      %v1423 = vmul.f32 %v1159, 0.2
      %v1424 = vmul.f32 %v1161, 0.2
      %v1425 = vmul.f32 %v1164, 0.2
      %v1426 = vmul.f32 %v1166, 0.2
      %v1427 = vmul.f32 %v1169, 0.2
      %v1428 = vmul.f32 %v1171, 0.2
      %v1429 = vsel %vm1173, %v854, %v1301
      %v1430 = vsel %vm1174, %v856, %v1302
      %v1431 = vsel %vm1175, %v859, %v1303
      %v1432 = vsel %vm1176, %v861, %v1304
      %v1433 = vsel %vm1177, %v864, %v1305
      %v1434 = vsel %vm1178, %v866, %v1306
      %v1435 = vsel %vm1179, %v869, %v1307
      %v1436 = vsel %vm1180, %v871, %v1308
      %v1437 = vsel %vm1181, %v874, %v1309
      %v1438 = vsel %vm1182, %v876, %v1310
      %v1439 = vsel %vm1183, %v879, %v1311
      %v1440 = vsel %vm1184, %v881, %v1312
      %v1441 = vsel %vm1185, %v884, %v1313
      %v1442 = vsel %vm1186, %v886, %v1314
      %v1443 = vsel %vm1187, %v889, %v1315
      %v1444 = vsel %vm1188, %v891, %v1316
      %v1445 = vsel %vm1189, %v894, %v1317
      %v1446 = vsel %vm1190, %v896, %v1318
      %v1447 = vsel %vm1191, %v899, %v1319
      %v1448 = vsel %vm1192, %v901, %v1320
      %v1449 = vsel %vm1193, %v904, %v1321
      %v1450 = vsel %vm1194, %v906, %v1322
      %v1451 = vsel %vm1195, %v909, %v1323
      %v1452 = vsel %vm1196, %v911, %v1324
      %v1453 = vsel %vm1197, %v914, %v1325
      %v1454 = vsel %vm1198, %v916, %v1326
      %v1455 = vsel %vm1199, %v919, %v1327
      %v1456 = vsel %vm1200, %v921, %v1328
      %v1457 = vsel %vm1201, %v924, %v1329
      %v1458 = vsel %vm1202, %v926, %v1330
      %v1459 = vsel %vm1203, %v929, %v1331
      %v1460 = vsel %vm1204, %v931, %v1332
      %v1461 = vsel %vm1205, %v934, %v1333
      %v1462 = vsel %vm1206, %v936, %v1334
      %v1463 = vsel %vm1207, %v939, %v1335
      %v1464 = vsel %vm1208, %v941, %v1336
      %v1465 = vsel %vm1209, %v944, %v1337
      %v1466 = vsel %vm1210, %v946, %v1338
      %v1467 = vsel %vm1211, %v949, %v1339
      %v1468 = vsel %vm1212, %v951, %v1340
      %v1469 = vsel %vm1213, %v954, %v1341
      %v1470 = vsel %vm1214, %v956, %v1342
      %v1471 = vsel %vm1215, %v959, %v1343
      %v1472 = vsel %vm1216, %v961, %v1344
      %v1473 = vsel %vm1217, %v964, %v1345
      %v1474 = vsel %vm1218, %v966, %v1346
      %v1475 = vsel %vm1219, %v969, %v1347
      %v1476 = vsel %vm1220, %v971, %v1348
      %v1477 = vsel %vm1221, %v974, %v1349
      %v1478 = vsel %vm1222, %v976, %v1350
      %v1479 = vsel %vm1223, %v979, %v1351
      %v1480 = vsel %vm1224, %v981, %v1352
      %v1481 = vsel %vm1225, %v984, %v1353
      %v1482 = vsel %vm1226, %v986, %v1354
      %v1483 = vsel %vm1227, %v989, %v1355
      %v1484 = vsel %vm1228, %v991, %v1356
      %v1485 = vsel %vm1229, %v994, %v1357
      %v1486 = vsel %vm1230, %v996, %v1358
      %v1487 = vsel %vm1231, %v999, %v1359
      %v1488 = vsel %vm1232, %v1001, %v1360
      %v1489 = vsel %vm1233, %v1004, %v1361
      %v1490 = vsel %vm1234, %v1006, %v1362
      %v1491 = vsel %vm1235, %v1009, %v1363
      %v1492 = vsel %vm1236, %v1011, %v1364
      %v1493 = vsel %vm1237, %v1014, %v1365
      %v1494 = vsel %vm1238, %v1016, %v1366
      %v1495 = vsel %vm1239, %v1019, %v1367
      %v1496 = vsel %vm1240, %v1021, %v1368
      %v1497 = vsel %vm1241, %v1024, %v1369
      %v1498 = vsel %vm1242, %v1026, %v1370
      %v1499 = vsel %vm1243, %v1029, %v1371
      %v1500 = vsel %vm1244, %v1031, %v1372
      %v1501 = vsel %vm1245, %v1034, %v1373
      %v1502 = vsel %vm1246, %v1036, %v1374
      %v1503 = vsel %vm1247, %v1039, %v1375
      %v1504 = vsel %vm1248, %v1041, %v1376
      %v1505 = vsel %vm1249, %v1044, %v1377
      %v1506 = vsel %vm1250, %v1046, %v1378
      %v1507 = vsel %vm1251, %v1049, %v1379
      %v1508 = vsel %vm1252, %v1051, %v1380
      %v1509 = vsel %vm1253, %v1054, %v1381
      %v1510 = vsel %vm1254, %v1056, %v1382
      %v1511 = vsel %vm1255, %v1059, %v1383
      %v1512 = vsel %vm1256, %v1061, %v1384
      %v1513 = vsel %vm1257, %v1064, %v1385
      %v1514 = vsel %vm1258, %v1066, %v1386
      %v1515 = vsel %vm1259, %v1069, %v1387
      %v1516 = vsel %vm1260, %v1071, %v1388
      %v1517 = vsel %vm1261, %v1074, %v1389
      %v1518 = vsel %vm1262, %v1076, %v1390
      %v1519 = vsel %vm1263, %v1079, %v1391
      %v1520 = vsel %vm1264, %v1081, %v1392
      %v1521 = vsel %vm1265, %v1084, %v1393
      %v1522 = vsel %vm1266, %v1086, %v1394
      %v1523 = vsel %vm1267, %v1089, %v1395
      %v1524 = vsel %vm1268, %v1091, %v1396
      %v1525 = vsel %vm1269, %v1094, %v1397
      %v1526 = vsel %vm1270, %v1096, %v1398
      %v1527 = vsel %vm1271, %v1099, %v1399
      %v1528 = vsel %vm1272, %v1101, %v1400
      %v1529 = vsel %vm1273, %v1104, %v1401
      %v1530 = vsel %vm1274, %v1106, %v1402
      %v1531 = vsel %vm1275, %v1109, %v1403
      %v1532 = vsel %vm1276, %v1111, %v1404
      %v1533 = vsel %vm1277, %v1114, %v1405
      %v1534 = vsel %vm1278, %v1116, %v1406
      %v1535 = vsel %vm1279, %v1119, %v1407
      %v1536 = vsel %vm1280, %v1121, %v1408
      %v1537 = vsel %vm1281, %v1124, %v1409
      %v1538 = vsel %vm1282, %v1126, %v1410
      %v1539 = vsel %vm1283, %v1129, %v1411
      %v1540 = vsel %vm1284, %v1131, %v1412
      %v1541 = vsel %vm1285, %v1134, %v1413
      %v1542 = vsel %vm1286, %v1136, %v1414
      %v1543 = vsel %vm1287, %v1139, %v1415
      %v1544 = vsel %vm1288, %v1141, %v1416
      %v1545 = vsel %vm1289, %v1144, %v1417
      %v1546 = vsel %vm1290, %v1146, %v1418
      %v1547 = vsel %vm1291, %v1149, %v1419
      %v1548 = vsel %vm1292, %v1151, %v1420
      %v1549 = vsel %vm1293, %v1154, %v1421
      %v1550 = vsel %vm1294, %v1156, %v1422
      %v1551 = vsel %vm1295, %v1159, %v1423
      %v1552 = vsel %vm1296, %v1161, %v1424
      %v1553 = vsel %vm1297, %v1164, %v1425
      %v1554 = vsel %vm1298, %v1166, %v1426
      %v1555 = vsel %vm1299, %v1169, %v1427
      %v1556 = vsel %vm1300, %v1171, %v1428
      %v1557 = vpack.c.bf16 %v1429, %v1429
      %v1558 = vpack.c.bf16 %v1430, %v1430
      %v1559 = vpack.c.bf16 %v1431, %v1431
      %v1560 = vpack.c.bf16 %v1432, %v1432
      %v1561 = vpack.c.bf16 %v1433, %v1433
      %v1562 = vpack.c.bf16 %v1434, %v1434
      %v1563 = vpack.c.bf16 %v1435, %v1435
      %v1564 = vpack.c.bf16 %v1436, %v1436
      %v1565 = vpack.c.bf16 %v1437, %v1437
      %v1566 = vpack.c.bf16 %v1438, %v1438
      %v1567 = vpack.c.bf16 %v1439, %v1439
      %v1568 = vpack.c.bf16 %v1440, %v1440
      %v1569 = vpack.c.bf16 %v1441, %v1441
      %v1570 = vpack.c.bf16 %v1442, %v1442
      %v1571 = vpack.c.bf16 %v1443, %v1443
      %v1572 = vpack.c.bf16 %v1444, %v1444
      %v1573 = vpack.c.bf16 %v1445, %v1445
      %v1574 = vpack.c.bf16 %v1446, %v1446
      %v1575 = vpack.c.bf16 %v1447, %v1447
      %v1576 = vpack.c.bf16 %v1448, %v1448
      %v1577 = vpack.c.bf16 %v1449, %v1449
      %v1578 = vpack.c.bf16 %v1450, %v1450
      %v1579 = vpack.c.bf16 %v1451, %v1451
      %v1580 = vpack.c.bf16 %v1452, %v1452
      %v1581 = vpack.c.bf16 %v1453, %v1453
      %v1582 = vpack.c.bf16 %v1454, %v1454
      %v1583 = vpack.c.bf16 %v1455, %v1455
      %v1584 = vpack.c.bf16 %v1456, %v1456
      %v1585 = vpack.c.bf16 %v1457, %v1457
      %v1586 = vpack.c.bf16 %v1458, %v1458
      %v1587 = vpack.c.bf16 %v1459, %v1459
      %v1588 = vpack.c.bf16 %v1460, %v1460
      %v1589 = vpack.c.bf16 %v1461, %v1461
      %v1590 = vpack.c.bf16 %v1462, %v1462
      %v1591 = vpack.c.bf16 %v1463, %v1463
      %v1592 = vpack.c.bf16 %v1464, %v1464
      %v1593 = vpack.c.bf16 %v1465, %v1465
      %v1594 = vpack.c.bf16 %v1466, %v1466
      %v1595 = vpack.c.bf16 %v1467, %v1467
      %v1596 = vpack.c.bf16 %v1468, %v1468
      %v1597 = vpack.c.bf16 %v1469, %v1469
      %v1598 = vpack.c.bf16 %v1470, %v1470
      %v1599 = vpack.c.bf16 %v1471, %v1471
      %v1600 = vpack.c.bf16 %v1472, %v1472
      %v1601 = vpack.c.bf16 %v1473, %v1473
      %v1602 = vpack.c.bf16 %v1474, %v1474
      %v1603 = vpack.c.bf16 %v1475, %v1475
      %v1604 = vpack.c.bf16 %v1476, %v1476
      %v1605 = vpack.c.bf16 %v1477, %v1477
      %v1606 = vpack.c.bf16 %v1478, %v1478
      %v1607 = vpack.c.bf16 %v1479, %v1479
      %v1608 = vpack.c.bf16 %v1480, %v1480
      %v1609 = vpack.c.bf16 %v1481, %v1481
      %v1610 = vpack.c.bf16 %v1482, %v1482
      %v1611 = vpack.c.bf16 %v1483, %v1483
      %v1612 = vpack.c.bf16 %v1484, %v1484
      %v1613 = vpack.c.bf16 %v1485, %v1485
      %v1614 = vpack.c.bf16 %v1486, %v1486
      %v1615 = vpack.c.bf16 %v1487, %v1487
      %v1616 = vpack.c.bf16 %v1488, %v1488
      %v1617 = vpack.c.bf16 %v1489, %v1489
      %v1618 = vpack.c.bf16 %v1490, %v1490
      %v1619 = vpack.c.bf16 %v1491, %v1491
      %v1620 = vpack.c.bf16 %v1492, %v1492
      %v1621 = vpack.c.bf16 %v1493, %v1493
      %v1622 = vpack.c.bf16 %v1494, %v1494
      %v1623 = vpack.c.bf16 %v1495, %v1495
      %v1624 = vpack.c.bf16 %v1496, %v1496
      %v1625 = vpack.c.bf16 %v1497, %v1497
      %v1626 = vpack.c.bf16 %v1498, %v1498
      %v1627 = vpack.c.bf16 %v1499, %v1499
      %v1628 = vpack.c.bf16 %v1500, %v1500
      %v1629 = vpack.c.bf16 %v1501, %v1501
      %v1630 = vpack.c.bf16 %v1502, %v1502
      %v1631 = vpack.c.bf16 %v1503, %v1503
      %v1632 = vpack.c.bf16 %v1504, %v1504
      %v1633 = vpack.c.bf16 %v1505, %v1505
      %v1634 = vpack.c.bf16 %v1506, %v1506
      %v1635 = vpack.c.bf16 %v1507, %v1507
      %v1636 = vpack.c.bf16 %v1508, %v1508
      %v1637 = vpack.c.bf16 %v1509, %v1509
      %v1638 = vpack.c.bf16 %v1510, %v1510
      %v1639 = vpack.c.bf16 %v1511, %v1511
      %v1640 = vpack.c.bf16 %v1512, %v1512
      %v1641 = vpack.c.bf16 %v1513, %v1513
      %v1642 = vpack.c.bf16 %v1514, %v1514
      %v1643 = vpack.c.bf16 %v1515, %v1515
      %v1644 = vpack.c.bf16 %v1516, %v1516
      %v1645 = vpack.c.bf16 %v1517, %v1517
      %v1646 = vpack.c.bf16 %v1518, %v1518
      %v1647 = vpack.c.bf16 %v1519, %v1519
      %v1648 = vpack.c.bf16 %v1520, %v1520
      %v1649 = vpack.c.bf16 %v1521, %v1521
      %v1650 = vpack.c.bf16 %v1522, %v1522
      %v1651 = vpack.c.bf16 %v1523, %v1523
      %v1652 = vpack.c.bf16 %v1524, %v1524
      %v1653 = vpack.c.bf16 %v1525, %v1525
      %v1654 = vpack.c.bf16 %v1526, %v1526
      %v1655 = vpack.c.bf16 %v1527, %v1527
      %v1656 = vpack.c.bf16 %v1528, %v1528
      %v1657 = vpack.c.bf16 %v1529, %v1529
      %v1658 = vpack.c.bf16 %v1530, %v1530
      %v1659 = vpack.c.bf16 %v1531, %v1531
      %v1660 = vpack.c.bf16 %v1532, %v1532
      %v1661 = vpack.c.bf16 %v1533, %v1533
      %v1662 = vpack.c.bf16 %v1534, %v1534
      %v1663 = vpack.c.bf16 %v1535, %v1535
      %v1664 = vpack.c.bf16 %v1536, %v1536
      %v1665 = vpack.c.bf16 %v1537, %v1537
      %v1666 = vpack.c.bf16 %v1538, %v1538
      %v1667 = vpack.c.bf16 %v1539, %v1539
      %v1668 = vpack.c.bf16 %v1540, %v1540
      %v1669 = vpack.c.bf16 %v1541, %v1541
      %v1670 = vpack.c.bf16 %v1542, %v1542
      %v1671 = vpack.c.bf16 %v1543, %v1543
      %v1672 = vpack.c.bf16 %v1544, %v1544
      %v1673 = vpack.c.bf16 %v1545, %v1545
      %v1674 = vpack.c.bf16 %v1546, %v1546
      %v1675 = vpack.c.bf16 %v1547, %v1547
      %v1676 = vpack.c.bf16 %v1548, %v1548
      %v1677 = vpack.c.bf16 %v1549, %v1549
      %v1678 = vpack.c.bf16 %v1550, %v1550
      %v1679 = vpack.c.bf16 %v1551, %v1551
      %v1680 = vpack.c.bf16 %v1552, %v1552
      %v1681 = vpack.c.bf16 %v1553, %v1553
      %v1682 = vpack.c.bf16 %v1554, %v1554
      %v1683 = vpack.c.bf16 %v1555, %v1555
      %v1684 = vpack.c.bf16 %v1556, %v1556
      %vm1685 = vcmask 27648
      %1686 = vst.msk [vmem:[%s172] sm:$0xf] %vm1685, %v1557
      %1687 = vst.msk [vmem:[%s172 + $0x4] sm:$0xf] %vm1685, %v1558
      %1688 = vst.msk [vmem:[%s172 + $0x8] sm:$0xf] %vm1685, %v1559
      %1689 = vst.msk [vmem:[%s172 + $0xc] sm:$0xf] %vm1685, %v1560
      %1690 = vst.msk [vmem:[%s172 + $0x10] sm:$0xf] %vm1685, %v1561
      %1691 = vst.msk [vmem:[%s172 + $0x14] sm:$0xf] %vm1685, %v1562
      %1692 = vst.msk [vmem:[%s172 + $0x18] sm:$0xf] %vm1685, %v1563
      %1693 = vst.msk [vmem:[%s172 + $0x1c] sm:$0xf] %vm1685, %v1564
      %1694 = vst.msk [vmem:[%s172 + $0x20] sm:$0xf] %vm1685, %v1565
      %1695 = vst.msk [vmem:[%s172 + $0x24] sm:$0xf] %vm1685, %v1566
      %1696 = vst.msk [vmem:[%s172 + $0x28] sm:$0xf] %vm1685, %v1567
      %1697 = vst.msk [vmem:[%s172 + $0x2c] sm:$0xf] %vm1685, %v1568
      %1698 = vst.msk [vmem:[%s172 + $0x30] sm:$0xf] %vm1685, %v1569
      %1699 = vst.msk [vmem:[%s172 + $0x34] sm:$0xf] %vm1685, %v1570
      %1700 = vst.msk [vmem:[%s172 + $0x38] sm:$0xf] %vm1685, %v1571
      %1701 = vst.msk [vmem:[%s172 + $0x3c] sm:$0xf] %vm1685, %v1572
      %1702 = vst.msk [vmem:[%s172 + $0x40] sm:$0xf] %vm1685, %v1573
      %1703 = vst.msk [vmem:[%s172 + $0x44] sm:$0xf] %vm1685, %v1574
      %1704 = vst.msk [vmem:[%s172 + $0x48] sm:$0xf] %vm1685, %v1575
      %1705 = vst.msk [vmem:[%s172 + $0x4c] sm:$0xf] %vm1685, %v1576
      %1706 = vst.msk [vmem:[%s172 + $0x50] sm:$0xf] %vm1685, %v1577
      %1707 = vst.msk [vmem:[%s172 + $0x54] sm:$0xf] %vm1685, %v1578
      %1708 = vst.msk [vmem:[%s172 + $0x58] sm:$0xf] %vm1685, %v1579
      %1709 = vst.msk [vmem:[%s172 + $0x5c] sm:$0xf] %vm1685, %v1580
      %1710 = vst.msk [vmem:[%s172 + $0x60] sm:$0xf] %vm1685, %v1581
      %1711 = vst.msk [vmem:[%s172 + $0x64] sm:$0xf] %vm1685, %v1582
      %1712 = vst.msk [vmem:[%s172 + $0x68] sm:$0xf] %vm1685, %v1583
      %1713 = vst.msk [vmem:[%s172 + $0x6c] sm:$0xf] %vm1685, %v1584
      %1714 = vst.msk [vmem:[%s172 + $0x70] sm:$0xf] %vm1685, %v1585
      %1715 = vst.msk [vmem:[%s172 + $0x74] sm:$0xf] %vm1685, %v1586
      %1716 = vst.msk [vmem:[%s172 + $0x78] sm:$0xf] %vm1685, %v1587
      %1717 = vst.msk [vmem:[%s172 + $0x7c] sm:$0xf] %vm1685, %v1588
      %1718 = vst.msk [vmem:[%s172 + $0x80] sm:$0xf] %vm1685, %v1589
      %1719 = vst.msk [vmem:[%s172 + $0x84] sm:$0xf] %vm1685, %v1590
      %1720 = vst.msk [vmem:[%s172 + $0x88] sm:$0xf] %vm1685, %v1591
      %1721 = vst.msk [vmem:[%s172 + $0x8c] sm:$0xf] %vm1685, %v1592
      %1722 = vst.msk [vmem:[%s172 + $0x90] sm:$0xf] %vm1685, %v1593
      %1723 = vst.msk [vmem:[%s172 + $0x94] sm:$0xf] %vm1685, %v1594
      %1724 = vst.msk [vmem:[%s172 + $0x98] sm:$0xf] %vm1685, %v1595
      %1725 = vst.msk [vmem:[%s172 + $0x9c] sm:$0xf] %vm1685, %v1596
      %1726 = vst.msk [vmem:[%s172 + $0xa0] sm:$0xf] %vm1685, %v1597
      %1727 = vst.msk [vmem:[%s172 + $0xa4] sm:$0xf] %vm1685, %v1598
      %1728 = vst.msk [vmem:[%s172 + $0xa8] sm:$0xf] %vm1685, %v1599
      %1729 = vst.msk [vmem:[%s172 + $0xac] sm:$0xf] %vm1685, %v1600
      %1730 = vst.msk [vmem:[%s172 + $0xb0] sm:$0xf] %vm1685, %v1601
      %1731 = vst.msk [vmem:[%s172 + $0xb4] sm:$0xf] %vm1685, %v1602
      %1732 = vst.msk [vmem:[%s172 + $0xb8] sm:$0xf] %vm1685, %v1603
      %1733 = vst.msk [vmem:[%s172 + $0xbc] sm:$0xf] %vm1685, %v1604
      %1734 = vst.msk [vmem:[%s172 + $0xc0] sm:$0xf] %vm1685, %v1605
      %1735 = vst.msk [vmem:[%s172 + $0xc4] sm:$0xf] %vm1685, %v1606
      %1736 = vst.msk [vmem:[%s172 + $0xc8] sm:$0xf] %vm1685, %v1607
      %1737 = vst.msk [vmem:[%s172 + $0xcc] sm:$0xf] %vm1685, %v1608
      %1738 = vst.msk [vmem:[%s172 + $0xd0] sm:$0xf] %vm1685, %v1609
      %1739 = vst.msk [vmem:[%s172 + $0xd4] sm:$0xf] %vm1685, %v1610
      %1740 = vst.msk [vmem:[%s172 + $0xd8] sm:$0xf] %vm1685, %v1611
      %1741 = vst.msk [vmem:[%s172 + $0xdc] sm:$0xf] %vm1685, %v1612
      %1742 = vst.msk [vmem:[%s172 + $0xe0] sm:$0xf] %vm1685, %v1613
      %1743 = vst.msk [vmem:[%s172 + $0xe4] sm:$0xf] %vm1685, %v1614
      %1744 = vst.msk [vmem:[%s172 + $0xe8] sm:$0xf] %vm1685, %v1615
      %1745 = vst.msk [vmem:[%s172 + $0xec] sm:$0xf] %vm1685, %v1616
      %1746 = vst.msk [vmem:[%s172 + $0xf0] sm:$0xf] %vm1685, %v1617
      %1747 = vst.msk [vmem:[%s172 + $0xf4] sm:$0xf] %vm1685, %v1618
      %1748 = vst.msk [vmem:[%s172 + $0xf8] sm:$0xf] %vm1685, %v1619
      %1749 = vst.msk [vmem:[%s172 + $0xfc] sm:$0xf] %vm1685, %v1620
      %1750 = vst.msk [vmem:[%s172 + $0x100] sm:$0xf] %vm1685, %v1621
      %1751 = vst.msk [vmem:[%s172 + $0x104] sm:$0xf] %vm1685, %v1622
      %1752 = vst.msk [vmem:[%s172 + $0x108] sm:$0xf] %vm1685, %v1623
      %1753 = vst.msk [vmem:[%s172 + $0x10c] sm:$0xf] %vm1685, %v1624
      %1754 = vst.msk [vmem:[%s172 + $0x110] sm:$0xf] %vm1685, %v1625
      %1755 = vst.msk [vmem:[%s172 + $0x114] sm:$0xf] %vm1685, %v1626
      %1756 = vst.msk [vmem:[%s172 + $0x118] sm:$0xf] %vm1685, %v1627
      %1757 = vst.msk [vmem:[%s172 + $0x11c] sm:$0xf] %vm1685, %v1628
      %1758 = vst.msk [vmem:[%s172 + $0x120] sm:$0xf] %vm1685, %v1629
      %1759 = vst.msk [vmem:[%s172 + $0x124] sm:$0xf] %vm1685, %v1630
      %1760 = vst.msk [vmem:[%s172 + $0x128] sm:$0xf] %vm1685, %v1631
      %1761 = vst.msk [vmem:[%s172 + $0x12c] sm:$0xf] %vm1685, %v1632
      %1762 = vst.msk [vmem:[%s172 + $0x130] sm:$0xf] %vm1685, %v1633
      %1763 = vst.msk [vmem:[%s172 + $0x134] sm:$0xf] %vm1685, %v1634
      %1764 = vst.msk [vmem:[%s172 + $0x138] sm:$0xf] %vm1685, %v1635
      %1765 = vst.msk [vmem:[%s172 + $0x13c] sm:$0xf] %vm1685, %v1636
      %1766 = vst.msk [vmem:[%s172 + $0x140] sm:$0xf] %vm1685, %v1637
      %1767 = vst.msk [vmem:[%s172 + $0x144] sm:$0xf] %vm1685, %v1638
      %1768 = vst.msk [vmem:[%s172 + $0x148] sm:$0xf] %vm1685, %v1639
      %1769 = vst.msk [vmem:[%s172 + $0x14c] sm:$0xf] %vm1685, %v1640
      %1770 = vst.msk [vmem:[%s172 + $0x150] sm:$0xf] %vm1685, %v1641
      %1771 = vst.msk [vmem:[%s172 + $0x154] sm:$0xf] %vm1685, %v1642
      %1772 = vst.msk [vmem:[%s172 + $0x158] sm:$0xf] %vm1685, %v1643
      %1773 = vst.msk [vmem:[%s172 + $0x15c] sm:$0xf] %vm1685, %v1644
      %1774 = vst.msk [vmem:[%s172 + $0x160] sm:$0xf] %vm1685, %v1645
      %1775 = vst.msk [vmem:[%s172 + $0x164] sm:$0xf] %vm1685, %v1646
      %1776 = vst.msk [vmem:[%s172 + $0x168] sm:$0xf] %vm1685, %v1647
      %1777 = vst.msk [vmem:[%s172 + $0x16c] sm:$0xf] %vm1685, %v1648
      %1778 = vst.msk [vmem:[%s172 + $0x170] sm:$0xf] %vm1685, %v1649
      %1779 = vst.msk [vmem:[%s172 + $0x174] sm:$0xf] %vm1685, %v1650
      %1780 = vst.msk [vmem:[%s172 + $0x178] sm:$0xf] %vm1685, %v1651
      %1781 = vst.msk [vmem:[%s172 + $0x17c] sm:$0xf] %vm1685, %v1652
      %1782 = vst.msk [vmem:[%s172 + $0x180] sm:$0xf] %vm1685, %v1653
      %1783 = vst.msk [vmem:[%s172 + $0x184] sm:$0xf] %vm1685, %v1654
      %1784 = vst.msk [vmem:[%s172 + $0x188] sm:$0xf] %vm1685, %v1655
      %1785 = vst.msk [vmem:[%s172 + $0x18c] sm:$0xf] %vm1685, %v1656
      %1786 = vst.msk [vmem:[%s172 + $0x190] sm:$0xf] %vm1685, %v1657
      %1787 = vst.msk [vmem:[%s172 + $0x194] sm:$0xf] %vm1685, %v1658
      %1788 = vst.msk [vmem:[%s172 + $0x198] sm:$0xf] %vm1685, %v1659
      %1789 = vst.msk [vmem:[%s172 + $0x19c] sm:$0xf] %vm1685, %v1660
      %1790 = vst.msk [vmem:[%s172 + $0x1a0] sm:$0xf] %vm1685, %v1661
      %1791 = vst.msk [vmem:[%s172 + $0x1a4] sm:$0xf] %vm1685, %v1662
      %1792 = vst.msk [vmem:[%s172 + $0x1a8] sm:$0xf] %vm1685, %v1663
      %1793 = vst.msk [vmem:[%s172 + $0x1ac] sm:$0xf] %vm1685, %v1664
      %1794 = vst.msk [vmem:[%s172 + $0x1b0] sm:$0xf] %vm1685, %v1665
      %1795 = vst.msk [vmem:[%s172 + $0x1b4] sm:$0xf] %vm1685, %v1666
      %1796 = vst.msk [vmem:[%s172 + $0x1b8] sm:$0xf] %vm1685, %v1667
      %1797 = vst.msk [vmem:[%s172 + $0x1bc] sm:$0xf] %vm1685, %v1668
      %1798 = vst.msk [vmem:[%s172 + $0x1c0] sm:$0xf] %vm1685, %v1669
      %1799 = vst.msk [vmem:[%s172 + $0x1c4] sm:$0xf] %vm1685, %v1670
      %1800 = vst.msk [vmem:[%s172 + $0x1c8] sm:$0xf] %vm1685, %v1671
      %1801 = vst.msk [vmem:[%s172 + $0x1cc] sm:$0xf] %vm1685, %v1672
      %1802 = vst.msk [vmem:[%s172 + $0x1d0] sm:$0xf] %vm1685, %v1673
      %1803 = vst.msk [vmem:[%s172 + $0x1d4] sm:$0xf] %vm1685, %v1674
      %1804 = vst.msk [vmem:[%s172 + $0x1d8] sm:$0xf] %vm1685, %v1675
      %1805 = vst.msk [vmem:[%s172 + $0x1dc] sm:$0xf] %vm1685, %v1676
      %1806 = vst.msk [vmem:[%s172 + $0x1e0] sm:$0xf] %vm1685, %v1677
      %1807 = vst.msk [vmem:[%s172 + $0x1e4] sm:$0xf] %vm1685, %v1678
      %1808 = vst.msk [vmem:[%s172 + $0x1e8] sm:$0xf] %vm1685, %v1679
      %1809 = vst.msk [vmem:[%s172 + $0x1ec] sm:$0xf] %vm1685, %v1680
      %1810 = vst.msk [vmem:[%s172 + $0x1f0] sm:$0xf] %vm1685, %v1681
      %1811 = vst.msk [vmem:[%s172 + $0x1f4] sm:$0xf] %vm1685, %v1682
      %1812 = vst.msk [vmem:[%s172 + $0x1f8] sm:$0xf] %vm1685, %v1683
      %1813 = vst.msk [vmem:[%s172 + $0x1fc] sm:$0xf] %vm1685, %v1684
      %s1814 = smul.u32 128, %s14
      %p1815 = scmp.lt.s32.totalorder %s1814, 255
      %s1816 = scalar_select %p1815, %s1814, 255
      %s1817 = smul.addr %s1816, 4
      %s1818 = scalar_lea.vmem %s3, %s1817
      // Predicated region
      $region33: #{patch_discriminator_forward.5} parent=31 // pred_check
        %p1819 = pneg %p100
      $region34: #{patch_discriminator_forward.5} parent=31 // pred_check_branch
        %1821 = sbr.rel (%p1819) target = $region36
      $region35: #{patch_discriminator_forward.5} parent=31 // pred_region
        %s1822 = smul.u32 128, %s14
      $region36: #{patch_discriminator_forward.5} parent=31 // pred_fallthru
        _
    $region32: #{patch_discriminator_forward.5} parent=5 // pred_fallthru
      _
    %p1823 = scmp.le.s32.totalorder 2, %s9
    // Predicated region
    $region37: #{patch_discriminator_forward.5} parent=5 // pred_check
      %p1824 = pneg %p1823
    $region38: #{patch_discriminator_forward.5} parent=5 // pred_check_branch
      %1826 = sbr.rel (%p1824) target = $region40
    $region39: #{patch_discriminator_forward.5} parent=5 // pred_region
      %s1827 = ssub.s32 %s9, 2
      // Predicated region
      $region41: #{patch_discriminator_forward.5} parent=39 // pred_check
        %p1828 = pneg %p106
      $region42: #{patch_discriminator_forward.5} parent=39 // pred_check_branch
        %1830 = sbr.rel (%p1828) target = $region44
      $region43: #{patch_discriminator_forward.5} parent=39 // pred_region
        %s1831 = smul.u32 128, %s15
        %p1832 = scmp.lt.s32.totalorder %s1831, 255
        %s1833 = scalar_select %p1832, %s1831, 255
        %s1834 = smul.addr %s1833, 4
        %s1835 = scalar_lea.vmem %s3, %s1834
      $region44: #{patch_discriminator_forward.5} parent=39 // pred_fallthru
        _
    $region40: #{patch_discriminator_forward.5} parent=5 // pred_fallthru
      _
  $region6: #{patch_discriminator_forward.5} parent=0 // loop_footer
    %s13 = sadd.s32 1, %s9
  $region7: #{patch_discriminator_forward.5} parent=0 // loop_footer_branch
    %8 = sbr.rel target = $region3
  $region8: #{patch_discriminator_forward.5} parent=0 // loop_exit
    _

// kernel: patch_discriminator_forward.6
$region0: #{patch_discriminator_forward.6}
  #allocation0 [shape = 'u32[]', space=smem, size = 0x4, offset = 0x4, fixed_abs, tag = 'smem constant byte address 0x4 - core index']
  #allocation1 [shape = 'u32[72,128]{1,0:T(1,128)}', space=vmem, size = 0x9000, scoped, tag = 'internal scratch']
  %s0 = inlined_call_operand.vmem [shape: bf16[2,256,64], index: 0, kind: input, shape index: {}]
  %s1 = inlined_call_operand.vmem [shape: bf16[64,8], index: 1, kind: input, shape index: {}]
  %s2 = inlined_call_operand.vmem [shape: f32[1,8], index: 2, kind: input, shape index: {}]
  %s3 = inlined_call_operand.vmem [shape: bf16[2,256,8], index: 3, kind: output, shape index: {}]
  %s4 = sld [smem:[#allocation0]]
  $region45: #{patch_discriminator_forward.6} parent=0
    _
  %s6 = ssub.s32 1, %s4
  %s7 = scalar_select 0, %s6, %s4
  loop: start=0, step=1, limit=4
  $region2: #{patch_discriminator_forward.6} parent=0 // loop_pre_header
    _
  $region3: #{patch_discriminator_forward.6} parent=0 // loop_header
    %s9 = sphi 0, %s13
    %p10 = scmp.ge.s32.totalorder %s9, 4
    %s19 = sphi 0, %s21
    %s22 = sphi 0, %s19
    %s23 = sphi 0, %s22
    %s39 = sphi 0, %s23
    %s43 = sphi 0, %s43
    %s45 = sphi 0, %s43
    %s46 = sphi 0, %s45
    %s60 = sphi 0, %s46
    %s64 = sphi 0, %s64
    %s66 = sphi 0, %s64
    %s67 = sphi 0, %s66
    %s81 = sphi 0, %s67
    %s87 = sphi 0, %s89
    %s90 = sphi 0, %s87
    %s91 = sphi 0, %s90
    %s107 = sphi 0, %s91
  $region4: #{patch_discriminator_forward.6} parent=0 // loop_header_branch
    %12 = sbr.rel (%p10) target = $region8
  $region5: #{patch_discriminator_forward.6} parent=0 // loop_body
    %s14 = ssub.s32 %s9, 1
    %s15 = ssub.s32 %s9, 2
    %s16 = sadd.s32 %s9, 1
    %s17 = ssub.s32 %s9, %s16
    %p18 = scmp.eq.s32.totalorder %s17, 0
    %s20 = sadd.s32 %s19, 1
    %s21 = scalar_select %p18, %s19, %s20
    %p24 = pneg %p18
    %p25 = scmp.eq.s32.totalorder %s9, 1
    %p26 = por %p24, %p25
    %p27 = scmp.ne.s32.totalorder %s19, %s22
    %p28 = scmp.eq.s32.totalorder %s9, 0
    %p29 = por %p27, %p28
    %p30 = scmp.ne.s32.totalorder %s19, %s22
    %p31 = scmp.eq.s32.totalorder %s14, 1
    %p32 = por %p30, %p31
    %p33 = scmp.ne.s32.totalorder %s22, %s23
    %p34 = scmp.eq.s32.totalorder %s14, 0
    %p35 = por %p33, %p34
    %p36 = scmp.ne.s32.totalorder %s22, %s23
    %p37 = scmp.eq.s32.totalorder %s15, 1
    %p38 = por %p36, %p37
    %p40 = scmp.ne.s32.totalorder %s23, %s39
    %p41 = scmp.eq.s32.totalorder %s15, 0
    %p42 = por %p40, %p41
    %s44 = sadd.s32 %s43, 1
    %p47 = scmp.eq.s32.totalorder %s9, 1
    %p48 = scmp.ne.s32.totalorder %s43, %s45
    %p49 = scmp.eq.s32.totalorder %s9, 0
    %p50 = por %p48, %p49
    %p51 = scmp.ne.s32.totalorder %s43, %s45
    %p52 = scmp.eq.s32.totalorder %s14, 1
    %p53 = por %p51, %p52
    %p54 = scmp.ne.s32.totalorder %s45, %s46
    %p55 = scmp.eq.s32.totalorder %s14, 0
    %p56 = por %p54, %p55
    %p57 = scmp.ne.s32.totalorder %s45, %s46
    %p58 = scmp.eq.s32.totalorder %s15, 1
    %p59 = por %p57, %p58
    %p61 = scmp.ne.s32.totalorder %s46, %s60
    %p62 = scmp.eq.s32.totalorder %s15, 0
    %p63 = por %p61, %p62
    %s65 = sadd.s32 %s64, 1
    %p68 = scmp.eq.s32.totalorder %s9, 1
    %p69 = scmp.ne.s32.totalorder %s64, %s66
    %p70 = scmp.eq.s32.totalorder %s9, 0
    %p71 = por %p69, %p70
    %p72 = scmp.ne.s32.totalorder %s64, %s66
    %p73 = scmp.eq.s32.totalorder %s14, 1
    %p74 = por %p72, %p73
    %p75 = scmp.ne.s32.totalorder %s66, %s67
    %p76 = scmp.eq.s32.totalorder %s14, 0
    %p77 = por %p75, %p76
    %p78 = scmp.ne.s32.totalorder %s66, %s67
    %p79 = scmp.eq.s32.totalorder %s15, 1
    %p80 = por %p78, %p79
    %p82 = scmp.ne.s32.totalorder %s67, %s81
    %p83 = scmp.eq.s32.totalorder %s15, 0
    %p84 = por %p82, %p83
    %s85 = ssub.s32 %s9, %s16
    %p86 = scmp.eq.s32.totalorder %s85, 0
    %s88 = sadd.s32 %s87, 1
    %s89 = scalar_select %p86, %s87, %s88
    %p92 = pneg %p86
    %p93 = scmp.eq.s32.totalorder %s9, 1
    %p94 = por %p92, %p93
    %p95 = scmp.ne.s32.totalorder %s87, %s90
    %p96 = scmp.eq.s32.totalorder %s9, 0
    %p97 = por %p95, %p96
    %p98 = scmp.ne.s32.totalorder %s87, %s90
    %p99 = scmp.eq.s32.totalorder %s14, 1
    %p100 = por %p98, %p99
    %p101 = scmp.ne.s32.totalorder %s90, %s91
    %p102 = scmp.eq.s32.totalorder %s14, 0
    %p103 = por %p101, %p102
    %p104 = scmp.ne.s32.totalorder %s90, %s91
    %p105 = scmp.eq.s32.totalorder %s15, 1
    %p106 = por %p104, %p105
    %p108 = scmp.ne.s32.totalorder %s91, %s107
    %p109 = scmp.eq.s32.totalorder %s15, 0
    %p110 = por %p108, %p109
    %p111 = scmp.le.s32.totalorder 1, %s9
    %p112 = scmp.lt.s32.totalorder %s9, 3
    %p113 = pnand %p111, %p112
    %p114 = pneg %p113
    // Predicated region
    $region9: #{patch_discriminator_forward.6} parent=5 // pred_check
      _
    $region10: #{patch_discriminator_forward.6} parent=5 // pred_check_branch
      %116 = sbr.rel (%p113) target = $region12
    $region11: #{patch_discriminator_forward.6} parent=5 // pred_region
      %s117 = ssub.s32 %s9, 1
      // Predicated region
      $region13: #{patch_discriminator_forward.6} parent=11 // pred_check
        %p118 = pneg %p56
      $region14: #{patch_discriminator_forward.6} parent=11 // pred_check_branch
        %120 = sbr.rel (%p118) target = $region16
      $region15: #{patch_discriminator_forward.6} parent=11 // pred_region
        _
      $region16: #{patch_discriminator_forward.6} parent=11 // pred_fallthru
        _
      // Predicated region
      $region17: #{patch_discriminator_forward.6} parent=11 // pred_check
        %p121 = pneg %p77
      $region18: #{patch_discriminator_forward.6} parent=11 // pred_check_branch
        %123 = sbr.rel (%p121) target = $region20
      $region19: #{patch_discriminator_forward.6} parent=11 // pred_region
        _
      $region20: #{patch_discriminator_forward.6} parent=11 // pred_fallthru
        _
    $region12: #{patch_discriminator_forward.6} parent=5 // pred_fallthru
      _
    %p124 = scmp.lt.s32.totalorder %s9, 2
    // Predicated region
    $region21: #{patch_discriminator_forward.6} parent=5 // pred_check
      %p125 = pneg %p124
    $region22: #{patch_discriminator_forward.6} parent=5 // pred_check_branch
      %127 = sbr.rel (%p125) target = $region24
    $region23: #{patch_discriminator_forward.6} parent=5 // pred_region
      // Predicated region
      $region25: #{patch_discriminator_forward.6} parent=23 // pred_check
        %p128 = pneg %p29
      $region26: #{patch_discriminator_forward.6} parent=23 // pred_check_branch
        %130 = sbr.rel (%p128) target = $region28
      $region27: #{patch_discriminator_forward.6} parent=23 // pred_region
        %p131 = scmp.lt.s32.totalorder %s9, 1
        %s132 = scalar_select %p131, %s9, 1
        %s133 = smul.addr %s132, 32
        %s134 = smul.addr %s133, 4
        %s135 = scalar_lea.vmem %s0, %s134
      $region28: #{patch_discriminator_forward.6} parent=23 // pred_fallthru
        _
    $region24: #{patch_discriminator_forward.6} parent=5 // pred_fallthru
      _
    %p136 = scmp.le.s32.totalorder 1, %s9
    %p137 = scmp.lt.s32.totalorder %s9, 3
    %p138 = pnand %p136, %p137
    %p139 = pneg %p138
    // Predicated region
    $region29: #{patch_discriminator_forward.6} parent=5 // pred_check
      _
    $region30: #{patch_discriminator_forward.6} parent=5 // pred_check_branch
      %141 = sbr.rel (%p138) target = $region32
    $region31: #{patch_discriminator_forward.6} parent=5 // pred_region
      %s142 = ssub.s32 %s9, 1
      %p143 = scmp.lt.s32.totalorder %s14, 1
      %s144 = scalar_select %p143, %s14, 1
      %s145 = smul.addr %s144, 32
      %s146 = smul.addr %s145, 4
      %s147 = scalar_lea.vmem %s0, %s146
      %p148 = pneg %p35
      %p149 = pneg %p32
      %p150 = pneg %p56
      %p151 = pneg %p53
      %p152 = pneg %p77
      %p153 = pneg %p74
      %p154 = pneg %p103
      %p155 = pneg %p100
      %p156 = scmp.lt.s32.totalorder %s14, 1
      %s157 = scalar_select %p156, %s14, 1
      %s158 = smul.addr %s157, 32
      %s159 = smul.addr %s158, 4
      %s160 = scalar_lea.vmem %s3, %s159
      %p161 = scmp.lt.s32.totalorder %s14, 1
      %s162 = scalar_select %p161, %s14, 1
      %s163 = smul.addr %s162, 32
      %s164 = smul.addr %s163, 4
      %s165 = scalar_lea.vmem %s0, %s164
      %p166 = scmp.lt.s32.totalorder %s14, 1
      %s167 = scalar_select %p166, %s14, 1
      %s168 = smul.addr %s167, 32
      %s169 = smul.addr %s168, 4
      %s170 = scalar_lea.vmem %s3, %s169
      %v172 = vld [vmem:[%s165] sm:$0xf]
      %v173 = vld [vmem:[%s165 + $0x4] sm:$0xf]
      %v174 = vld [vmem:[%s165 + $0x8] sm:$0xf]
      %v175 = vld [vmem:[%s165 + $0xc] sm:$0xf]
      %v176 = vld [vmem:[%s165 + $0x10] sm:$0xf]
      %v177 = vld [vmem:[%s165 + $0x14] sm:$0xf]
      %v178 = vld [vmem:[%s165 + $0x18] sm:$0xf]
      %v179 = vld [vmem:[%s165 + $0x1c] sm:$0xf]
      %v180 = vld [vmem:[%s165 + $0x20] sm:$0xf]
      %v181 = vld [vmem:[%s165 + $0x24] sm:$0xf]
      %v182 = vld [vmem:[%s165 + $0x28] sm:$0xf]
      %v183 = vld [vmem:[%s165 + $0x2c] sm:$0xf]
      %v184 = vld [vmem:[%s165 + $0x30] sm:$0xf]
      %v185 = vld [vmem:[%s165 + $0x34] sm:$0xf]
      %v186 = vld [vmem:[%s165 + $0x38] sm:$0xf]
      %v187 = vld [vmem:[%s165 + $0x3c] sm:$0xf]
      %v188 = vld [vmem:[%s165 + $0x40] sm:$0xf]
      %v189 = vld [vmem:[%s165 + $0x44] sm:$0xf]
      %v190 = vld [vmem:[%s165 + $0x48] sm:$0xf]
      %v191 = vld [vmem:[%s165 + $0x4c] sm:$0xf]
      %v192 = vld [vmem:[%s165 + $0x50] sm:$0xf]
      %v193 = vld [vmem:[%s165 + $0x54] sm:$0xf]
      %v194 = vld [vmem:[%s165 + $0x58] sm:$0xf]
      %v195 = vld [vmem:[%s165 + $0x5c] sm:$0xf]
      %v196 = vld [vmem:[%s165 + $0x60] sm:$0xf]
      %v197 = vld [vmem:[%s165 + $0x64] sm:$0xf]
      %v198 = vld [vmem:[%s165 + $0x68] sm:$0xf]
      %v199 = vld [vmem:[%s165 + $0x6c] sm:$0xf]
      %v200 = vld [vmem:[%s165 + $0x70] sm:$0xf]
      %v201 = vld [vmem:[%s165 + $0x74] sm:$0xf]
      %v202 = vld [vmem:[%s165 + $0x78] sm:$0xf]
      %v203 = vld [vmem:[%s165 + $0x7c] sm:$0xf]
      %v204 = vld [vmem:[%s1] sm:$0xf]
      %v205 = vld [vmem:[%s1 + $0x4] sm:$0xf]
      %v206 = vld [vmem:[%s1 + $0x8] sm:$0xf]
      %v207 = vld [vmem:[%s1 + $0xc] sm:$0xf]
      %v208 = vld [vmem:[%s1 + $0x10] sm:$0xf]
      %v209 = vld [vmem:[%s1 + $0x14] sm:$0xf]
      %v210 = vld [vmem:[%s1 + $0x18] sm:$0xf]
      %v211 = vld [vmem:[%s1 + $0x1c] sm:$0xf]
      %v212 = vld [vmem:[%s2] sm:$0x1]
      %v214 = vperm.slane %v212, 0
      %v248 = vunpack.c.l.b16 %v172
      %v249 = vunpack.c.l.b16 %v173
      %v250 = vunpack.c.l.b16 %v174
      %v251 = vunpack.c.l.b16 %v175
      %v252 = vunpack.c.l.b16 %v176
      %v253 = vunpack.c.l.b16 %v177
      %v254 = vunpack.c.l.b16 %v178
      %v255 = vunpack.c.l.b16 %v179
      %v256 = vunpack.c.l.b16 %v180
      %v257 = vunpack.c.l.b16 %v181
      %v258 = vunpack.c.l.b16 %v182
      %v259 = vunpack.c.l.b16 %v183
      %v260 = vunpack.c.l.b16 %v184
      %v261 = vunpack.c.l.b16 %v185
      %v262 = vunpack.c.l.b16 %v186
      %v263 = vunpack.c.l.b16 %v187
      %v264 = vunpack.c.l.b16 %v188
      %v265 = vunpack.c.l.b16 %v189
      %v266 = vunpack.c.l.b16 %v190
      %v267 = vunpack.c.l.b16 %v191
      %v268 = vunpack.c.l.b16 %v192
      %v269 = vunpack.c.l.b16 %v193
      %v270 = vunpack.c.l.b16 %v194
      %v271 = vunpack.c.l.b16 %v195
      %v272 = vunpack.c.l.b16 %v196
      %v273 = vunpack.c.l.b16 %v197
      %v274 = vunpack.c.l.b16 %v198
      %v275 = vunpack.c.l.b16 %v199
      %v276 = vunpack.c.l.b16 %v200
      %v277 = vunpack.c.l.b16 %v201
      %v278 = vunpack.c.l.b16 %v202
      %v279 = vunpack.c.l.b16 %v203
      %v280 = vpack.c.b16 %v249, %v248
      %v281 = vpack.c.b16 %v251, %v250
      %v282 = vpack.c.b16 %v253, %v252
      %v283 = vpack.c.b16 %v255, %v254
      %v284 = vpack.c.b16 %v257, %v256
      %v285 = vpack.c.b16 %v259, %v258
      %v286 = vpack.c.b16 %v261, %v260
      %v287 = vpack.c.b16 %v263, %v262
      %v288 = vpack.c.b16 %v265, %v264
      %v289 = vpack.c.b16 %v267, %v266
      %v290 = vpack.c.b16 %v269, %v268
      %v291 = vpack.c.b16 %v271, %v270
      %v292 = vpack.c.b16 %v273, %v272
      %v293 = vpack.c.b16 %v275, %v274
      %v294 = vpack.c.b16 %v277, %v276
      %v295 = vpack.c.b16 %v279, %v278
      %v304 = vunpack.c.l.b16 %v204
      %v305 = vunpack.c.l.b16 %v205
      %v306 = vunpack.c.l.b16 %v206
      %v307 = vunpack.c.l.b16 %v207
      %v308 = vunpack.c.l.b16 %v208
      %v309 = vunpack.c.l.b16 %v209
      %v310 = vunpack.c.l.b16 %v210
      %v311 = vunpack.c.l.b16 %v211
      %v312 = vpack.c.b16 %v305, %v304
      %v313 = vpack.c.b16 %v307, %v306
      %v314 = vpack.c.b16 %v309, %v308
      %v315 = vpack.c.b16 %v311, %v310
      %vm320 = vcmask 523264
      %v322 = vsel %vm320, %v280, 0
      %v325 = vsel %vm320, %v281, 0
      %v328 = vsel %vm320, %v282, 0
      %v331 = vsel %vm320, %v283, 0
      %v334 = vsel %vm320, %v284, 0
      %v337 = vsel %vm320, %v285, 0
      %v340 = vsel %vm320, %v286, 0
      %v343 = vsel %vm320, %v287, 0
      %v346 = vsel %vm320, %v288, 0
      %v349 = vsel %vm320, %v289, 0
      %v352 = vsel %vm320, %v290, 0
      %v355 = vsel %vm320, %v291, 0
      %v358 = vsel %vm320, %v292, 0
      %v361 = vsel %vm320, %v293, 0
      %v364 = vsel %vm320, %v294, 0
      %v367 = vsel %vm320, %v295, 0
      %369 = vmatpush.bf16.msra.mxu0 0
      %370 = vmatpush.bf16.msra.mxu0 0
      %371 = vmatpush.bf16.msra.mxu0 0
      %372 = vmatpush.bf16.msra.mxu0 0
      %373 = vmatpush.bf16.msra.mxu0 %v315
      %374 = vmatpush.bf16.msra.mxu0 %v314
      %375 = vmatpush.bf16.msra.mxu0 %v313
      %376 = vmatpush.bf16.msra.mxu0 %v312
      %377 = vmatmul.bf16.gmra.mxu0 %v322
      %v378 = vpop.f32.mrf.mxu0
      %v379 = vadd.f32 %v214, %v378
      %v380 = vpop.f32.mrf.mxu0
      %v381 = vadd.f32 %v214, %v380
      %382 = vmatmul.bf16.gmra.mxu0 %v325
      %v383 = vpop.f32.mrf.mxu0
      %v384 = vadd.f32 %v214, %v383
      %v385 = vpop.f32.mrf.mxu0
      %v386 = vadd.f32 %v214, %v385
      %387 = vmatmul.bf16.gmra.mxu0 %v328
      %v388 = vpop.f32.mrf.mxu0
      %v389 = vadd.f32 %v214, %v388
      %v390 = vpop.f32.mrf.mxu0
      %v391 = vadd.f32 %v214, %v390
      %392 = vmatmul.bf16.gmra.mxu0 %v331
      %v393 = vpop.f32.mrf.mxu0
      %v394 = vadd.f32 %v214, %v393
      %v395 = vpop.f32.mrf.mxu0
      %v396 = vadd.f32 %v214, %v395
      %397 = vmatmul.bf16.gmra.mxu0 %v334
      %v398 = vpop.f32.mrf.mxu0
      %v399 = vadd.f32 %v214, %v398
      %v400 = vpop.f32.mrf.mxu0
      %v401 = vadd.f32 %v214, %v400
      %402 = vmatmul.bf16.gmra.mxu0 %v337
      %v403 = vpop.f32.mrf.mxu0
      %v404 = vadd.f32 %v214, %v403
      %v405 = vpop.f32.mrf.mxu0
      %v406 = vadd.f32 %v214, %v405
      %407 = vmatmul.bf16.gmra.mxu0 %v340
      %v408 = vpop.f32.mrf.mxu0
      %v409 = vadd.f32 %v214, %v408
      %v410 = vpop.f32.mrf.mxu0
      %v411 = vadd.f32 %v214, %v410
      %412 = vmatmul.bf16.gmra.mxu0 %v343
      %v413 = vpop.f32.mrf.mxu0
      %v414 = vadd.f32 %v214, %v413
      %v415 = vpop.f32.mrf.mxu0
      %v416 = vadd.f32 %v214, %v415
      %417 = vmatmul.bf16.gmra.mxu0 %v346
      %v418 = vpop.f32.mrf.mxu0
      %v419 = vadd.f32 %v214, %v418
      %v420 = vpop.f32.mrf.mxu0
      %v421 = vadd.f32 %v214, %v420
      %422 = vmatmul.bf16.gmra.mxu0 %v349
      %v423 = vpop.f32.mrf.mxu0
      %v424 = vadd.f32 %v214, %v423
      %v425 = vpop.f32.mrf.mxu0
      %v426 = vadd.f32 %v214, %v425
      %427 = vmatmul.bf16.gmra.mxu0 %v352
      %v428 = vpop.f32.mrf.mxu0
      %v429 = vadd.f32 %v214, %v428
      %v430 = vpop.f32.mrf.mxu0
      %v431 = vadd.f32 %v214, %v430
      %432 = vmatmul.bf16.gmra.mxu0 %v355
      %v433 = vpop.f32.mrf.mxu0
      %v434 = vadd.f32 %v214, %v433
      %v435 = vpop.f32.mrf.mxu0
      %v436 = vadd.f32 %v214, %v435
      %437 = vmatmul.bf16.gmra.mxu0 %v358
      %v438 = vpop.f32.mrf.mxu0
      %v439 = vadd.f32 %v214, %v438
      %v440 = vpop.f32.mrf.mxu0
      %v441 = vadd.f32 %v214, %v440
      %442 = vmatmul.bf16.gmra.mxu0 %v361
      %v443 = vpop.f32.mrf.mxu0
      %v444 = vadd.f32 %v214, %v443
      %v445 = vpop.f32.mrf.mxu0
      %v446 = vadd.f32 %v214, %v445
      %447 = vmatmul.bf16.gmra.mxu0 %v364
      %v448 = vpop.f32.mrf.mxu0
      %v449 = vadd.f32 %v214, %v448
      %v450 = vpop.f32.mrf.mxu0
      %v451 = vadd.f32 %v214, %v450
      %452 = vmatmul.bf16.gmra.mxu0 %v367
      %v453 = vpop.f32.mrf.mxu0
      %v454 = vadd.f32 %v214, %v453
      %v455 = vpop.f32.mrf.mxu0
      %v456 = vadd.f32 %v214, %v455
      %457 = vdwg.mxu0
      %vm458 = vcmask 64512
      %v459 = vsel %vm458, %v379, 0.0
      %v460 = vsel %vm458, %v381, 0.0
      %v461 = vadd.f32 %v459, %v460
      %v462 = vsel %vm458, %v384, 0.0
      %v463 = vadd.f32 %v461, %v462
      %v464 = vsel %vm458, %v386, 0.0
      %v465 = vadd.f32 %v463, %v464
      %v466 = vsel %vm458, %v389, 0.0
      %v467 = vadd.f32 %v465, %v466
      %v468 = vsel %vm458, %v391, 0.0
      %v469 = vadd.f32 %v467, %v468
      %v470 = vsel %vm458, %v394, 0.0
      %v471 = vadd.f32 %v469, %v470
      %v472 = vsel %vm458, %v396, 0.0
      %v473 = vadd.f32 %v471, %v472
      %v474 = vsel %vm458, %v399, 0.0
      %v475 = vadd.f32 %v473, %v474
      %v476 = vsel %vm458, %v401, 0.0
      %v477 = vadd.f32 %v475, %v476
      %v478 = vsel %vm458, %v404, 0.0
      %v479 = vadd.f32 %v477, %v478
      %v480 = vsel %vm458, %v406, 0.0
      %v481 = vadd.f32 %v479, %v480
      %v482 = vsel %vm458, %v409, 0.0
      %v483 = vadd.f32 %v481, %v482
      %v484 = vsel %vm458, %v411, 0.0
      %v485 = vadd.f32 %v483, %v484
      %v486 = vsel %vm458, %v414, 0.0
      %v487 = vadd.f32 %v485, %v486
      %v488 = vsel %vm458, %v416, 0.0
      %v489 = vadd.f32 %v487, %v488
      %v490 = vsel %vm458, %v419, 0.0
      %v491 = vadd.f32 %v489, %v490
      %v492 = vsel %vm458, %v421, 0.0
      %v493 = vadd.f32 %v491, %v492
      %v494 = vsel %vm458, %v424, 0.0
      %v495 = vadd.f32 %v493, %v494
      %v496 = vsel %vm458, %v426, 0.0
      %v497 = vadd.f32 %v495, %v496
      %v498 = vsel %vm458, %v429, 0.0
      %v499 = vadd.f32 %v497, %v498
      %v500 = vsel %vm458, %v431, 0.0
      %v501 = vadd.f32 %v499, %v500
      %v502 = vsel %vm458, %v434, 0.0
      %v503 = vadd.f32 %v501, %v502
      %v504 = vsel %vm458, %v436, 0.0
      %v505 = vadd.f32 %v503, %v504
      %v506 = vsel %vm458, %v439, 0.0
      %v507 = vadd.f32 %v505, %v506
      %v508 = vsel %vm458, %v441, 0.0
      %v509 = vadd.f32 %v507, %v508
      %v510 = vsel %vm458, %v444, 0.0
      %v511 = vadd.f32 %v509, %v510
      %v512 = vsel %vm458, %v446, 0.0
      %v513 = vadd.f32 %v511, %v512
      %v514 = vsel %vm458, %v449, 0.0
      %v515 = vadd.f32 %v513, %v514
      %v516 = vsel %vm458, %v451, 0.0
      %v517 = vadd.f32 %v515, %v516
      %v518 = vsel %vm458, %v454, 0.0
      %v519 = vadd.f32 %v517, %v518
      %v520 = vsel %vm458, %v456, 0.0
      %v521 = vadd.f32 %v519, %v520
      %v522 = vrot.slane %v521, 4
      %v523 = vadd.f32 %v521, %v522
      %v524 = vrot.slane %v523, 2
      %v525 = vadd.f32 %v523, %v524
      %v526 = vrot.slane %v525, 1
      %v527 = vadd.f32 %v525, %v526
      %v528 = vrcp.pop 256.0
      %v529 = vmul.f32 256.0, %v528
      %v530 = vsub.f32 1.0, %v529
      %v531 = vmul.f32 %v528, %v530
      %v532 = vadd.f32 %v528, %v531
      %vm533 = vweird.f32 %v528
      %v534 = vsel %vm533, %v528, %v532
      %v535 = vmul.f32 %v527, %v534
      %v536 = vsub.f32 %v379, %v535
      %v537 = vsub.f32 %v381, %v535
      %v538 = vsub.f32 %v384, %v535
      %v539 = vsub.f32 %v386, %v535
      %v540 = vsub.f32 %v389, %v535
      %v541 = vsub.f32 %v391, %v535
      %v542 = vsub.f32 %v394, %v535
      %v543 = vsub.f32 %v396, %v535
      %v544 = vsub.f32 %v399, %v535
      %v545 = vsub.f32 %v401, %v535
      %v546 = vsub.f32 %v404, %v535
      %v547 = vsub.f32 %v406, %v535
      %v548 = vsub.f32 %v409, %v535
      %v549 = vsub.f32 %v411, %v535
      %v550 = vsub.f32 %v414, %v535
      %v551 = vsub.f32 %v416, %v535
      %v552 = vsub.f32 %v419, %v535
      %v553 = vsub.f32 %v421, %v535
      %v554 = vsub.f32 %v424, %v535
      %v555 = vsub.f32 %v426, %v535
      %v556 = vsub.f32 %v429, %v535
      %v557 = vsub.f32 %v431, %v535
      %v558 = vsub.f32 %v434, %v535
      %v559 = vsub.f32 %v436, %v535
      %v560 = vsub.f32 %v439, %v535
      %v561 = vsub.f32 %v441, %v535
      %v562 = vsub.f32 %v444, %v535
      %v563 = vsub.f32 %v446, %v535
      %v564 = vsub.f32 %v449, %v535
      %v565 = vsub.f32 %v451, %v535
      %v566 = vsub.f32 %v454, %v535
      %v567 = vsub.f32 %v456, %v535
      %v568 = vmul.f32 %v536, %v536
      %v569 = vmul.f32 %v537, %v537
      %v570 = vmul.f32 %v538, %v538
      %v571 = vmul.f32 %v539, %v539
      %v572 = vmul.f32 %v540, %v540
      %v573 = vmul.f32 %v541, %v541
      %v574 = vmul.f32 %v542, %v542
      %v575 = vmul.f32 %v543, %v543
      %v576 = vmul.f32 %v544, %v544
      %v577 = vmul.f32 %v545, %v545
      %v578 = vmul.f32 %v546, %v546
      %v579 = vmul.f32 %v547, %v547
      %v580 = vmul.f32 %v548, %v548
      %v581 = vmul.f32 %v549, %v549
      %v582 = vmul.f32 %v550, %v550
      %v583 = vmul.f32 %v551, %v551
      %v584 = vmul.f32 %v552, %v552
      %v585 = vmul.f32 %v553, %v553
      %v586 = vmul.f32 %v554, %v554
      %v587 = vmul.f32 %v555, %v555
      %v588 = vmul.f32 %v556, %v556
      %v589 = vmul.f32 %v557, %v557
      %v590 = vmul.f32 %v558, %v558
      %v591 = vmul.f32 %v559, %v559
      %v592 = vmul.f32 %v560, %v560
      %v593 = vmul.f32 %v561, %v561
      %v594 = vmul.f32 %v562, %v562
      %v595 = vmul.f32 %v563, %v563
      %v596 = vmul.f32 %v564, %v564
      %v597 = vmul.f32 %v565, %v565
      %v598 = vmul.f32 %v566, %v566
      %v599 = vmul.f32 %v567, %v567
      %v600 = vsel %vm458, %v568, 0.0
      %v601 = vsel %vm458, %v569, 0.0
      %v602 = vadd.f32 %v600, %v601
      %v603 = vsel %vm458, %v570, 0.0
      %v604 = vadd.f32 %v602, %v603
      %v605 = vsel %vm458, %v571, 0.0
      %v606 = vadd.f32 %v604, %v605
      %v607 = vsel %vm458, %v572, 0.0
      %v608 = vadd.f32 %v606, %v607
      %v609 = vsel %vm458, %v573, 0.0
      %v610 = vadd.f32 %v608, %v609
      %v611 = vsel %vm458, %v574, 0.0
      %v612 = vadd.f32 %v610, %v611
      %v613 = vsel %vm458, %v575, 0.0
      %v614 = vadd.f32 %v612, %v613
      %v615 = vsel %vm458, %v576, 0.0
      %v616 = vadd.f32 %v614, %v615
      %v617 = vsel %vm458, %v577, 0.0
      %v618 = vadd.f32 %v616, %v617
      %v619 = vsel %vm458, %v578, 0.0
      %v620 = vadd.f32 %v618, %v619
      %v621 = vsel %vm458, %v579, 0.0
      %v622 = vadd.f32 %v620, %v621
      %v623 = vsel %vm458, %v580, 0.0
      %v624 = vadd.f32 %v622, %v623
      %v625 = vsel %vm458, %v581, 0.0
      %v626 = vadd.f32 %v624, %v625
      %v627 = vsel %vm458, %v582, 0.0
      %v628 = vadd.f32 %v626, %v627
      %v629 = vsel %vm458, %v583, 0.0
      %v630 = vadd.f32 %v628, %v629
      %v631 = vsel %vm458, %v584, 0.0
      %v632 = vadd.f32 %v630, %v631
      %v633 = vsel %vm458, %v585, 0.0
      %v634 = vadd.f32 %v632, %v633
      %v635 = vsel %vm458, %v586, 0.0
      %v636 = vadd.f32 %v634, %v635
      %v637 = vsel %vm458, %v587, 0.0
      %v638 = vadd.f32 %v636, %v637
      %v639 = vsel %vm458, %v588, 0.0
      %v640 = vadd.f32 %v638, %v639
      %v641 = vsel %vm458, %v589, 0.0
      %v642 = vadd.f32 %v640, %v641
      %v643 = vsel %vm458, %v590, 0.0
      %v644 = vadd.f32 %v642, %v643
      %v645 = vsel %vm458, %v591, 0.0
      %v646 = vadd.f32 %v644, %v645
      %v647 = vsel %vm458, %v592, 0.0
      %v648 = vadd.f32 %v646, %v647
      %v649 = vsel %vm458, %v593, 0.0
      %v650 = vadd.f32 %v648, %v649
      %v651 = vsel %vm458, %v594, 0.0
      %v652 = vadd.f32 %v650, %v651
      %v653 = vsel %vm458, %v595, 0.0
      %v654 = vadd.f32 %v652, %v653
      %v655 = vsel %vm458, %v596, 0.0
      %v656 = vadd.f32 %v654, %v655
      %v657 = vsel %vm458, %v597, 0.0
      %v658 = vadd.f32 %v656, %v657
      %v659 = vsel %vm458, %v598, 0.0
      %v660 = vadd.f32 %v658, %v659
      %v661 = vsel %vm458, %v599, 0.0
      %v662 = vadd.f32 %v660, %v661
      %v663 = vrot.slane %v662, 4
      %v664 = vadd.f32 %v662, %v663
      %v665 = vrot.slane %v664, 2
      %v666 = vadd.f32 %v664, %v665
      %v667 = vrot.slane %v666, 1
      %v668 = vadd.f32 %v666, %v667
      %v669 = vmul.f32 %v668, %v534
      %v670 = vadd.f32 %v669, 1e-05
      %v671 = vrsqrt.pop %v670
      %v672 = vmul.f32 %v671, %v670
      %v673 = vmul.f32 %v672, %v671
      %v674 = vmul.f32 0.5, %v673
      %v675 = vsub.f32 1.5, %v674
      %v676 = vmul.f32 %v671, %v675
      %vm677 = vweird.f32 %v670
      %vm678 = vweird.f32 %v671
      %vm679 = vmor %vm677, %vm678
      %v680 = vsel %vm679, %v671, %v676
      %v681 = vmul.f32 %v536, %v680
      %v682 = vmul.f32 %v537, %v680
      %v683 = vmul.f32 %v538, %v680
      %v684 = vmul.f32 %v539, %v680
      %v685 = vmul.f32 %v540, %v680
      %v686 = vmul.f32 %v541, %v680
      %v687 = vmul.f32 %v542, %v680
      %v688 = vmul.f32 %v543, %v680
      %v689 = vmul.f32 %v544, %v680
      %v690 = vmul.f32 %v545, %v680
      %v691 = vmul.f32 %v546, %v680
      %v692 = vmul.f32 %v547, %v680
      %v693 = vmul.f32 %v548, %v680
      %v694 = vmul.f32 %v549, %v680
      %v695 = vmul.f32 %v550, %v680
      %v696 = vmul.f32 %v551, %v680
      %v697 = vmul.f32 %v552, %v680
      %v698 = vmul.f32 %v553, %v680
      %v699 = vmul.f32 %v554, %v680
      %v700 = vmul.f32 %v555, %v680
      %v701 = vmul.f32 %v556, %v680
      %v702 = vmul.f32 %v557, %v680
      %v703 = vmul.f32 %v558, %v680
      %v704 = vmul.f32 %v559, %v680
      %v705 = vmul.f32 %v560, %v680
      %v706 = vmul.f32 %v561, %v680
      %v707 = vmul.f32 %v562, %v680
      %v708 = vmul.f32 %v563, %v680
      %v709 = vmul.f32 %v564, %v680
      %v710 = vmul.f32 %v565, %v680
      %v711 = vmul.f32 %v566, %v680
      %v712 = vmul.f32 %v567, %v680
      %vm713 = vcmp.ge.f32.partialorder %v681, 0.0
      %vm714 = vcmp.ge.f32.partialorder %v682, 0.0
      %vm715 = vcmp.ge.f32.partialorder %v683, 0.0
      %vm716 = vcmp.ge.f32.partialorder %v684, 0.0
      %vm717 = vcmp.ge.f32.partialorder %v685, 0.0
      %vm718 = vcmp.ge.f32.partialorder %v686, 0.0
      %vm719 = vcmp.ge.f32.partialorder %v687, 0.0
      %vm720 = vcmp.ge.f32.partialorder %v688, 0.0
      %vm721 = vcmp.ge.f32.partialorder %v689, 0.0
      %vm722 = vcmp.ge.f32.partialorder %v690, 0.0
      %vm723 = vcmp.ge.f32.partialorder %v691, 0.0
      %vm724 = vcmp.ge.f32.partialorder %v692, 0.0
      %vm725 = vcmp.ge.f32.partialorder %v693, 0.0
      %vm726 = vcmp.ge.f32.partialorder %v694, 0.0
      %vm727 = vcmp.ge.f32.partialorder %v695, 0.0
      %vm728 = vcmp.ge.f32.partialorder %v696, 0.0
      %vm729 = vcmp.ge.f32.partialorder %v697, 0.0
      %vm730 = vcmp.ge.f32.partialorder %v698, 0.0
      %vm731 = vcmp.ge.f32.partialorder %v699, 0.0
      %vm732 = vcmp.ge.f32.partialorder %v700, 0.0
      %vm733 = vcmp.ge.f32.partialorder %v701, 0.0
      %vm734 = vcmp.ge.f32.partialorder %v702, 0.0
      %vm735 = vcmp.ge.f32.partialorder %v703, 0.0
      %vm736 = vcmp.ge.f32.partialorder %v704, 0.0
      %vm737 = vcmp.ge.f32.partialorder %v705, 0.0
      %vm738 = vcmp.ge.f32.partialorder %v706, 0.0
      %vm739 = vcmp.ge.f32.partialorder %v707, 0.0
      %vm740 = vcmp.ge.f32.partialorder %v708, 0.0
      %vm741 = vcmp.ge.f32.partialorder %v709, 0.0
      %vm742 = vcmp.ge.f32.partialorder %v710, 0.0
      %vm743 = vcmp.ge.f32.partialorder %v711, 0.0
      %vm744 = vcmp.ge.f32.partialorder %v712, 0.0
      %v745 = vmul.f32 %v681, 0.2
      %v746 = vmul.f32 %v682, 0.2
      %v747 = vmul.f32 %v683, 0.2
      %v748 = vmul.f32 %v684, 0.2
      %v749 = vmul.f32 %v685, 0.2
      %v750 = vmul.f32 %v686, 0.2
      %v751 = vmul.f32 %v687, 0.2
      %v752 = vmul.f32 %v688, 0.2
      %v753 = vmul.f32 %v689, 0.2
      %v754 = vmul.f32 %v690, 0.2
      %v755 = vmul.f32 %v691, 0.2
      %v756 = vmul.f32 %v692, 0.2
      %v757 = vmul.f32 %v693, 0.2
      %v758 = vmul.f32 %v694, 0.2
      %v759 = vmul.f32 %v695, 0.2
      %v760 = vmul.f32 %v696, 0.2
      %v761 = vmul.f32 %v697, 0.2
      %v762 = vmul.f32 %v698, 0.2
      %v763 = vmul.f32 %v699, 0.2
      %v764 = vmul.f32 %v700, 0.2
      %v765 = vmul.f32 %v701, 0.2
      %v766 = vmul.f32 %v702, 0.2
      %v767 = vmul.f32 %v703, 0.2
      %v768 = vmul.f32 %v704, 0.2
      %v769 = vmul.f32 %v705, 0.2
      %v770 = vmul.f32 %v706, 0.2
      %v771 = vmul.f32 %v707, 0.2
      %v772 = vmul.f32 %v708, 0.2
      %v773 = vmul.f32 %v709, 0.2
      %v774 = vmul.f32 %v710, 0.2
      %v775 = vmul.f32 %v711, 0.2
      %v776 = vmul.f32 %v712, 0.2
      %v777 = vsel %vm713, %v681, %v745
      %v778 = vsel %vm714, %v682, %v746
      %v779 = vsel %vm715, %v683, %v747
      %v780 = vsel %vm716, %v684, %v748
      %v781 = vsel %vm717, %v685, %v749
      %v782 = vsel %vm718, %v686, %v750
      %v783 = vsel %vm719, %v687, %v751
      %v784 = vsel %vm720, %v688, %v752
      %v785 = vsel %vm721, %v689, %v753
      %v786 = vsel %vm722, %v690, %v754
      %v787 = vsel %vm723, %v691, %v755
      %v788 = vsel %vm724, %v692, %v756
      %v789 = vsel %vm725, %v693, %v757
      %v790 = vsel %vm726, %v694, %v758
      %v791 = vsel %vm727, %v695, %v759
      %v792 = vsel %vm728, %v696, %v760
      %v793 = vsel %vm729, %v697, %v761
      %v794 = vsel %vm730, %v698, %v762
      %v795 = vsel %vm731, %v699, %v763
      %v796 = vsel %vm732, %v700, %v764
      %v797 = vsel %vm733, %v701, %v765
      %v798 = vsel %vm734, %v702, %v766
      %v799 = vsel %vm735, %v703, %v767
      %v800 = vsel %vm736, %v704, %v768
      %v801 = vsel %vm737, %v705, %v769
      %v802 = vsel %vm738, %v706, %v770
      %v803 = vsel %vm739, %v707, %v771
      %v804 = vsel %vm740, %v708, %v772
      %v805 = vsel %vm741, %v709, %v773
      %v806 = vsel %vm742, %v710, %v774
      %v807 = vsel %vm743, %v711, %v775
      %v808 = vsel %vm744, %v712, %v776
      %v809 = vpack.c.bf16 %v777, %v777
      %v810 = vpack.c.bf16 %v778, %v778
      %v811 = vpack.c.bf16 %v779, %v779
      %v812 = vpack.c.bf16 %v780, %v780
      %v813 = vpack.c.bf16 %v781, %v781
      %v814 = vpack.c.bf16 %v782, %v782
      %v815 = vpack.c.bf16 %v783, %v783
      %v816 = vpack.c.bf16 %v784, %v784
      %v817 = vpack.c.bf16 %v785, %v785
      %v818 = vpack.c.bf16 %v786, %v786
      %v819 = vpack.c.bf16 %v787, %v787
      %v820 = vpack.c.bf16 %v788, %v788
      %v821 = vpack.c.bf16 %v789, %v789
      %v822 = vpack.c.bf16 %v790, %v790
      %v823 = vpack.c.bf16 %v791, %v791
      %v824 = vpack.c.bf16 %v792, %v792
      %v825 = vpack.c.bf16 %v793, %v793
      %v826 = vpack.c.bf16 %v794, %v794
      %v827 = vpack.c.bf16 %v795, %v795
      %v828 = vpack.c.bf16 %v796, %v796
      %v829 = vpack.c.bf16 %v797, %v797
      %v830 = vpack.c.bf16 %v798, %v798
      %v831 = vpack.c.bf16 %v799, %v799
      %v832 = vpack.c.bf16 %v800, %v800
      %v833 = vpack.c.bf16 %v801, %v801
      %v834 = vpack.c.bf16 %v802, %v802
      %v835 = vpack.c.bf16 %v803, %v803
      %v836 = vpack.c.bf16 %v804, %v804
      %v837 = vpack.c.bf16 %v805, %v805
      %v838 = vpack.c.bf16 %v806, %v806
      %v839 = vpack.c.bf16 %v807, %v807
      %v840 = vpack.c.bf16 %v808, %v808
      %vm841 = vcmask 60416
      %842 = vst.msk [vmem:[%s170] sm:$0xf] %vm841, %v809
      %843 = vst.msk [vmem:[%s170 + $0x4] sm:$0xf] %vm841, %v810
      %844 = vst.msk [vmem:[%s170 + $0x8] sm:$0xf] %vm841, %v811
      %845 = vst.msk [vmem:[%s170 + $0xc] sm:$0xf] %vm841, %v812
      %846 = vst.msk [vmem:[%s170 + $0x10] sm:$0xf] %vm841, %v813
      %847 = vst.msk [vmem:[%s170 + $0x14] sm:$0xf] %vm841, %v814
      %848 = vst.msk [vmem:[%s170 + $0x18] sm:$0xf] %vm841, %v815
      %849 = vst.msk [vmem:[%s170 + $0x1c] sm:$0xf] %vm841, %v816
      %850 = vst.msk [vmem:[%s170 + $0x20] sm:$0xf] %vm841, %v817
      %851 = vst.msk [vmem:[%s170 + $0x24] sm:$0xf] %vm841, %v818
      %852 = vst.msk [vmem:[%s170 + $0x28] sm:$0xf] %vm841, %v819
      %853 = vst.msk [vmem:[%s170 + $0x2c] sm:$0xf] %vm841, %v820
      %854 = vst.msk [vmem:[%s170 + $0x30] sm:$0xf] %vm841, %v821
      %855 = vst.msk [vmem:[%s170 + $0x34] sm:$0xf] %vm841, %v822
      %856 = vst.msk [vmem:[%s170 + $0x38] sm:$0xf] %vm841, %v823
      %857 = vst.msk [vmem:[%s170 + $0x3c] sm:$0xf] %vm841, %v824
      %858 = vst.msk [vmem:[%s170 + $0x40] sm:$0xf] %vm841, %v825
      %859 = vst.msk [vmem:[%s170 + $0x44] sm:$0xf] %vm841, %v826
      %860 = vst.msk [vmem:[%s170 + $0x48] sm:$0xf] %vm841, %v827
      %861 = vst.msk [vmem:[%s170 + $0x4c] sm:$0xf] %vm841, %v828
      %862 = vst.msk [vmem:[%s170 + $0x50] sm:$0xf] %vm841, %v829
      %863 = vst.msk [vmem:[%s170 + $0x54] sm:$0xf] %vm841, %v830
      %864 = vst.msk [vmem:[%s170 + $0x58] sm:$0xf] %vm841, %v831
      %865 = vst.msk [vmem:[%s170 + $0x5c] sm:$0xf] %vm841, %v832
      %866 = vst.msk [vmem:[%s170 + $0x60] sm:$0xf] %vm841, %v833
      %867 = vst.msk [vmem:[%s170 + $0x64] sm:$0xf] %vm841, %v834
      %868 = vst.msk [vmem:[%s170 + $0x68] sm:$0xf] %vm841, %v835
      %869 = vst.msk [vmem:[%s170 + $0x6c] sm:$0xf] %vm841, %v836
      %870 = vst.msk [vmem:[%s170 + $0x70] sm:$0xf] %vm841, %v837
      %871 = vst.msk [vmem:[%s170 + $0x74] sm:$0xf] %vm841, %v838
      %872 = vst.msk [vmem:[%s170 + $0x78] sm:$0xf] %vm841, %v839
      %873 = vst.msk [vmem:[%s170 + $0x7c] sm:$0xf] %vm841, %v840
      %p874 = scmp.lt.s32.totalorder %s14, 1
      %s875 = scalar_select %p874, %s14, 1
      %s876 = smul.addr %s875, 32
      %s877 = smul.addr %s876, 4
      %s878 = scalar_lea.vmem %s3, %s877
      // Predicated region
      $region33: #{patch_discriminator_forward.6} parent=31 // pred_check
        %p879 = pneg %p100
      $region34: #{patch_discriminator_forward.6} parent=31 // pred_check_branch
        %881 = sbr.rel (%p879) target = $region36
      $region35: #{patch_discriminator_forward.6} parent=31 // pred_region
        _
      $region36: #{patch_discriminator_forward.6} parent=31 // pred_fallthru
        _
    $region32: #{patch_discriminator_forward.6} parent=5 // pred_fallthru
      _
    %p882 = scmp.le.s32.totalorder 2, %s9
    // Predicated region
    $region37: #{patch_discriminator_forward.6} parent=5 // pred_check
      %p883 = pneg %p882
    $region38: #{patch_discriminator_forward.6} parent=5 // pred_check_branch
      %885 = sbr.rel (%p883) target = $region40
    $region39: #{patch_discriminator_forward.6} parent=5 // pred_region
      %s886 = ssub.s32 %s9, 2
      // Predicated region
      $region41: #{patch_discriminator_forward.6} parent=39 // pred_check
        %p887 = pneg %p106
      $region42: #{patch_discriminator_forward.6} parent=39 // pred_check_branch
        %889 = sbr.rel (%p887) target = $region44
      $region43: #{patch_discriminator_forward.6} parent=39 // pred_region
        %p890 = scmp.lt.s32.totalorder %s15, 1
        %s891 = scalar_select %p890, %s15, 1
        %s892 = smul.addr %s891, 32
        %s893 = smul.addr %s892, 4
        %s894 = scalar_lea.vmem %s3, %s893
      $region44: #{patch_discriminator_forward.6} parent=39 // pred_fallthru
        _
    $region40: #{patch_discriminator_forward.6} parent=5 // pred_fallthru
      _
  $region6: #{patch_discriminator_forward.6} parent=0 // loop_footer
    %s13 = sadd.s32 1, %s9
  $region7: #{patch_discriminator_forward.6} parent=0 // loop_footer_branch
    %8 = sbr.rel target = $region3
  $region8: #{patch_discriminator_forward.6} parent=0 // loop_exit
    _

// kernel: patch_discriminator_forward.7
$region0: #{patch_discriminator_forward.7}
  #allocation0 [shape = 'u32[]', space=smem, size = 0x4, offset = 0x4, fixed_abs, tag = 'smem constant byte address 0x4 - core index']
  #allocation1 [shape = 'u32[72,128]{1,0:T(1,128)}', space=vmem, size = 0x9000, scoped, tag = 'internal scratch']
  %s0 = inlined_call_operand.vmem [shape: bf16[2,64,128], index: 0, kind: input, shape index: {}]
  %s1 = inlined_call_operand.vmem [shape: bf16[128,16], index: 1, kind: input, shape index: {}]
  %s2 = inlined_call_operand.vmem [shape: f32[1,16], index: 2, kind: input, shape index: {}]
  %s3 = inlined_call_operand.vmem [shape: bf16[2,64,16], index: 3, kind: output, shape index: {}]
  %s4 = sld [smem:[#allocation0]]
  $region45: #{patch_discriminator_forward.7} parent=0
    _
  %s6 = ssub.s32 1, %s4
  %s7 = scalar_select 0, %s6, %s4
  loop: start=0, step=1, limit=4
  $region2: #{patch_discriminator_forward.7} parent=0 // loop_pre_header
    _
  $region3: #{patch_discriminator_forward.7} parent=0 // loop_header
    %s9 = sphi 0, %s13
    %p10 = scmp.ge.s32.totalorder %s9, 4
    %s19 = sphi 0, %s21
    %s22 = sphi 0, %s19
    %s23 = sphi 0, %s22
    %s39 = sphi 0, %s23
    %s43 = sphi 0, %s43
    %s45 = sphi 0, %s43
    %s46 = sphi 0, %s45
    %s60 = sphi 0, %s46
    %s64 = sphi 0, %s64
    %s66 = sphi 0, %s64
    %s67 = sphi 0, %s66
    %s81 = sphi 0, %s67
    %s87 = sphi 0, %s89
    %s90 = sphi 0, %s87
    %s91 = sphi 0, %s90
    %s107 = sphi 0, %s91
  $region4: #{patch_discriminator_forward.7} parent=0 // loop_header_branch
    %12 = sbr.rel (%p10) target = $region8
  $region5: #{patch_discriminator_forward.7} parent=0 // loop_body
    %s14 = ssub.s32 %s9, 1
    %s15 = ssub.s32 %s9, 2
    %s16 = sadd.s32 %s9, 1
    %s17 = ssub.s32 %s9, %s16
    %p18 = scmp.eq.s32.totalorder %s17, 0
    %s20 = sadd.s32 %s19, 1
    %s21 = scalar_select %p18, %s19, %s20
    %p24 = pneg %p18
    %p25 = scmp.eq.s32.totalorder %s9, 1
    %p26 = por %p24, %p25
    %p27 = scmp.ne.s32.totalorder %s19, %s22
    %p28 = scmp.eq.s32.totalorder %s9, 0
    %p29 = por %p27, %p28
    %p30 = scmp.ne.s32.totalorder %s19, %s22
    %p31 = scmp.eq.s32.totalorder %s14, 1
    %p32 = por %p30, %p31
    %p33 = scmp.ne.s32.totalorder %s22, %s23
    %p34 = scmp.eq.s32.totalorder %s14, 0
    %p35 = por %p33, %p34
    %p36 = scmp.ne.s32.totalorder %s22, %s23
    %p37 = scmp.eq.s32.totalorder %s15, 1
    %p38 = por %p36, %p37
    %p40 = scmp.ne.s32.totalorder %s23, %s39
    %p41 = scmp.eq.s32.totalorder %s15, 0
    %p42 = por %p40, %p41
    %s44 = sadd.s32 %s43, 1
    %p47 = scmp.eq.s32.totalorder %s9, 1
    %p48 = scmp.ne.s32.totalorder %s43, %s45
    %p49 = scmp.eq.s32.totalorder %s9, 0
    %p50 = por %p48, %p49
    %p51 = scmp.ne.s32.totalorder %s43, %s45
    %p52 = scmp.eq.s32.totalorder %s14, 1
    %p53 = por %p51, %p52
    %p54 = scmp.ne.s32.totalorder %s45, %s46
    %p55 = scmp.eq.s32.totalorder %s14, 0
    %p56 = por %p54, %p55
    %p57 = scmp.ne.s32.totalorder %s45, %s46
    %p58 = scmp.eq.s32.totalorder %s15, 1
    %p59 = por %p57, %p58
    %p61 = scmp.ne.s32.totalorder %s46, %s60
    %p62 = scmp.eq.s32.totalorder %s15, 0
    %p63 = por %p61, %p62
    %s65 = sadd.s32 %s64, 1
    %p68 = scmp.eq.s32.totalorder %s9, 1
    %p69 = scmp.ne.s32.totalorder %s64, %s66
    %p70 = scmp.eq.s32.totalorder %s9, 0
    %p71 = por %p69, %p70
    %p72 = scmp.ne.s32.totalorder %s64, %s66
    %p73 = scmp.eq.s32.totalorder %s14, 1
    %p74 = por %p72, %p73
    %p75 = scmp.ne.s32.totalorder %s66, %s67
    %p76 = scmp.eq.s32.totalorder %s14, 0
    %p77 = por %p75, %p76
    %p78 = scmp.ne.s32.totalorder %s66, %s67
    %p79 = scmp.eq.s32.totalorder %s15, 1
    %p80 = por %p78, %p79
    %p82 = scmp.ne.s32.totalorder %s67, %s81
    %p83 = scmp.eq.s32.totalorder %s15, 0
    %p84 = por %p82, %p83
    %s85 = ssub.s32 %s9, %s16
    %p86 = scmp.eq.s32.totalorder %s85, 0
    %s88 = sadd.s32 %s87, 1
    %s89 = scalar_select %p86, %s87, %s88
    %p92 = pneg %p86
    %p93 = scmp.eq.s32.totalorder %s9, 1
    %p94 = por %p92, %p93
    %p95 = scmp.ne.s32.totalorder %s87, %s90
    %p96 = scmp.eq.s32.totalorder %s9, 0
    %p97 = por %p95, %p96
    %p98 = scmp.ne.s32.totalorder %s87, %s90
    %p99 = scmp.eq.s32.totalorder %s14, 1
    %p100 = por %p98, %p99
    %p101 = scmp.ne.s32.totalorder %s90, %s91
    %p102 = scmp.eq.s32.totalorder %s14, 0
    %p103 = por %p101, %p102
    %p104 = scmp.ne.s32.totalorder %s90, %s91
    %p105 = scmp.eq.s32.totalorder %s15, 1
    %p106 = por %p104, %p105
    %p108 = scmp.ne.s32.totalorder %s91, %s107
    %p109 = scmp.eq.s32.totalorder %s15, 0
    %p110 = por %p108, %p109
    %p111 = scmp.le.s32.totalorder 1, %s9
    %p112 = scmp.lt.s32.totalorder %s9, 3
    %p113 = pnand %p111, %p112
    %p114 = pneg %p113
    // Predicated region
    $region9: #{patch_discriminator_forward.7} parent=5 // pred_check
      _
    $region10: #{patch_discriminator_forward.7} parent=5 // pred_check_branch
      %116 = sbr.rel (%p113) target = $region12
    $region11: #{patch_discriminator_forward.7} parent=5 // pred_region
      %s117 = ssub.s32 %s9, 1
      // Predicated region
      $region13: #{patch_discriminator_forward.7} parent=11 // pred_check
        %p118 = pneg %p56
      $region14: #{patch_discriminator_forward.7} parent=11 // pred_check_branch
        %120 = sbr.rel (%p118) target = $region16
      $region15: #{patch_discriminator_forward.7} parent=11 // pred_region
        _
      $region16: #{patch_discriminator_forward.7} parent=11 // pred_fallthru
        _
      // Predicated region
      $region17: #{patch_discriminator_forward.7} parent=11 // pred_check
        %p121 = pneg %p77
      $region18: #{patch_discriminator_forward.7} parent=11 // pred_check_branch
        %123 = sbr.rel (%p121) target = $region20
      $region19: #{patch_discriminator_forward.7} parent=11 // pred_region
        _
      $region20: #{patch_discriminator_forward.7} parent=11 // pred_fallthru
        _
    $region12: #{patch_discriminator_forward.7} parent=5 // pred_fallthru
      _
    %p124 = scmp.lt.s32.totalorder %s9, 2
    // Predicated region
    $region21: #{patch_discriminator_forward.7} parent=5 // pred_check
      %p125 = pneg %p124
    $region22: #{patch_discriminator_forward.7} parent=5 // pred_check_branch
      %127 = sbr.rel (%p125) target = $region24
    $region23: #{patch_discriminator_forward.7} parent=5 // pred_region
      // Predicated region
      $region25: #{patch_discriminator_forward.7} parent=23 // pred_check
        %p128 = pneg %p29
      $region26: #{patch_discriminator_forward.7} parent=23 // pred_check_branch
        %130 = sbr.rel (%p128) target = $region28
      $region27: #{patch_discriminator_forward.7} parent=23 // pred_region
        %p131 = scmp.lt.s32.totalorder %s9, 1
        %s132 = scalar_select %p131, %s9, 1
        %s133 = smul.addr %s132, 8
        %s134 = smul.addr %s133, 4
        %s135 = scalar_lea.vmem %s0, %s134
      $region28: #{patch_discriminator_forward.7} parent=23 // pred_fallthru
        _
    $region24: #{patch_discriminator_forward.7} parent=5 // pred_fallthru
      _
    %p136 = scmp.le.s32.totalorder 1, %s9
    %p137 = scmp.lt.s32.totalorder %s9, 3
    %p138 = pnand %p136, %p137
    %p139 = pneg %p138
    // Predicated region
    $region29: #{patch_discriminator_forward.7} parent=5 // pred_check
      _
    $region30: #{patch_discriminator_forward.7} parent=5 // pred_check_branch
      %141 = sbr.rel (%p138) target = $region32
    $region31: #{patch_discriminator_forward.7} parent=5 // pred_region
      %s142 = ssub.s32 %s9, 1
      %p143 = scmp.lt.s32.totalorder %s14, 1
      %s144 = scalar_select %p143, %s14, 1
      %s145 = smul.addr %s144, 8
      %s146 = smul.addr %s145, 4
      %s147 = scalar_lea.vmem %s0, %s146
      %p148 = pneg %p35
      %p149 = pneg %p32
      %p150 = pneg %p56
      %p151 = pneg %p53
      %p152 = pneg %p77
      %p153 = pneg %p74
      %p154 = pneg %p103
      %p155 = pneg %p100
      %p156 = scmp.lt.s32.totalorder %s14, 1
      %s157 = scalar_select %p156, %s14, 1
      %s158 = smul.addr %s157, 8
      %s159 = smul.addr %s158, 4
      %s160 = scalar_lea.vmem %s3, %s159
      %p161 = scmp.lt.s32.totalorder %s14, 1
      %s162 = scalar_select %p161, %s14, 1
      %s163 = smul.addr %s162, 8
      %s164 = smul.addr %s163, 4
      %s165 = scalar_lea.vmem %s0, %s164
      %p166 = scmp.lt.s32.totalorder %s14, 1
      %s167 = scalar_select %p166, %s14, 1
      %s168 = smul.addr %s167, 8
      %s169 = smul.addr %s168, 4
      %s170 = scalar_lea.vmem %s3, %s169
      %v171 = vld [vmem:[%s165] sm:$0xf]
      %v172 = vld [vmem:[%s165 + $0x4] sm:$0xf]
      %v173 = vld [vmem:[%s165 + $0x8] sm:$0xf]
      %v174 = vld [vmem:[%s165 + $0xc] sm:$0xf]
      %v175 = vld [vmem:[%s165 + $0x10] sm:$0xf]
      %v176 = vld [vmem:[%s165 + $0x14] sm:$0xf]
      %v177 = vld [vmem:[%s165 + $0x18] sm:$0xf]
      %v178 = vld [vmem:[%s165 + $0x1c] sm:$0xf]
      %v179 = vld [vmem:[%s1] sm:$0xf]
      %v180 = vld [vmem:[%s1 + $0x4] sm:$0xf]
      %v181 = vld [vmem:[%s1 + $0x8] sm:$0xf]
      %v182 = vld [vmem:[%s1 + $0xc] sm:$0xf]
      %v183 = vld [vmem:[%s1 + $0x10] sm:$0xf]
      %v184 = vld [vmem:[%s1 + $0x14] sm:$0xf]
      %v185 = vld [vmem:[%s1 + $0x18] sm:$0xf]
      %v186 = vld [vmem:[%s1 + $0x1c] sm:$0xf]
      %v187 = vld [vmem:[%s1 + $0x20] sm:$0xf]
      %v188 = vld [vmem:[%s1 + $0x24] sm:$0xf]
      %v189 = vld [vmem:[%s1 + $0x28] sm:$0xf]
      %v190 = vld [vmem:[%s1 + $0x2c] sm:$0xf]
      %v191 = vld [vmem:[%s1 + $0x30] sm:$0xf]
      %v192 = vld [vmem:[%s1 + $0x34] sm:$0xf]
      %v193 = vld [vmem:[%s1 + $0x38] sm:$0xf]
      %v194 = vld [vmem:[%s1 + $0x3c] sm:$0xf]
      %v195 = vld [vmem:[%s2] sm:$0x1]
      %v197 = vperm.slane %v195, 0
      %v207 = vunpack.c.l.b16 %v171
      %v208 = vunpack.c.l.b16 %v172
      %v209 = vunpack.c.l.b16 %v173
      %v210 = vunpack.c.l.b16 %v174
      %v211 = vunpack.c.l.b16 %v175
      %v212 = vunpack.c.l.b16 %v176
      %v213 = vunpack.c.l.b16 %v177
      %v214 = vunpack.c.l.b16 %v178
      %v215 = vpack.c.b16 %v208, %v207
      %v216 = vpack.c.b16 %v210, %v209
      %v217 = vpack.c.b16 %v212, %v211
      %v218 = vpack.c.b16 %v214, %v213
      %v239 = vunpack.c.l.b16 %v179
      %v240 = vunpack.c.l.b16 %v180
      %v241 = vunpack.c.l.b16 %v181
      %v242 = vunpack.c.l.b16 %v182
      %v243 = vunpack.c.l.b16 %v183
      %v244 = vunpack.c.l.b16 %v184
      %v245 = vunpack.c.l.b16 %v185
      %v246 = vunpack.c.l.b16 %v186
      %v247 = vunpack.c.l.b16 %v187
      %v248 = vunpack.c.l.b16 %v188
      %v249 = vunpack.c.l.b16 %v189
      %v250 = vunpack.c.l.b16 %v190
      %v251 = vunpack.c.l.b16 %v191
      %v252 = vunpack.c.l.b16 %v192
      %v253 = vunpack.c.l.b16 %v193
      %v254 = vunpack.c.l.b16 %v194
      %v255 = vpack.c.b16 %v240, %v239
      %v256 = vpack.c.b16 %v242, %v241
      %v257 = vpack.c.b16 %v244, %v243
      %v258 = vpack.c.b16 %v246, %v245
      %v259 = vpack.c.b16 %v248, %v247
      %v260 = vpack.c.b16 %v250, %v249
      %v261 = vpack.c.b16 %v252, %v251
      %v262 = vpack.c.b16 %v254, %v253
      %271 = vmatpush.bf16.msra.mxu0 %v262
      %272 = vmatpush.bf16.msra.mxu0 %v261
      %273 = vmatpush.bf16.msra.mxu0 %v260
      %274 = vmatpush.bf16.msra.mxu0 %v259
      %275 = vmatpush.bf16.msra.mxu0 %v258
      %276 = vmatpush.bf16.msra.mxu0 %v257
      %277 = vmatpush.bf16.msra.mxu0 %v256
      %278 = vmatpush.bf16.msra.mxu0 %v255
      %279 = vmatmul.bf16.gmra.mxu0 %v215
      %v280 = vpop.f32.mrf.mxu0
      %v281 = vadd.f32 %v197, %v280
      %v282 = vpop.f32.mrf.mxu0
      %v283 = vadd.f32 %v197, %v282
      %284 = vmatmul.bf16.gmra.mxu0 %v216
      %v285 = vpop.f32.mrf.mxu0
      %v286 = vadd.f32 %v197, %v285
      %v287 = vpop.f32.mrf.mxu0
      %v288 = vadd.f32 %v197, %v287
      %289 = vmatmul.bf16.gmra.mxu0 %v217
      %v290 = vpop.f32.mrf.mxu0
      %v291 = vadd.f32 %v197, %v290
      %v292 = vpop.f32.mrf.mxu0
      %v293 = vadd.f32 %v197, %v292
      %294 = vmatmul.bf16.gmra.mxu0 %v218
      %v295 = vpop.f32.mrf.mxu0
      %v296 = vadd.f32 %v197, %v295
      %v297 = vpop.f32.mrf.mxu0
      %v298 = vadd.f32 %v197, %v297
      %299 = vdwg.mxu0
      %vm300 = vcmask 130048
      %v301 = vsel %vm300, %v281, 0.0
      %v302 = vsel %vm300, %v283, 0.0
      %v303 = vadd.f32 %v301, %v302
      %v304 = vsel %vm300, %v286, 0.0
      %v305 = vadd.f32 %v303, %v304
      %v306 = vsel %vm300, %v288, 0.0
      %v307 = vadd.f32 %v305, %v306
      %v308 = vsel %vm300, %v291, 0.0
      %v309 = vadd.f32 %v307, %v308
      %v310 = vsel %vm300, %v293, 0.0
      %v311 = vadd.f32 %v309, %v310
      %v312 = vsel %vm300, %v296, 0.0
      %v313 = vadd.f32 %v311, %v312
      %v314 = vsel %vm300, %v298, 0.0
      %v315 = vadd.f32 %v313, %v314
      %v316 = vrot.slane %v315, 4
      %v317 = vadd.f32 %v315, %v316
      %v318 = vrot.slane %v317, 2
      %v319 = vadd.f32 %v317, %v318
      %v320 = vrot.slane %v319, 1
      %v321 = vadd.f32 %v319, %v320
      %v322 = vrcp.pop 64.0
      %v323 = vmul.f32 64.0, %v322
      %v324 = vsub.f32 1.0, %v323
      %v325 = vmul.f32 %v322, %v324
      %v326 = vadd.f32 %v322, %v325
      %vm327 = vweird.f32 %v322
      %v328 = vsel %vm327, %v322, %v326
      %v329 = vmul.f32 %v321, %v328
      %v330 = vsub.f32 %v281, %v329
      %v331 = vsub.f32 %v283, %v329
      %v332 = vsub.f32 %v286, %v329
      %v333 = vsub.f32 %v288, %v329
      %v334 = vsub.f32 %v291, %v329
      %v335 = vsub.f32 %v293, %v329
      %v336 = vsub.f32 %v296, %v329
      %v337 = vsub.f32 %v298, %v329
      %v338 = vmul.f32 %v330, %v330
      %v339 = vmul.f32 %v331, %v331
      %v340 = vmul.f32 %v332, %v332
      %v341 = vmul.f32 %v333, %v333
      %v342 = vmul.f32 %v334, %v334
      %v343 = vmul.f32 %v335, %v335
      %v344 = vmul.f32 %v336, %v336
      %v345 = vmul.f32 %v337, %v337
      %v346 = vsel %vm300, %v338, 0.0
      %v347 = vsel %vm300, %v339, 0.0
      %v348 = vadd.f32 %v346, %v347
      %v349 = vsel %vm300, %v340, 0.0
      %v350 = vadd.f32 %v348, %v349
      %v351 = vsel %vm300, %v341, 0.0
      %v352 = vadd.f32 %v350, %v351
      %v353 = vsel %vm300, %v342, 0.0
      %v354 = vadd.f32 %v352, %v353
      %v355 = vsel %vm300, %v343, 0.0
      %v356 = vadd.f32 %v354, %v355
      %v357 = vsel %vm300, %v344, 0.0
      %v358 = vadd.f32 %v356, %v357
      %v359 = vsel %vm300, %v345, 0.0
      %v360 = vadd.f32 %v358, %v359
      %v361 = vrot.slane %v360, 4
      %v362 = vadd.f32 %v360, %v361
      %v363 = vrot.slane %v362, 2
      %v364 = vadd.f32 %v362, %v363
      %v365 = vrot.slane %v364, 1
      %v366 = vadd.f32 %v364, %v365
      %v367 = vmul.f32 %v366, %v328
      %v368 = vadd.f32 %v367, 1e-05
      %v369 = vrsqrt.pop %v368
      %v370 = vmul.f32 %v369, %v368
      %v371 = vmul.f32 %v370, %v369
      %v372 = vmul.f32 0.5, %v371
      %v373 = vsub.f32 1.5, %v372
      %v374 = vmul.f32 %v369, %v373
      %vm375 = vweird.f32 %v368
      %vm376 = vweird.f32 %v369
      %vm377 = vmor %vm375, %vm376
      %v378 = vsel %vm377, %v369, %v374
      %v379 = vmul.f32 %v330, %v378
      %v380 = vmul.f32 %v331, %v378
      %v381 = vmul.f32 %v332, %v378
      %v382 = vmul.f32 %v333, %v378
      %v383 = vmul.f32 %v334, %v378
      %v384 = vmul.f32 %v335, %v378
      %v385 = vmul.f32 %v336, %v378
      %v386 = vmul.f32 %v337, %v378
      %vm387 = vcmp.ge.f32.partialorder %v379, 0.0
      %vm388 = vcmp.ge.f32.partialorder %v380, 0.0
      %vm389 = vcmp.ge.f32.partialorder %v381, 0.0
      %vm390 = vcmp.ge.f32.partialorder %v382, 0.0
      %vm391 = vcmp.ge.f32.partialorder %v383, 0.0
      %vm392 = vcmp.ge.f32.partialorder %v384, 0.0
      %vm393 = vcmp.ge.f32.partialorder %v385, 0.0
      %vm394 = vcmp.ge.f32.partialorder %v386, 0.0
      %v395 = vmul.f32 %v379, 0.2
      %v396 = vmul.f32 %v380, 0.2
      %v397 = vmul.f32 %v381, 0.2
      %v398 = vmul.f32 %v382, 0.2
      %v399 = vmul.f32 %v383, 0.2
      %v400 = vmul.f32 %v384, 0.2
      %v401 = vmul.f32 %v385, 0.2
      %v402 = vmul.f32 %v386, 0.2
      %v403 = vsel %vm387, %v379, %v395
      %v404 = vsel %vm388, %v380, %v396
      %v405 = vsel %vm389, %v381, %v397
      %v406 = vsel %vm390, %v382, %v398
      %v407 = vsel %vm391, %v383, %v399
      %v408 = vsel %vm392, %v384, %v400
      %v409 = vsel %vm393, %v385, %v401
      %v410 = vsel %vm394, %v386, %v402
      %v411 = vpack.c.bf16 %v403, %v403
      %v412 = vpack.c.bf16 %v404, %v404
      %v413 = vpack.c.bf16 %v405, %v405
      %v414 = vpack.c.bf16 %v406, %v406
      %v415 = vpack.c.bf16 %v407, %v407
      %v416 = vpack.c.bf16 %v408, %v408
      %v417 = vpack.c.bf16 %v409, %v409
      %v418 = vpack.c.bf16 %v410, %v410
      %vm419 = vcmask 125952
      %420 = vst.msk [vmem:[%s170] sm:$0xf] %vm419, %v411
      %421 = vst.msk [vmem:[%s170 + $0x4] sm:$0xf] %vm419, %v412
      %422 = vst.msk [vmem:[%s170 + $0x8] sm:$0xf] %vm419, %v413
      %423 = vst.msk [vmem:[%s170 + $0xc] sm:$0xf] %vm419, %v414
      %424 = vst.msk [vmem:[%s170 + $0x10] sm:$0xf] %vm419, %v415
      %425 = vst.msk [vmem:[%s170 + $0x14] sm:$0xf] %vm419, %v416
      %426 = vst.msk [vmem:[%s170 + $0x18] sm:$0xf] %vm419, %v417
      %427 = vst.msk [vmem:[%s170 + $0x1c] sm:$0xf] %vm419, %v418
      %p428 = scmp.lt.s32.totalorder %s14, 1
      %s429 = scalar_select %p428, %s14, 1
      %s430 = smul.addr %s429, 8
      %s431 = smul.addr %s430, 4
      %s432 = scalar_lea.vmem %s3, %s431
      // Predicated region
      $region33: #{patch_discriminator_forward.7} parent=31 // pred_check
        %p433 = pneg %p100
      $region34: #{patch_discriminator_forward.7} parent=31 // pred_check_branch
        %435 = sbr.rel (%p433) target = $region36
      $region35: #{patch_discriminator_forward.7} parent=31 // pred_region
        _
      $region36: #{patch_discriminator_forward.7} parent=31 // pred_fallthru
        _
    $region32: #{patch_discriminator_forward.7} parent=5 // pred_fallthru
      _
    %p436 = scmp.le.s32.totalorder 2, %s9
    // Predicated region
    $region37: #{patch_discriminator_forward.7} parent=5 // pred_check
      %p437 = pneg %p436
    $region38: #{patch_discriminator_forward.7} parent=5 // pred_check_branch
      %439 = sbr.rel (%p437) target = $region40
    $region39: #{patch_discriminator_forward.7} parent=5 // pred_region
      %s440 = ssub.s32 %s9, 2
      // Predicated region
      $region41: #{patch_discriminator_forward.7} parent=39 // pred_check
        %p441 = pneg %p106
      $region42: #{patch_discriminator_forward.7} parent=39 // pred_check_branch
        %443 = sbr.rel (%p441) target = $region44
      $region43: #{patch_discriminator_forward.7} parent=39 // pred_region
        %p444 = scmp.lt.s32.totalorder %s15, 1
        %s445 = scalar_select %p444, %s15, 1
        %s446 = smul.addr %s445, 8
        %s447 = smul.addr %s446, 4
        %s448 = scalar_lea.vmem %s3, %s447
      $region44: #{patch_discriminator_forward.7} parent=39 // pred_fallthru
        _
    $region40: #{patch_discriminator_forward.7} parent=5 // pred_fallthru
      _
  $region6: #{patch_discriminator_forward.7} parent=0 // loop_footer
    %s13 = sadd.s32 1, %s9
  $region7: #{patch_discriminator_forward.7} parent=0 // loop_footer_branch
    %8 = sbr.rel target = $region3
  $region8: #{patch_discriminator_forward.7} parent=0 // loop_exit
    _

// kernel: patch_discriminator_forward.8
$region0: #{patch_discriminator_forward.8}
  #allocation0 [shape = 'u32[]', space=smem, size = 0x4, offset = 0x4, fixed_abs, tag = 'smem constant byte address 0x4 - core index']
  #allocation1 [shape = 'u32[72,128]{1,0:T(1,128)}', space=vmem, size = 0x9000, scoped, tag = 'internal scratch']
  %s0 = inlined_call_operand.vmem [shape: bf16[2,25,256], index: 0, kind: input, shape index: {}]
  %s1 = inlined_call_operand.vmem [shape: bf16[256,32], index: 1, kind: input, shape index: {}]
  %s2 = inlined_call_operand.vmem [shape: f32[1,32], index: 2, kind: input, shape index: {}]
  %s3 = inlined_call_operand.vmem [shape: bf16[2,25,32], index: 3, kind: output, shape index: {}]
  %s4 = sld [smem:[#allocation0]]
  $region45: #{patch_discriminator_forward.8} parent=0
    _
  %s6 = ssub.s32 1, %s4
  %s7 = scalar_select 0, %s6, %s4
  loop: start=0, step=1, limit=4
  $region2: #{patch_discriminator_forward.8} parent=0 // loop_pre_header
    _
  $region3: #{patch_discriminator_forward.8} parent=0 // loop_header
    %s9 = sphi 0, %s13
    %p10 = scmp.ge.s32.totalorder %s9, 4
    %s19 = sphi 0, %s21
    %s22 = sphi 0, %s19
    %s23 = sphi 0, %s22
    %s39 = sphi 0, %s23
    %s43 = sphi 0, %s43
    %s45 = sphi 0, %s43
    %s46 = sphi 0, %s45
    %s60 = sphi 0, %s46
    %s64 = sphi 0, %s64
    %s66 = sphi 0, %s64
    %s67 = sphi 0, %s66
    %s81 = sphi 0, %s67
    %s87 = sphi 0, %s89
    %s90 = sphi 0, %s87
    %s91 = sphi 0, %s90
    %s107 = sphi 0, %s91
  $region4: #{patch_discriminator_forward.8} parent=0 // loop_header_branch
    %12 = sbr.rel (%p10) target = $region8
  $region5: #{patch_discriminator_forward.8} parent=0 // loop_body
    %s14 = ssub.s32 %s9, 1
    %s15 = ssub.s32 %s9, 2
    %s16 = sadd.s32 %s9, 1
    %s17 = ssub.s32 %s9, %s16
    %p18 = scmp.eq.s32.totalorder %s17, 0
    %s20 = sadd.s32 %s19, 1
    %s21 = scalar_select %p18, %s19, %s20
    %p24 = pneg %p18
    %p25 = scmp.eq.s32.totalorder %s9, 1
    %p26 = por %p24, %p25
    %p27 = scmp.ne.s32.totalorder %s19, %s22
    %p28 = scmp.eq.s32.totalorder %s9, 0
    %p29 = por %p27, %p28
    %p30 = scmp.ne.s32.totalorder %s19, %s22
    %p31 = scmp.eq.s32.totalorder %s14, 1
    %p32 = por %p30, %p31
    %p33 = scmp.ne.s32.totalorder %s22, %s23
    %p34 = scmp.eq.s32.totalorder %s14, 0
    %p35 = por %p33, %p34
    %p36 = scmp.ne.s32.totalorder %s22, %s23
    %p37 = scmp.eq.s32.totalorder %s15, 1
    %p38 = por %p36, %p37
    %p40 = scmp.ne.s32.totalorder %s23, %s39
    %p41 = scmp.eq.s32.totalorder %s15, 0
    %p42 = por %p40, %p41
    %s44 = sadd.s32 %s43, 1
    %p47 = scmp.eq.s32.totalorder %s9, 1
    %p48 = scmp.ne.s32.totalorder %s43, %s45
    %p49 = scmp.eq.s32.totalorder %s9, 0
    %p50 = por %p48, %p49
    %p51 = scmp.ne.s32.totalorder %s43, %s45
    %p52 = scmp.eq.s32.totalorder %s14, 1
    %p53 = por %p51, %p52
    %p54 = scmp.ne.s32.totalorder %s45, %s46
    %p55 = scmp.eq.s32.totalorder %s14, 0
    %p56 = por %p54, %p55
    %p57 = scmp.ne.s32.totalorder %s45, %s46
    %p58 = scmp.eq.s32.totalorder %s15, 1
    %p59 = por %p57, %p58
    %p61 = scmp.ne.s32.totalorder %s46, %s60
    %p62 = scmp.eq.s32.totalorder %s15, 0
    %p63 = por %p61, %p62
    %s65 = sadd.s32 %s64, 1
    %p68 = scmp.eq.s32.totalorder %s9, 1
    %p69 = scmp.ne.s32.totalorder %s64, %s66
    %p70 = scmp.eq.s32.totalorder %s9, 0
    %p71 = por %p69, %p70
    %p72 = scmp.ne.s32.totalorder %s64, %s66
    %p73 = scmp.eq.s32.totalorder %s14, 1
    %p74 = por %p72, %p73
    %p75 = scmp.ne.s32.totalorder %s66, %s67
    %p76 = scmp.eq.s32.totalorder %s14, 0
    %p77 = por %p75, %p76
    %p78 = scmp.ne.s32.totalorder %s66, %s67
    %p79 = scmp.eq.s32.totalorder %s15, 1
    %p80 = por %p78, %p79
    %p82 = scmp.ne.s32.totalorder %s67, %s81
    %p83 = scmp.eq.s32.totalorder %s15, 0
    %p84 = por %p82, %p83
    %s85 = ssub.s32 %s9, %s16
    %p86 = scmp.eq.s32.totalorder %s85, 0
    %s88 = sadd.s32 %s87, 1
    %s89 = scalar_select %p86, %s87, %s88
    %p92 = pneg %p86
    %p93 = scmp.eq.s32.totalorder %s9, 1
    %p94 = por %p92, %p93
    %p95 = scmp.ne.s32.totalorder %s87, %s90
    %p96 = scmp.eq.s32.totalorder %s9, 0
    %p97 = por %p95, %p96
    %p98 = scmp.ne.s32.totalorder %s87, %s90
    %p99 = scmp.eq.s32.totalorder %s14, 1
    %p100 = por %p98, %p99
    %p101 = scmp.ne.s32.totalorder %s90, %s91
    %p102 = scmp.eq.s32.totalorder %s14, 0
    %p103 = por %p101, %p102
    %p104 = scmp.ne.s32.totalorder %s90, %s91
    %p105 = scmp.eq.s32.totalorder %s15, 1
    %p106 = por %p104, %p105
    %p108 = scmp.ne.s32.totalorder %s91, %s107
    %p109 = scmp.eq.s32.totalorder %s15, 0
    %p110 = por %p108, %p109
    %p111 = scmp.le.s32.totalorder 1, %s9
    %p112 = scmp.lt.s32.totalorder %s9, 3
    %p113 = pnand %p111, %p112
    %p114 = pneg %p113
    // Predicated region
    $region9: #{patch_discriminator_forward.8} parent=5 // pred_check
      _
    $region10: #{patch_discriminator_forward.8} parent=5 // pred_check_branch
      %116 = sbr.rel (%p113) target = $region12
    $region11: #{patch_discriminator_forward.8} parent=5 // pred_region
      %s117 = ssub.s32 %s9, 1
      // Predicated region
      $region13: #{patch_discriminator_forward.8} parent=11 // pred_check
        %p118 = pneg %p56
      $region14: #{patch_discriminator_forward.8} parent=11 // pred_check_branch
        %120 = sbr.rel (%p118) target = $region16
      $region15: #{patch_discriminator_forward.8} parent=11 // pred_region
        _
      $region16: #{patch_discriminator_forward.8} parent=11 // pred_fallthru
        _
      // Predicated region
      $region17: #{patch_discriminator_forward.8} parent=11 // pred_check
        %p121 = pneg %p77
      $region18: #{patch_discriminator_forward.8} parent=11 // pred_check_branch
        %123 = sbr.rel (%p121) target = $region20
      $region19: #{patch_discriminator_forward.8} parent=11 // pred_region
        _
      $region20: #{patch_discriminator_forward.8} parent=11 // pred_fallthru
        _
    $region12: #{patch_discriminator_forward.8} parent=5 // pred_fallthru
      _
    %p124 = scmp.lt.s32.totalorder %s9, 2
    // Predicated region
    $region21: #{patch_discriminator_forward.8} parent=5 // pred_check
      %p125 = pneg %p124
    $region22: #{patch_discriminator_forward.8} parent=5 // pred_check_branch
      %127 = sbr.rel (%p125) target = $region24
    $region23: #{patch_discriminator_forward.8} parent=5 // pred_region
      // Predicated region
      $region25: #{patch_discriminator_forward.8} parent=23 // pred_check
        %p128 = pneg %p29
      $region26: #{patch_discriminator_forward.8} parent=23 // pred_check_branch
        %130 = sbr.rel (%p128) target = $region28
      $region27: #{patch_discriminator_forward.8} parent=23 // pred_region
        %p131 = scmp.lt.s32.totalorder %s9, 1
        %s132 = scalar_select %p131, %s9, 1
        %s133 = smul.addr %s132, 8
        %s134 = smul.addr %s133, 4
        %s135 = scalar_lea.vmem %s0, %s134
      $region28: #{patch_discriminator_forward.8} parent=23 // pred_fallthru
        _
    $region24: #{patch_discriminator_forward.8} parent=5 // pred_fallthru
      _
    %p136 = scmp.le.s32.totalorder 1, %s9
    %p137 = scmp.lt.s32.totalorder %s9, 3
    %p138 = pnand %p136, %p137
    %p139 = pneg %p138
    // Predicated region
    $region29: #{patch_discriminator_forward.8} parent=5 // pred_check
      _
    $region30: #{patch_discriminator_forward.8} parent=5 // pred_check_branch
      %141 = sbr.rel (%p138) target = $region32
    $region31: #{patch_discriminator_forward.8} parent=5 // pred_region
      %s142 = ssub.s32 %s9, 1
      %p143 = scmp.lt.s32.totalorder %s14, 1
      %s144 = scalar_select %p143, %s14, 1
      %s145 = smul.addr %s144, 8
      %s146 = smul.addr %s145, 4
      %s147 = scalar_lea.vmem %s0, %s146
      %p148 = pneg %p35
      %p149 = pneg %p32
      %p150 = pneg %p56
      %p151 = pneg %p53
      %p152 = pneg %p77
      %p153 = pneg %p74
      %p154 = pneg %p103
      %p155 = pneg %p100
      %p156 = scmp.lt.s32.totalorder %s14, 1
      %s157 = scalar_select %p156, %s14, 1
      %s158 = smul.addr %s157, 4
      %s159 = smul.addr %s158, 4
      %s160 = scalar_lea.vmem %s3, %s159
      %p161 = scmp.lt.s32.totalorder %s14, 1
      %s162 = scalar_select %p161, %s14, 1
      %s163 = smul.addr %s162, 8
      %s164 = smul.addr %s163, 4
      %s165 = scalar_lea.vmem %s0, %s164
      %p166 = scmp.lt.s32.totalorder %s14, 1
      %s167 = scalar_select %p166, %s14, 1
      %s168 = smul.addr %s167, 4
      %s169 = smul.addr %s168, 4
      %s170 = scalar_lea.vmem %s3, %s169
      %v171 = vld [vmem:[%s165] sm:$0xff]
      %v172 = vld [vmem:[%s165 + $0x8] sm:$0xff]
      %v173 = vld [vmem:[%s165 + $0x10] sm:$0xff]
      %v174 = vld [vmem:[%s165 + $0x18] sm:$0x11]
      %v175 = vld [vmem:[%s1] sm:$0xf]
      %v176 = vld [vmem:[%s1 + $0x4] sm:$0xf]
      %v177 = vld [vmem:[%s1 + $0x8] sm:$0xf]
      %v178 = vld [vmem:[%s1 + $0xc] sm:$0xf]
      %v179 = vld [vmem:[%s1 + $0x10] sm:$0xf]
      %v180 = vld [vmem:[%s1 + $0x14] sm:$0xf]
      %v181 = vld [vmem:[%s1 + $0x18] sm:$0xf]
      %v182 = vld [vmem:[%s1 + $0x1c] sm:$0xf]
      %v183 = vld [vmem:[%s1 + $0x20] sm:$0xf]
      %v184 = vld [vmem:[%s1 + $0x24] sm:$0xf]
      %v185 = vld [vmem:[%s1 + $0x28] sm:$0xf]
      %v186 = vld [vmem:[%s1 + $0x2c] sm:$0xf]
      %v187 = vld [vmem:[%s1 + $0x30] sm:$0xf]
      %v188 = vld [vmem:[%s1 + $0x34] sm:$0xf]
      %v189 = vld [vmem:[%s1 + $0x38] sm:$0xf]
      %v190 = vld [vmem:[%s1 + $0x3c] sm:$0xf]
      %v191 = vld [vmem:[%s1 + $0x40] sm:$0xf]
      %v192 = vld [vmem:[%s1 + $0x44] sm:$0xf]
      %v193 = vld [vmem:[%s1 + $0x48] sm:$0xf]
      %v194 = vld [vmem:[%s1 + $0x4c] sm:$0xf]
      %v195 = vld [vmem:[%s1 + $0x50] sm:$0xf]
      %v196 = vld [vmem:[%s1 + $0x54] sm:$0xf]
      %v197 = vld [vmem:[%s1 + $0x58] sm:$0xf]
      %v198 = vld [vmem:[%s1 + $0x5c] sm:$0xf]
      %v199 = vld [vmem:[%s1 + $0x60] sm:$0xf]
      %v200 = vld [vmem:[%s1 + $0x64] sm:$0xf]
      %v201 = vld [vmem:[%s1 + $0x68] sm:$0xf]
      %v202 = vld [vmem:[%s1 + $0x6c] sm:$0xf]
      %v203 = vld [vmem:[%s1 + $0x70] sm:$0xf]
      %v204 = vld [vmem:[%s1 + $0x74] sm:$0xf]
      %v205 = vld [vmem:[%s1 + $0x78] sm:$0xf]
      %v206 = vld [vmem:[%s1 + $0x7c] sm:$0xf]
      %v207 = vld [vmem:[%s2] sm:$0x1]
      %v209 = vperm.slane %v207, 0
      %v215 = vunpack.c.l.b16 %v171
      %v216 = vunpack.c.h.b16 %v171
      %v217 = vunpack.c.l.b16 %v172
      %v218 = vunpack.c.h.b16 %v172
      %v219 = vunpack.c.l.b16 %v173
      %v220 = vunpack.c.h.b16 %v173
      %v221 = vunpack.c.l.b16 %v174
      %v222 = vunpack.c.h.b16 %v174
      %v223 = vpack.c.b16 %v217, %v215
      %v224 = vpack.c.b16 %v218, %v216
      %v225 = vpack.c.b16 %v221, %v219
      %v226 = vpack.c.b16 %v222, %v220
      %v263 = vunpack.c.l.b16 %v175
      %v264 = vunpack.c.l.b16 %v176
      %v265 = vunpack.c.l.b16 %v177
      %v266 = vunpack.c.l.b16 %v178
      %v267 = vunpack.c.l.b16 %v179
      %v268 = vunpack.c.l.b16 %v180
      %v269 = vunpack.c.l.b16 %v181
      %v270 = vunpack.c.l.b16 %v182
      %v271 = vunpack.c.l.b16 %v183
      %v272 = vunpack.c.l.b16 %v184
      %v273 = vunpack.c.l.b16 %v185
      %v274 = vunpack.c.l.b16 %v186
      %v275 = vunpack.c.l.b16 %v187
      %v276 = vunpack.c.l.b16 %v188
      %v277 = vunpack.c.l.b16 %v189
      %v278 = vunpack.c.l.b16 %v190
      %v279 = vunpack.c.l.b16 %v191
      %v280 = vunpack.c.l.b16 %v192
      %v281 = vunpack.c.l.b16 %v193
      %v282 = vunpack.c.l.b16 %v194
      %v283 = vunpack.c.l.b16 %v195
      %v284 = vunpack.c.l.b16 %v196
      %v285 = vunpack.c.l.b16 %v197
      %v286 = vunpack.c.l.b16 %v198
      %v287 = vunpack.c.l.b16 %v199
      %v288 = vunpack.c.l.b16 %v200
      %v289 = vunpack.c.l.b16 %v201
      %v290 = vunpack.c.l.b16 %v202
      %v291 = vunpack.c.l.b16 %v203
      %v292 = vunpack.c.l.b16 %v204
      %v293 = vunpack.c.l.b16 %v205
      %v294 = vunpack.c.l.b16 %v206
      %v295 = vpack.c.b16 %v264, %v263
      %v296 = vpack.c.b16 %v266, %v265
      %v297 = vpack.c.b16 %v268, %v267
      %v298 = vpack.c.b16 %v270, %v269
      %v299 = vpack.c.b16 %v272, %v271
      %v300 = vpack.c.b16 %v274, %v273
      %v301 = vpack.c.b16 %v276, %v275
      %v302 = vpack.c.b16 %v278, %v277
      %v303 = vpack.c.b16 %v280, %v279
      %v304 = vpack.c.b16 %v282, %v281
      %v305 = vpack.c.b16 %v284, %v283
      %v306 = vpack.c.b16 %v286, %v285
      %v307 = vpack.c.b16 %v288, %v287
      %v308 = vpack.c.b16 %v290, %v289
      %v309 = vpack.c.b16 %v292, %v291
      %v310 = vpack.c.b16 %v294, %v293
      %327 = vmatpush.bf16.msra.mxu0 %v302
      %328 = vmatpush.bf16.msra.mxu0 %v301
      %329 = vmatpush.bf16.msra.mxu0 %v300
      %330 = vmatpush.bf16.msra.mxu0 %v299
      %331 = vmatpush.bf16.msra.mxu0 %v298
      %332 = vmatpush.bf16.msra.mxu0 %v297
      %333 = vmatpush.bf16.msra.mxu0 %v296
      %334 = vmatpush.bf16.msra.mxu0 %v295
      %335 = vmatmul.bf16.gmra.mxu0 %v223
      %v336 = vpop.f32.mrf.mxu0
      %v337 = vadd.f32 %v209, %v336
      %v338 = vpop.f32.mrf.mxu0
      %v339 = vadd.f32 %v209, %v338
      %340 = vmatmul.bf16.gmra.mxu0 %v225
      %v341 = vpop.f32.mrf.mxu0
      %v342 = vadd.f32 %v209, %v341
      %v343 = vpop.f32.mrf.mxu0
      %v344 = vadd.f32 %v209, %v343
      %345 = vdwg.mxu0
      %346 = vmatpush.bf16.msra.mxu0 %v310
      %347 = vmatpush.bf16.msra.mxu0 %v309
      %348 = vmatpush.bf16.msra.mxu0 %v308
      %349 = vmatpush.bf16.msra.mxu0 %v307
      %350 = vmatpush.bf16.msra.mxu0 %v306
      %351 = vmatpush.bf16.msra.mxu0 %v305
      %352 = vmatpush.bf16.msra.mxu0 %v304
      %353 = vmatpush.bf16.msra.mxu0 %v303
      %354 = vmatmul.bf16.gmra.mxu0 %v224
      %v355 = vpop.f32.mrf.mxu0
      %v356 = vadd.f32 %v337, %v355
      %v357 = vpop.f32.mrf.mxu0
      %v358 = vadd.f32 %v339, %v357
      %359 = vmatmul.bf16.gmra.mxu0 %v226
      %v360 = vpop.f32.mrf.mxu0
      %v361 = vadd.f32 %v342, %v360
      %v362 = vpop.f32.mrf.mxu0
      %v363 = vadd.f32 %v344, %v362
      %364 = vdwg.mxu0
      %vm365 = vcmask 261120
      %v366 = vsel %vm365, %v356, 0.0
      %v367 = vsel %vm365, %v358, 0.0
      %v368 = vadd.f32 %v366, %v367
      %v369 = vsel %vm365, %v361, 0.0
      %v370 = vadd.f32 %v368, %v369
      %vm371 = vcmask 253952
      %v372 = vsel %vm371, %v363, 0.0
      %v373 = vadd.f32 %v370, %v372
      %v374 = vrot.slane %v373, 4
      %v375 = vadd.f32 %v373, %v374
      %v376 = vrot.slane %v375, 2
      %v377 = vadd.f32 %v375, %v376
      %v378 = vrot.slane %v377, 1
      %v379 = vadd.f32 %v377, %v378
      %v380 = vrcp.pop 25.0
      %v381 = vmul.f32 25.0, %v380
      %v382 = vsub.f32 1.0, %v381
      %v383 = vmul.f32 %v380, %v382
      %v384 = vadd.f32 %v380, %v383
      %vm385 = vweird.f32 %v380
      %v386 = vsel %vm385, %v380, %v384
      %v387 = vmul.f32 %v379, %v386
      %v388 = vsub.f32 %v356, %v387
      %v389 = vsub.f32 %v358, %v387
      %v390 = vsub.f32 %v361, %v387
      %v391 = vsub.f32 %v363, %v387
      %v392 = vmul.f32 %v388, %v388
      %v393 = vmul.f32 %v389, %v389
      %v394 = vmul.f32 %v390, %v390
      %v395 = vmul.f32 %v391, %v391
      %v396 = vsel %vm365, %v392, 0.0
      %v397 = vsel %vm365, %v393, 0.0
      %v398 = vadd.f32 %v396, %v397
      %v399 = vsel %vm365, %v394, 0.0
      %v400 = vadd.f32 %v398, %v399
      %v401 = vsel %vm371, %v395, 0.0
      %v402 = vadd.f32 %v400, %v401
      %v403 = vrot.slane %v402, 4
      %v404 = vadd.f32 %v402, %v403
      %v405 = vrot.slane %v404, 2
      %v406 = vadd.f32 %v404, %v405
      %v407 = vrot.slane %v406, 1
      %v408 = vadd.f32 %v406, %v407
      %v409 = vmul.f32 %v408, %v386
      %v410 = vadd.f32 %v409, 1e-05
      %v411 = vrsqrt.pop %v410
      %v412 = vmul.f32 %v411, %v410
      %v413 = vmul.f32 %v412, %v411
      %v414 = vmul.f32 0.5, %v413
      %v415 = vsub.f32 1.5, %v414
      %v416 = vmul.f32 %v411, %v415
      %vm417 = vweird.f32 %v410
      %vm418 = vweird.f32 %v411
      %vm419 = vmor %vm417, %vm418
      %v420 = vsel %vm419, %v411, %v416
      %v421 = vmul.f32 %v388, %v420
      %v422 = vmul.f32 %v389, %v420
      %v423 = vmul.f32 %v390, %v420
      %v424 = vmul.f32 %v391, %v420
      %vm425 = vcmp.ge.f32.partialorder %v421, 0.0
      %vm426 = vcmp.ge.f32.partialorder %v422, 0.0
      %vm427 = vcmp.ge.f32.partialorder %v423, 0.0
      %vm428 = vcmp.ge.f32.partialorder %v424, 0.0
      %v429 = vmul.f32 %v421, 0.2
      %v430 = vmul.f32 %v422, 0.2
      %v431 = vmul.f32 %v423, 0.2
      %v432 = vmul.f32 %v424, 0.2
      %v433 = vsel %vm425, %v421, %v429
      %v434 = vsel %vm426, %v422, %v430
      %v435 = vsel %vm427, %v423, %v431
      %v436 = vsel %vm428, %v424, %v432
      %v437 = vpack.c.bf16 %v433, %v433
      %v438 = vpack.c.bf16 %v434, %v434
      %v439 = vpack.c.bf16 %v435, %v435
      %v440 = vpack.c.bf16 %v436, %v436
      %vm441 = vcmask 257024
      %442 = vst.msk [vmem:[%s170] sm:$0xf] %vm441, %v437
      %443 = vst.msk [vmem:[%s170 + $0x4] sm:$0xf] %vm441, %v438
      %444 = vst.msk [vmem:[%s170 + $0x8] sm:$0xf] %vm441, %v439
      %vm445 = vcmask 253952
      %vm446 = vsmask.f32 256
      %vm447 = vmand %vm445, %vm446
      %v448 = vld [vmem:[%s170 + $0xc] sm:$0x1]
      %v449 = vsel %vm447, %v440, %v448
      %450 = vst [vmem:[%s170 + $0xc] sm:$0x1] %v449
      %p451 = scmp.lt.s32.totalorder %s14, 1
      %s452 = scalar_select %p451, %s14, 1
      %s453 = smul.addr %s452, 4
      %s454 = smul.addr %s453, 4
      %s455 = scalar_lea.vmem %s3, %s454
      // Predicated region
      $region33: #{patch_discriminator_forward.8} parent=31 // pred_check
        %p456 = pneg %p100
      $region34: #{patch_discriminator_forward.8} parent=31 // pred_check_branch
        %458 = sbr.rel (%p456) target = $region36
      $region35: #{patch_discriminator_forward.8} parent=31 // pred_region
        _
      $region36: #{patch_discriminator_forward.8} parent=31 // pred_fallthru
        _
    $region32: #{patch_discriminator_forward.8} parent=5 // pred_fallthru
      _
    %p459 = scmp.le.s32.totalorder 2, %s9
    // Predicated region
    $region37: #{patch_discriminator_forward.8} parent=5 // pred_check
      %p460 = pneg %p459
    $region38: #{patch_discriminator_forward.8} parent=5 // pred_check_branch
      %462 = sbr.rel (%p460) target = $region40
    $region39: #{patch_discriminator_forward.8} parent=5 // pred_region
      %s463 = ssub.s32 %s9, 2
      // Predicated region
      $region41: #{patch_discriminator_forward.8} parent=39 // pred_check
        %p464 = pneg %p106
      $region42: #{patch_discriminator_forward.8} parent=39 // pred_check_branch
        %466 = sbr.rel (%p464) target = $region44
      $region43: #{patch_discriminator_forward.8} parent=39 // pred_region
        %p467 = scmp.lt.s32.totalorder %s15, 1
        %s468 = scalar_select %p467, %s15, 1
        %s469 = smul.addr %s468, 4
        %s470 = smul.addr %s469, 4
        %s471 = scalar_lea.vmem %s3, %s470
      $region44: #{patch_discriminator_forward.8} parent=39 // pred_fallthru
        _
    $region40: #{patch_discriminator_forward.8} parent=5 // pred_fallthru
      _
  $region6: #{patch_discriminator_forward.8} parent=0 // loop_footer
    %s13 = sadd.s32 1, %s9
  $region7: #{patch_discriminator_forward.8} parent=0 // loop_footer_branch
    %8 = sbr.rel target = $region3
  $region8: #{patch_discriminator_forward.8} parent=0 // loop_exit
    _

// kernel: patch_discriminator_forward.9
$region0: #{patch_discriminator_forward.9}
  #allocation0 [shape = 'u32[]', space=smem, size = 0x4, offset = 0x4, fixed_abs, tag = 'smem constant byte address 0x4 - core index']
  #allocation1 [shape = 'u32[72,128]{1,0:T(1,128)}', space=vmem, size = 0x9000, scoped, tag = 'internal scratch']
  %s0 = inlined_call_operand.vmem [shape: bf16[8,512], index: 0, kind: input, shape index: {}]
  %s1 = inlined_call_operand.vmem [shape: bf16[1,512], index: 1, kind: input, shape index: {}]
  %s2 = inlined_call_operand.vmem [shape: f32[8,1], index: 2, kind: output, shape index: {}]
  %s3 = sld [smem:[#allocation0]]
  $region18: #{patch_discriminator_forward.9} parent=0
    _
  %s5 = ssub.s32 1, %s3
  %s6 = scalar_select 0, %s5, %s3
  // Predicated region
  $region2: #{patch_discriminator_forward.9} parent=0 // pred_check
    _
  $region3: #{patch_discriminator_forward.9} parent=0 // pred_check_branch
    %8 = sbr.rel (0) target = $region5
  $region4: #{patch_discriminator_forward.9} parent=0 // pred_region
    _
  $region5: #{patch_discriminator_forward.9} parent=0 // pred_fallthru
    _
  // Predicated region
  $region6: #{patch_discriminator_forward.9} parent=0 // pred_check
    _
  $region7: #{patch_discriminator_forward.9} parent=0 // pred_check_branch
    %10 = sbr.rel (0) target = $region9
  $region8: #{patch_discriminator_forward.9} parent=0 // pred_region
    _
  $region9: #{patch_discriminator_forward.9} parent=0 // pred_fallthru
    _
  %v11 = vld [vmem:[%s0] sm:$0xff]
  %v12 = vld [vmem:[%s0 + $0x8] sm:$0xff]
  %v13 = vunpack.c.l.bf16 %v11
  %v14 = vunpack.c.h.bf16 %v11
  %v15 = vunpack.c.l.bf16 %v12
  %v16 = vunpack.c.h.bf16 %v12
  %v17 = vld [vmem:[%s1] sm:$0xf]
  %v18 = vunpack.c.l.bf16 %v17
  %v20 = vperm.slane %v18, 0
  %v21 = vperm.slane %v18, 2
  %v22 = vperm.slane %v18, 4
  %v23 = vperm.slane %v18, 6
  %v28 = vperm.slane %v20, 0
  %v29 = vperm.slane %v21, 0
  %v30 = vperm.slane %v22, 0
  %v31 = vperm.slane %v23, 0
  %v32 = vmul.f32 %v13, %v28
  %v33 = vmul.f32 %v14, %v29
  %v34 = vmul.f32 %v15, %v30
  %v35 = vmul.f32 %v16, %v31
  %v36 = vadd.f32 %v32, %v33
  %v37 = vadd.f32 %v36, %v34
  %v38 = vadd.f32 %v37, %v35
  %39 = vadd.xlane.f32.xlu0 %v38
  %v40 = vpop.xlane.xlu0 %39
  %vm41 = vcmask 7168
  %42 = vst.msk [vmem:[%s2] sm:$0xff] %vm41, %v40
  // Predicated region
  $region10: #{patch_discriminator_forward.9} parent=0 // pred_check
    _
  $region11: #{patch_discriminator_forward.9} parent=0 // pred_check_branch
    %44 = sbr.rel (0) target = $region13
  $region12: #{patch_discriminator_forward.9} parent=0 // pred_region
    _
  $region13: #{patch_discriminator_forward.9} parent=0 // pred_fallthru
    _
  // Predicated region
  $region14: #{patch_discriminator_forward.9} parent=0 // pred_check
    _
  $region15: #{patch_discriminator_forward.9} parent=0 // pred_check_branch
    %46 = sbr.rel (0) target = $region17
  $region16: #{patch_discriminator_forward.9} parent=0 // pred_region
    _
  $region17: #{patch_discriminator_forward.9} parent=0 // pred_fallthru
    _

</llo_original>
